<compile_context>
chip_gen: v6e
topology: v6e:2x2x1
jax: 0.10.0
libtpu: 0.0.40
codegen_flags: <defaults>
</compile_context>

<pallas_src>
import math

import jax
import jax.numpy as jnp
from jax.experimental import pallas as pl
from jax.experimental.pallas import tpu as pltpu

EPS = 1e-10
_NEG_LOG_SQRT_2PI = -math.log(math.sqrt(2.0 * math.pi))

# lane assignment inside the per-(m, j) (1, 1, 1, 128) partial-sum row
_L_LVP_W, _L_LVP_B, _L_WSQ, _L_BSQ, _L_SIG_D, _L_SIG_D2 = range(6)


def _softplus(x):
    # numerically stable softplus == torch.log1p(torch.exp(x))
    return jnp.maximum(x, 0.0) + jnp.log(1.0 + jnp.exp(-jnp.abs(x)))


def _pick_tile(dim, candidates=(512, 256, 128), prefer_split=False):
    """Largest candidate tile dividing `dim` (optionally preferring >=2 blocks)."""
    divs = [t for t in candidates if dim % t == 0]
    if not divs:
        return dim          # small / non-128-multiple dims: full extent
    if prefer_split:
        for t in divs:      # keep >=2 output blocks for v7x megacore
            if dim // t >= 2:
                return t
    return divs[0]


def _vmem_limit_bytes(tile_m, tile_i, tile_o, w_isz, x_isz):
    w_blk = 3 * tile_i * tile_o * w_isz            # w_mu / w_rho blocks
    e_blk = tile_i * tile_o * w_isz                # eps_w (cc slab only)
    x_blk = tile_m * tile_i * x_isz
    o_blk = tile_m * tile_o * 4
    est = 2 * (2 * w_blk + e_blk + x_blk + o_blk)  # double-buffered pipeline
    est += 8 * tile_i * tile_o * 4                 # elementwise f32 temporaries
    est += 1 << 20                                 # bias blocks / partial rows
    return int(min(max(est, 32 * 1024 * 1024), 56 * 1024 * 1024))


def _bayesian_linear_kernel(cc_ref, shift_ref, x_ref, w_mu_ref, w_rho_ref,
                            eps_w_ref, b_mu_ref, b_rho_ref, eps_b_ref,
                            out_ref, part_ref):
    # grid: (m over batch tiles [parallel], j over n_output tiles [parallel],
    #        k over n_input tiles [reduction])
    m = pl.program_id(0)
    k = pl.program_id(2)
    nk = pl.num_programs(2)
    cc = cc_ref[0]

    @pl.when(k == 0)
    def _init():
        out_ref[...] = jnp.zeros_like(out_ref)
        part_ref[...] = jnp.zeros_like(part_ref)

    # ---- sample w[cc] for this (k, j) tile ---------------------------------
    # Fused select: pick the raw cc component with jnp.where on the refs and
    # run softplus once; no 3x block-sized mu/sigma temporaries kept live.
    mu_cc = w_mu_ref[0].astype(jnp.float32)
    rho_cc = w_rho_ref[0].astype(jnp.float32)
    for c in (1, 2):
        mu_cc = jnp.where(cc == c, w_mu_ref[c].astype(jnp.float32), mu_cc)
        rho_cc = jnp.where(cc == c, w_rho_ref[c].astype(jnp.float32), rho_cc)
    w_s = mu_cc + _softplus(rho_cc) * eps_w_ref[0].astype(jnp.float32)

    # ---- F.linear: x @ w[cc].T accumulated over the K grid axis ------------
    # bf16 MXU feed, f32 accumulation (per perf feedback).
    out_ref[...] += jnp.dot(x_ref[...].astype(jnp.bfloat16),
                            w_s.astype(jnp.bfloat16),
                            preferred_element_type=jnp.float32)

    # ---- weight statistics: only on the first batch tile (m == 0) ----------
    @pl.when(m == 0)
    def _weight_stats():
        shift = shift_ref[0]
        w_sq = jnp.sum(w_s * w_s)
        lvp_w = 0.0
        sig_d = 0.0
        sig_d2 = 0.0
        # single fused pass over the 3 components; each softplus is consumed
        # immediately so nothing block-sized survives an iteration.
        for c in range(3):
            sig_c = _softplus(w_rho_ref[c].astype(jnp.float32))
            d = w_s - w_mu_ref[c].astype(jnp.float32)
            lvp_w = lvp_w + jnp.sum(-jnp.log(sig_c + EPS)
                                    - (d * d) / (2.0 * sig_c * sig_c))
            ds = sig_c - shift                 # shifted accumulation (stability)
            sig_d = sig_d + jnp.sum(ds)
            sig_d2 = sig_d2 + jnp.sum(ds * ds)
        lane = jax.lax.broadcasted_iota(jnp.int32, part_ref.shape, 3)
        part_ref[...] += (jnp.where(lane == _L_LVP_W, lvp_w, 0.0)
                          + jnp.where(lane == _L_WSQ, w_sq, 0.0)
                          + jnp.where(lane == _L_SIG_D, sig_d, 0.0)
                          + jnp.where(lane == _L_SIG_D2, sig_d2, 0.0))

    # ---- bias: add to every output tile on the last K step -----------------
    @pl.when(k == nk - 1)
    def _bias_add():
        b_mu = b_mu_ref[...].astype(jnp.float32)     # (3, TO)
        b_rho = b_rho_ref[...].astype(jnp.float32)
        is_cc = jax.lax.broadcasted_iota(jnp.int32, b_mu.shape, 0) == cc
        mu_b = jnp.sum(jnp.where(is_cc, b_mu, 0.0), axis=0, keepdims=True)
        rho_b = jnp.sum(jnp.where(is_cc, b_rho, 0.0), axis=0, keepdims=True)
        b_s = mu_b + _softplus(rho_b) * eps_b_ref[0]  # (1, TO), eps already cc slab
        out_ref[...] += b_s                           # broadcast over batch rows

    # ---- bias statistics: once per output tile, first batch tile only ------
    @pl.when(jnp.logical_and(k == nk - 1, m == 0))
    def _bias_stats():
        b_mu = b_mu_ref[...].astype(jnp.float32)
        b_rho = b_rho_ref[...].astype(jnp.float32)
        is_cc = jax.lax.broadcasted_iota(jnp.int32, b_mu.shape, 0) == cc
        mu_b = jnp.sum(jnp.where(is_cc, b_mu, 0.0), axis=0, keepdims=True)
        rho_b = jnp.sum(jnp.where(is_cc, b_rho, 0.0), axis=0, keepdims=True)
        b_s = mu_b + _softplus(rho_b) * eps_b_ref[0]
        b_sig = _softplus(b_rho)                      # (3, TO)
        db = b_s - b_mu                               # (1,TO)-(3,TO) -> (3,TO)
        lvp_b = jnp.sum(-jnp.log(b_sig + EPS) - (db * db) / (2.0 * b_sig * b_sig))
        b_sq = jnp.sum(b_s * b_s)
        lane = jax.lax.broadcasted_iota(jnp.int32, part_ref.shape, 3)
        part_ref[...] += (jnp.where(lane == _L_LVP_B, lvp_b, 0.0)
                          + jnp.where(lane == _L_BSQ, b_sq, 0.0))


def bayesian_linear_forward(x, w_mu_t, w_rho_t, b_mu, b_rho, eps_w_t, eps_b,
                            cc, sigma1, *, tile_m=None, tile_i=None, tile_o=None):
    """Sampling-mode forward of BayesianLinear.

    Layouts (TPU-friendly storage; transpose of torch's (3, O, I) layout):
      x        : (batch, n_input)           f32
      w_mu_t   : (3, n_input, n_output)     f32 or bf16 (upcast in-kernel)
      w_rho_t  : (3, n_input, n_output)     f32 or bf16
      eps_w_t  : (3, n_input, n_output)     f32 or bf16 (only the cc slab is read)
      b_mu/b_rho/eps_b : (3, n_output)      f32
      cc       : (1,) int32 in {0,1,2}
      sigma1   : python float (prior sigma)

    Returns (out, log_prior, log_variational_posterior, sigma_mean, sigma_std).
    """
    batch, n_input = x.shape
    three, n_input_w, n_output = w_mu_t.shape
    assert three == 3 and n_input_w == n_input

    tile_i = tile_i or _pick_tile(n_input)
    tile_o = tile_o or _pick_tile(n_output, prefer_split=True)
    tile_m = tile_m or _pick_tile(batch)
    assert n_input % tile_i == 0 and n_output % tile_o == 0 and batch % tile_m == 0
    nm, nj, nk = batch // tile_m, n_output // tile_o, n_input // tile_i

    # Shift for the sigma mean/std accumulation (any constant is algebraically
    # valid; a nearby sigma value avoids catastrophic cancellation).
    r0 = w_rho_t.reshape(-1)[0].astype(jnp.float32)
    sig_shift = _softplus(r0).reshape(1)

    # eps_b reshaped to (3, 1, n_output) so the cc row can be slab-indexed with
    # a lane-aligned block (like eps_w).
    eps_b3 = eps_b.reshape(3, 1, n_output)

    grid_spec = pltpu.PrefetchScalarGridSpec(
        num_scalar_prefetch=2,                       # cc, sig_shift
        grid=(nm, nj, nk),
        in_specs=[
            pl.BlockSpec((tile_m, tile_i), lambda m, j, k, cc, s: (m, k)),           # x
            pl.BlockSpec((3, tile_i, tile_o), lambda m, j, k, cc, s: (0, k, j)),     # w_mu_t
            pl.BlockSpec((3, tile_i, tile_o), lambda m, j, k, cc, s: (0, k, j)),     # w_rho_t
            pl.BlockSpec((1, tile_i, tile_o), lambda m, j, k, cc, s: (cc[0], k, j)), # eps_w (cc slab)
            pl.BlockSpec((3, tile_o), lambda m, j, k, cc, s: (0, j)),                # b_mu
            pl.BlockSpec((3, tile_o), lambda m, j, k, cc, s: (0, j)),                # b_rho
            pl.BlockSpec((1, 1, tile_o), lambda m, j, k, cc, s: (cc[0], 0, j)),      # eps_b (cc row)
        ],
        out_specs=(
            pl.BlockSpec((tile_m, tile_o), lambda m, j, k, cc, s: (m, j)),           # linear out
            pl.BlockSpec((1, 1, 1, 128), lambda m, j, k, cc, s: (m, j, 0, 0)),       # partial sums
        ),
    )

    w_isz = jnp.dtype(w_mu_t.dtype).itemsize
    x_isz = jnp.dtype(x.dtype).itemsize
    cost = pl.CostEstimate(
        flops=int(2 * batch * n_input * n_output + 25 * 3 * n_input * n_output),
        transcendentals=int(9 * n_input * n_output + 12 * n_output),
        bytes_accessed=int(nm * 7 * n_input * n_output * w_isz
                           + nj * batch * n_input * x_isz
                           + 4 * batch * n_output
                           + 9 * n_output * 4 + 512 * nm * nj),
    )

    out, partials = pl.pallas_call(
        _bayesian_linear_kernel,
        out_shape=(
            jax.ShapeDtypeStruct((batch, n_output), jnp.float32),
            jax.ShapeDtypeStruct((nm, nj, 1, 128), jnp.float32),
        ),
        grid_spec=grid_spec,
        compiler_params=pltpu.CompilerParams(
            dimension_semantics=("parallel", "parallel", "arbitrary"),
            vmem_limit_bytes=_vmem_limit_bytes(tile_m, tile_i, tile_o, w_isz, x_isz)),
        cost_estimate=cost,
    )(cc, sig_shift, x, w_mu_t, w_rho_t, eps_w_t, b_mu, b_rho, eps_b3)

    # ---- tiny scalar epilogue (O(nm*nj*128) work, outside the kernel) -------
    lanes = jnp.sum(partials, axis=(0, 1, 2))                    # (128,)
    lvp_w, lvp_b = lanes[_L_LVP_W], lanes[_L_LVP_B]
    w_sq, b_sq = lanes[_L_WSQ], lanes[_L_BSQ]
    sig_d, sig_d2 = lanes[_L_SIG_D], lanes[_L_SIG_D2]

    c0 = _NEG_LOG_SQRT_2PI
    n_w = 3.0 * n_output * n_input

    # GaussianPrior(0, sigma1).log_prob(repeat(3,...)) / 3  (weights + biases)
    log_prior = ((n_output * n_input + n_output) * (c0 - math.log(sigma1))
                 - (w_sq + b_sq) / (2.0 * sigma1 * sigma1))
    # Gaussian.log_prob(w_mat)/3 + Gaussian.log_prob(b_mat)/3.  b_mat is (3,1,O)
    # in torch, so its broadcast against (3,O) mu/sigma triples the bias sum and
    # cancels the /3 (matched exactly here).
    log_vp = (n_output * n_input + 3 * n_output) * c0 + lvp_w / 3.0 + lvp_b
    # shifted-sum mean / unbiased std of softplus(w_rho).
    sigma_mean = sig_shift[0] + sig_d / n_w
    var = jnp.maximum((sig_d2 - sig_d * sig_d / n_w) / (n_w - 1.0), 0.0)
    sigma_std = jnp.sqrt(var)

    return out, log_prior, log_vp, sigma_mean, sigma_std


if __name__ == "__main__":
    n_input, n_output, batch = 256, 256, 16
    sigma1 = 1.0
    lower_bound, upper_bound = -5.0, -4.0

    key = jax.random.PRNGKey(0)
    ks = jax.random.split(key, 8)
    std0 = math.sqrt(2.0 / n_input)

    # torch-layout parameters (3, n_output, n_input), mirroring nn.Parameter init
    w_mu = std0 * jax.random.normal(ks[0], (3, n_output, n_input), jnp.float32)
    w_rho = jax.random.uniform(ks[1], (3, n_output, n_input), jnp.float32,
                               lower_bound, upper_bound)
    b_mu = std0 * jax.random.normal(ks[2], (3, n_output), jnp.float32)
    b_rho = jax.random.uniform(ks[3], (3, n_output), jnp.float32,
                               lower_bound, upper_bound)
    # externally drawn randomness; eps_w drawn directly in the TPU-friendly
    # (3, n_input, n_output) layout (iid normal -> distributionally identical)
    eps_w_t = jax.random.normal(ks[4], (3, n_input, n_output), jnp.float32)
    eps_b = jax.random.normal(ks[5], (3, n_output), jnp.float32)
    cc = jax.random.randint(ks[6], (1,), 0, 3).astype(jnp.int32)
    x = jax.random.normal(ks[7], (batch, n_input), jnp.float32)

    # TPU storage: transposed + weight-side tensors in bf16 (perf feedback);
    # math stays f32 in-kernel.
    w_mu_tb = jnp.swapaxes(w_mu, 1, 2).astype(jnp.bfloat16)
    w_rho_tb = jnp.swapaxes(w_rho, 1, 2).astype(jnp.bfloat16)
    eps_w_tb = eps_w_t.astype(jnp.bfloat16)

    # run 1: explicit small tiles -> exercises the full 3-D (m, j, k) grid
    res1 = bayesian_linear_forward(x, w_mu_tb, w_rho_tb, b_mu, b_rho,
                                   eps_w_tb, eps_b, cc, sigma1,
                                   tile_m=8, tile_i=128, tile_o=128)
    # run 2: auto-picked tiles (the production path)
    res2 = bayesian_linear_forward(x, w_mu_tb, w_rho_tb, b_mu, b_rho,
                                   eps_w_tb, eps_b, cc, sigma1)
    jax.block_until_ready((res1, res2))

    # ---------------- plain-JAX reference (torch-exact semantics, computed ---
    # ---------------- from the same bf16-stored parameters) ------------------
    ci = int(cc[0])
    w_mu_f = w_mu_tb.astype(jnp.float32)       # (3, I, O)
    w_rho_f = w_rho_tb.astype(jnp.float32)
    eps_w_f = eps_w_tb.astype(jnp.float32)
    w_sig = _softplus(w_rho_f)
    b_sig = _softplus(b_rho)
    w_all = w_mu_f + w_sig * eps_w_f
    b_all = b_mu + b_sig * eps_b
    wc_t = w_all[ci]                           # (I, O) == w[cc].T
    bc = b_all[ci]
    c0 = _NEG_LOG_SQRT_2PI
    O, I = n_output, n_input

    ref_out = jnp.dot(x.astype(jnp.bfloat16), wc_t.astype(jnp.bfloat16),
                      preferred_element_type=jnp.float32) + bc[None, :]
    ref_lp = ((O * I + O) * (c0 - math.log(sigma1))
              - (jnp.sum(wc_t * wc_t) + jnp.sum(bc * bc)) / (2.0 * sigma1 ** 2))
    ref_lvp_w = jnp.sum(c0 - jnp.log(w_sig + EPS)
                        - (wc_t[None] - w_mu_f) ** 2 / (2.0 * w_sig ** 2))
    ref_lvp_b = jnp.sum(c0 - jnp.log(b_sig + EPS)
                        - (bc[None, :] - b_mu) ** 2 / (2.0 * b_sig ** 2))
    ref_lvp = ref_lvp_w / 3.0 + ref_lvp_b      # (3,1,O) broadcast cancels the /3
    ref_smean = jnp.mean(w_sig)
    ref_sstd = jnp.std(w_sig, ddof=1)

    for out_k, lp_k, lvp_k, sm_k, ss_k in (res1, res2):
        assert jnp.allclose(out_k, ref_out, atol=2e-3, rtol=2e-3)
        assert jnp.allclose(lp_k, ref_lp, rtol=1e-3)
        assert jnp.allclose(lvp_k, ref_lvp, rtol=1e-3)
        assert jnp.allclose(sm_k, ref_smean, rtol=2e-3, atol=1e-6)
        assert jnp.allclose(ss_k, ref_sstd, rtol=2e-3, atol=1e-6)

    print("KERNEL_OK")
</pallas_src>

<mosaic_0001>
module attributes {stable_mosaic.version = 11 : i64} {
  func.func @_bayesian_linear_kernel(%arg0: i32, %arg1: i32, %arg2: i32, %arg3: memref<1xi32, #tpu.memory_space<smem>>, %arg4: memref<1xf32, #tpu.memory_space<smem>>, %arg5: memref<8x128xf32, #tpu.memory_space<vmem>>, %arg6: memref<3x128x128xbf16, #tpu.memory_space<vmem>>, %arg7: memref<3x128x128xbf16, #tpu.memory_space<vmem>>, %arg8: memref<1x128x128xbf16, #tpu.memory_space<vmem>>, %arg9: memref<3x128xf32, #tpu.memory_space<vmem>>, %arg10: memref<3x128xf32, #tpu.memory_space<vmem>>, %arg11: memref<1x1x128xf32, #tpu.memory_space<vmem>>, %arg12: memref<8x128xf32, #tpu.memory_space<vmem>>, %arg13: memref<1x1x1x128xf32, #tpu.memory_space<vmem>>) attributes {dimension_semantics = [#tpu.dimension_semantics<parallel>, #tpu.dimension_semantics<parallel>, #tpu.dimension_semantics<arbitrary>], iteration_bounds = array<i64: 2, 2, 2>, scalar_prefetch = 2 : i64, scratch_operands = 0 : i64, tpu.core_type = #tpu.core_type<tc>, window_params = [{transform_indices = @transform_0, window_bounds = array<i64: 8, 128>}, {transform_indices = @transform_1, window_bounds = array<i64: 3, 128, 128>}, {transform_indices = @transform_2, window_bounds = array<i64: 3, 128, 128>}, {transform_indices = @transform_3, window_bounds = array<i64: 1, 128, 128>}, {transform_indices = @transform_4, window_bounds = array<i64: 3, 128>}, {transform_indices = @transform_5, window_bounds = array<i64: 3, 128>}, {transform_indices = @transform_6, window_bounds = array<i64: 1, 1, 128>}, {transform_indices = @transform_7, window_bounds = array<i64: 8, 128>}, {transform_indices = @transform_8, window_bounds = array<i64: 1, 1, 1, 128>}]} {
    %c0 = arith.constant 0 : index
    %0 = memref.load %arg3[%c0] : memref<1xi32, #tpu.memory_space<smem>>
    %c0_i32 = arith.constant 0 : i32
    %1 = arith.cmpi eq, %arg2, %c0_i32 : i32
    %2 = arith.extui %1 : i1 to i32
    %c0_i32_0 = arith.constant 0 : i32
    %3 = arith.cmpi ne, %2, %c0_i32_0 : i32
    scf.if %3 {
      %cst_38 = arith.constant 0.000000e+00 : f32
      %63 = vector.broadcast %cst_38 : f32 to vector<8x128xf32>
      %c0_39 = arith.constant 0 : index
      %c0_40 = arith.constant 0 : index
      %64 = vector.load %arg12[%c0_39, %c0_40] : memref<8x128xf32, #tpu.memory_space<vmem>>, vector<8x128xf32>
      tpu.vector_store %arg12[%c0_39, %c0_40], %63 {strides = array<i32>} : memref<8x128xf32, #tpu.memory_space<vmem>>, vector<8x128xf32>,
      %cst_41 = arith.constant 0.000000e+00 : f32
      %65 = vector.broadcast %cst_41 : f32 to vector<1x1x1x128xf32>
      %c0_42 = arith.constant 0 : index
      %c0_43 = arith.constant 0 : index
      %c0_44 = arith.constant 0 : index
      %c0_45 = arith.constant 0 : index
      %66 = vector.load %arg13[%c0_42, %c0_43, %c0_44, %c0_45] : memref<1x1x1x128xf32, #tpu.memory_space<vmem>>, vector<1x1x1x128xf32>
      tpu.vector_store %arg13[%c0_42, %c0_43, %c0_44, %c0_45], %65 {strides = array<i32>} : memref<1x1x1x128xf32, #tpu.memory_space<vmem>>, vector<1x1x1x128xf32>,
    } else {
    }
    %c0_1 = arith.constant 0 : index
    %c0_2 = arith.constant 0 : index
    %c0_3 = arith.constant 0 : index
    %4 = vector.load %arg6[%c0_1, %c0_2, %c0_3] : memref<3x128x128xbf16, #tpu.memory_space<vmem>>, vector<1x128x128xbf16>
    %5 = vector.shape_cast %4 : vector<1x128x128xbf16> to vector<128x128xbf16>
    %6 = arith.extf %5 : vector<128x128xbf16> to vector<128x128xf32>
    %c0_4 = arith.constant 0 : index
    %c0_5 = arith.constant 0 : index
    %c0_6 = arith.constant 0 : index
    %7 = vector.load %arg7[%c0_4, %c0_5, %c0_6] : memref<3x128x128xbf16, #tpu.memory_space<vmem>>, vector<1x128x128xbf16>
    %8 = vector.shape_cast %7 : vector<1x128x128xbf16> to vector<128x128xbf16>
    %9 = arith.extf %8 : vector<128x128xbf16> to vector<128x128xf32>
    %c1_i32 = arith.constant 1 : i32
    %10 = arith.cmpi eq, %0, %c1_i32 : i32
    %c1 = arith.constant 1 : index
    %c0_7 = arith.constant 0 : index
    %c0_8 = arith.constant 0 : index
    %11 = vector.load %arg6[%c1, %c0_7, %c0_8] : memref<3x128x128xbf16, #tpu.memory_space<vmem>>, vector<1x128x128xbf16>
    %12 = vector.shape_cast %11 : vector<1x128x128xbf16> to vector<128x128xbf16>
    %13 = arith.extf %12 : vector<128x128xbf16> to vector<128x128xf32>
    %14 = arith.select %10, %13, %6 : vector<128x128xf32>
    %c1_i32_9 = arith.constant 1 : i32
    %15 = arith.cmpi eq, %0, %c1_i32_9 : i32
    %c1_10 = arith.constant 1 : index
    %c0_11 = arith.constant 0 : index
    %c0_12 = arith.constant 0 : index
    %16 = vector.load %arg7[%c1_10, %c0_11, %c0_12] : memref<3x128x128xbf16, #tpu.memory_space<vmem>>, vector<1x128x128xbf16>
    %17 = vector.shape_cast %16 : vector<1x128x128xbf16> to vector<128x128xbf16>
    %18 = arith.extf %17 : vector<128x128xbf16> to vector<128x128xf32>
    %19 = arith.select %15, %18, %9 : vector<128x128xf32>
    %c2_i32 = arith.constant 2 : i32
    %20 = arith.cmpi eq, %0, %c2_i32 : i32
    %c2 = arith.constant 2 : index
    %c0_13 = arith.constant 0 : index
    %c0_14 = arith.constant 0 : index
    %21 = vector.load %arg6[%c2, %c0_13, %c0_14] : memref<3x128x128xbf16, #tpu.memory_space<vmem>>, vector<1x128x128xbf16>
    %22 = vector.shape_cast %21 : vector<1x128x128xbf16> to vector<128x128xbf16>
    %23 = arith.extf %22 : vector<128x128xbf16> to vector<128x128xf32>
    %24 = arith.select %20, %23, %14 : vector<128x128xf32>
    %c2_i32_15 = arith.constant 2 : i32
    %25 = arith.cmpi eq, %0, %c2_i32_15 : i32
    %c2_16 = arith.constant 2 : index
    %c0_17 = arith.constant 0 : index
    %c0_18 = arith.constant 0 : index
    %26 = vector.load %arg7[%c2_16, %c0_17, %c0_18] : memref<3x128x128xbf16, #tpu.memory_space<vmem>>, vector<1x128x128xbf16>
    %27 = vector.shape_cast %26 : vector<1x128x128xbf16> to vector<128x128xbf16>
    %28 = arith.extf %27 : vector<128x128xbf16> to vector<128x128xf32>
    %29 = arith.select %25, %28, %19 : vector<128x128xf32>
    %cst = arith.constant 0.000000e+00 : f32
    %30 = vector.broadcast %cst : f32 to vector<128x128xf32>
    %31 = arith.maximumf %29, %30 : vector<128x128xf32>
    %32 = math.absf %29 : vector<128x128xf32>
    %cst_19 = arith.constant 0.000000e+00 : f32
    %33 = vector.broadcast %cst_19 : f32 to vector<128x128xf32>
    %34 = arith.subf %33, %32 : vector<128x128xf32>
    %35 = math.exp %34 : vector<128x128xf32>
    %cst_20 = arith.constant 1.000000e+00 : f32
    %36 = vector.broadcast %cst_20 : f32 to vector<128x128xf32>
    %37 = arith.addf %36, %35 : vector<128x128xf32>
    %38 = math.log %37 : vector<128x128xf32>
    %39 = arith.addf %31, %38 : vector<128x128xf32>
    %c0_21 = arith.constant 0 : index
    %c0_22 = arith.constant 0 : index
    %c0_23 = arith.constant 0 : index
    %40 = vector.load %arg8[%c0_21, %c0_22, %c0_23] : memref<1x128x128xbf16, #tpu.memory_space<vmem>>, vector<1x128x128xbf16>
    %41 = vector.shape_cast %40 : vector<1x128x128xbf16> to vector<128x128xbf16>
    %42 = arith.extf %41 : vector<128x128xbf16> to vector<128x128xf32>
    %43 = arith.mulf %39, %42 : vector<128x128xf32>
    %44 = arith.addf %24, %43 : vector<128x128xf32>
    %c0_24 = arith.constant 0 : index
    %c0_25 = arith.constant 0 : index
    %45 = vector.load %arg12[%c0_24, %c0_25] : memref<8x128xf32, #tpu.memory_space<vmem>>, vector<8x128xf32>
    %c0_26 = arith.constant 0 : index
    %c0_27 = arith.constant 0 : index
    %46 = vector.load %arg5[%c0_26, %c0_27] : memref<8x128xf32, #tpu.memory_space<vmem>>, vector<8x128xf32>
    %47 = arith.truncf %46 : vector<8x128xf32> to vector<8x128xbf16>
    %48 = arith.truncf %44 : vector<128x128xf32> to vector<128x128xbf16>
    %cst_28 = arith.constant dense<0.000000e+00> : vector<8x128xf32>
    %49 = tpu.matmul %47, %48, %cst_28 {dimension_numbers = #tpu.dot_dimension_numbers<[1], [0], [0], [1], [0, 0, 1, 1], [], []>} : vector<8x128xbf16>, vector<128x128xbf16>, vector<8x128xf32> -> vector<8x128xf32>
    %50 = arith.addf %45, %49 : vector<8x128xf32>
    %c0_29 = arith.constant 0 : index
    %c0_30 = arith.constant 0 : index
    %51 = vector.load %arg12[%c0_29, %c0_30] : memref<8x128xf32, #tpu.memory_space<vmem>>, vector<8x128xf32>
    tpu.vector_store %arg12[%c0_29, %c0_30], %50 {strides = array<i32>} : memref<8x128xf32, #tpu.memory_space<vmem>>, vector<8x128xf32>,
    %c0_i32_31 = arith.constant 0 : i32
    %52 = arith.cmpi eq, %arg0, %c0_i32_31 : i32
    %53 = arith.extui %52 : i1 to i32
    %c0_i32_32 = arith.constant 0 : i32
    %54 = arith.cmpi ne, %53, %c0_i32_32 : i32
    scf.if %54 {
      %c0_38 = arith.constant 0 : index
      %63 = memref.load %arg4[%c0_38] : memref<1xf32, #tpu.memory_space<smem>>
      %64 = arith.mulf %44, %44 : vector<128x128xf32>
      %65 = vector.shape_cast %64 : vector<128x128xf32> to vector<1x128x128xf32>
      %cst_39 = arith.constant dense<0.000000e+00> : vector<1xf32>
      %66 = vector.multi_reduction <add>, %65, %cst_39 [1, 2] : vector<1x128x128xf32> to vector<1xf32>
      %67 = vector.shape_cast %66 : vector<1xf32> to vector<1x1x1xf32>
      %68 = vector.extract %67[0, 0, 0] : f32 from vector<1x1x1xf32>
      %c0_40 = arith.constant 0 : index
      %c0_41 = arith.constant 0 : index
      %c0_42 = arith.constant 0 : index
      %69 = vector.load %arg7[%c0_40, %c0_41, %c0_42] : memref<3x128x128xbf16, #tpu.memory_space<vmem>>, vector<1x128x128xbf16>
      %70 = vector.shape_cast %69 : vector<1x128x128xbf16> to vector<128x128xbf16>
      %71 = arith.extf %70 : vector<128x128xbf16> to vector<128x128xf32>
      %cst_43 = arith.constant 0.000000e+00 : f32
      %72 = vector.broadcast %cst_43 : f32 to vector<128x128xf32>
      %73 = arith.maximumf %71, %72 : vector<128x128xf32>
      %74 = math.absf %71 : vector<128x128xf32>
      %cst_44 = arith.constant 0.000000e+00 : f32
      %75 = vector.broadcast %cst_44 : f32 to vector<128x128xf32>
      %76 = arith.subf %75, %74 : vector<128x128xf32>
      %77 = math.exp %76 : vector<128x128xf32>
      %cst_45 = arith.constant 1.000000e+00 : f32
      %78 = vector.broadcast %cst_45 : f32 to vector<128x128xf32>
      %79 = arith.addf %78, %77 : vector<128x128xf32>
      %80 = math.log %79 : vector<128x128xf32>
      %81 = arith.addf %73, %80 : vector<128x128xf32>
      %c0_46 = arith.constant 0 : index
      %c0_47 = arith.constant 0 : index
      %c0_48 = arith.constant 0 : index
      %82 = vector.load %arg6[%c0_46, %c0_47, %c0_48] : memref<3x128x128xbf16, #tpu.memory_space<vmem>>, vector<1x128x128xbf16>
      %83 = vector.shape_cast %82 : vector<1x128x128xbf16> to vector<128x128xbf16>
      %84 = arith.extf %83 : vector<128x128xbf16> to vector<128x128xf32>
      %85 = arith.subf %44, %84 : vector<128x128xf32>
      %cst_49 = arith.constant 1.000000e-10 : f32
      %86 = vector.broadcast %cst_49 : f32 to vector<128x128xf32>
      %87 = arith.addf %81, %86 : vector<128x128xf32>
      %88 = math.log %87 : vector<128x128xf32>
      %cst_50 = arith.constant 0.000000e+00 : f32
      %89 = vector.broadcast %cst_50 : f32 to vector<128x128xf32>
      %90 = arith.subf %89, %88 : vector<128x128xf32>
      %91 = arith.mulf %85, %85 : vector<128x128xf32>
      %cst_51 = arith.constant 2.000000e+00 : f32
      %92 = vector.broadcast %cst_51 : f32 to vector<128x128xf32>
      %93 = arith.mulf %92, %81 : vector<128x128xf32>
      %94 = arith.mulf %93, %81 : vector<128x128xf32>
      %95 = arith.divf %91, %94 : vector<128x128xf32>
      %96 = arith.subf %90, %95 : vector<128x128xf32>
      %97 = vector.shape_cast %96 : vector<128x128xf32> to vector<1x128x128xf32>
      %cst_52 = arith.constant dense<0.000000e+00> : vector<1xf32>
      %98 = vector.multi_reduction <add>, %97, %cst_52 [1, 2] : vector<1x128x128xf32> to vector<1xf32>
      %99 = vector.shape_cast %98 : vector<1xf32> to vector<1x1x1xf32>
      %100 = vector.extract %99[0, 0, 0] : f32 from vector<1x1x1xf32>
      %cst_53 = arith.constant 0.000000e+00 : f32
      %101 = arith.addf %cst_53, %100 : f32
      %102 = vector.broadcast %63 : f32 to vector<128x128xf32>
      %103 = arith.subf %81, %102 : vector<128x128xf32>
      %104 = vector.shape_cast %103 : vector<128x128xf32> to vector<1x128x128xf32>
      %cst_54 = arith.constant dense<0.000000e+00> : vector<1xf32>
      %105 = vector.multi_reduction <add>, %104, %cst_54 [1, 2] : vector<1x128x128xf32> to vector<1xf32>
      %106 = vector.shape_cast %105 : vector<1xf32> to vector<1x1x1xf32>
      %107 = vector.extract %106[0, 0, 0] : f32 from vector<1x1x1xf32>
      %cst_55 = arith.constant 0.000000e+00 : f32
      %108 = arith.addf %cst_55, %107 : f32
      %109 = arith.mulf %103, %103 : vector<128x128xf32>
      %110 = vector.shape_cast %109 : vector<128x128xf32> to vector<1x128x128xf32>
      %cst_56 = arith.constant dense<0.000000e+00> : vector<1xf32>
      %111 = vector.multi_reduction <add>, %110, %cst_56 [1, 2] : vector<1x128x128xf32> to vector<1xf32>
      %112 = vector.shape_cast %111 : vector<1xf32> to vector<1x1x1xf32>
      %113 = vector.extract %112[0, 0, 0] : f32 from vector<1x1x1xf32>
      %cst_57 = arith.constant 0.000000e+00 : f32
      %114 = arith.addf %cst_57, %113 : f32
      %c1_58 = arith.constant 1 : index
      %c0_59 = arith.constant 0 : index
      %c0_60 = arith.constant 0 : index
      %115 = vector.load %arg7[%c1_58, %c0_59, %c0_60] : memref<3x128x128xbf16, #tpu.memory_space<vmem>>, vector<1x128x128xbf16>
      %116 = vector.shape_cast %115 : vector<1x128x128xbf16> to vector<128x128xbf16>
      %117 = arith.extf %116 : vector<128x128xbf16> to vector<128x128xf32>
      %cst_61 = arith.constant 0.000000e+00 : f32
      %118 = vector.broadcast %cst_61 : f32 to vector<128x128xf32>
      %119 = arith.maximumf %117, %118 : vector<128x128xf32>
      %120 = math.absf %117 : vector<128x128xf32>
      %cst_62 = arith.constant 0.000000e+00 : f32
      %121 = vector.broadcast %cst_62 : f32 to vector<128x128xf32>
      %122 = arith.subf %121, %120 : vector<128x128xf32>
      %123 = math.exp %122 : vector<128x128xf32>
      %cst_63 = arith.constant 1.000000e+00 : f32
      %124 = vector.broadcast %cst_63 : f32 to vector<128x128xf32>
      %125 = arith.addf %124, %123 : vector<128x128xf32>
      %126 = math.log %125 : vector<128x128xf32>
      %127 = arith.addf %119, %126 : vector<128x128xf32>
      %c1_64 = arith.constant 1 : index
      %c0_65 = arith.constant 0 : index
      %c0_66 = arith.constant 0 : index
      %128 = vector.load %arg6[%c1_64, %c0_65, %c0_66] : memref<3x128x128xbf16, #tpu.memory_space<vmem>>, vector<1x128x128xbf16>
      %129 = vector.shape_cast %128 : vector<1x128x128xbf16> to vector<128x128xbf16>
      %130 = arith.extf %129 : vector<128x128xbf16> to vector<128x128xf32>
      %131 = arith.subf %44, %130 : vector<128x128xf32>
      %cst_67 = arith.constant 1.000000e-10 : f32
      %132 = vector.broadcast %cst_67 : f32 to vector<128x128xf32>
      %133 = arith.addf %127, %132 : vector<128x128xf32>
      %134 = math.log %133 : vector<128x128xf32>
      %cst_68 = arith.constant 0.000000e+00 : f32
      %135 = vector.broadcast %cst_68 : f32 to vector<128x128xf32>
      %136 = arith.subf %135, %134 : vector<128x128xf32>
      %137 = arith.mulf %131, %131 : vector<128x128xf32>
      %cst_69 = arith.constant 2.000000e+00 : f32
      %138 = vector.broadcast %cst_69 : f32 to vector<128x128xf32>
      %139 = arith.mulf %138, %127 : vector<128x128xf32>
      %140 = arith.mulf %139, %127 : vector<128x128xf32>
      %141 = arith.divf %137, %140 : vector<128x128xf32>
      %142 = arith.subf %136, %141 : vector<128x128xf32>
      %143 = vector.shape_cast %142 : vector<128x128xf32> to vector<1x128x128xf32>
      %cst_70 = arith.constant dense<0.000000e+00> : vector<1xf32>
      %144 = vector.multi_reduction <add>, %143, %cst_70 [1, 2] : vector<1x128x128xf32> to vector<1xf32>
      %145 = vector.shape_cast %144 : vector<1xf32> to vector<1x1x1xf32>
      %146 = vector.extract %145[0, 0, 0] : f32 from vector<1x1x1xf32>
      %147 = arith.addf %101, %146 : f32
      %148 = vector.broadcast %63 : f32 to vector<128x128xf32>
      %149 = arith.subf %127, %148 : vector<128x128xf32>
      %150 = vector.shape_cast %149 : vector<128x128xf32> to vector<1x128x128xf32>
      %cst_71 = arith.constant dense<0.000000e+00> : vector<1xf32>
      %151 = vector.multi_reduction <add>, %150, %cst_71 [1, 2] : vector<1x128x128xf32> to vector<1xf32>
      %152 = vector.shape_cast %151 : vector<1xf32> to vector<1x1x1xf32>
      %153 = vector.extract %152[0, 0, 0] : f32 from vector<1x1x1xf32>
      %154 = arith.addf %108, %153 : f32
      %155 = arith.mulf %149, %149 : vector<128x128xf32>
      %156 = vector.shape_cast %155 : vector<128x128xf32> to vector<1x128x128xf32>
      %cst_72 = arith.constant dense<0.000000e+00> : vector<1xf32>
      %157 = vector.multi_reduction <add>, %156, %cst_72 [1, 2] : vector<1x128x128xf32> to vector<1xf32>
      %158 = vector.shape_cast %157 : vector<1xf32> to vector<1x1x1xf32>
      %159 = vector.extract %158[0, 0, 0] : f32 from vector<1x1x1xf32>
      %160 = arith.addf %114, %159 : f32
      %c2_73 = arith.constant 2 : index
      %c0_74 = arith.constant 0 : index
      %c0_75 = arith.constant 0 : index
      %161 = vector.load %arg7[%c2_73, %c0_74, %c0_75] : memref<3x128x128xbf16, #tpu.memory_space<vmem>>, vector<1x128x128xbf16>
      %162 = vector.shape_cast %161 : vector<1x128x128xbf16> to vector<128x128xbf16>
      %163 = arith.extf %162 : vector<128x128xbf16> to vector<128x128xf32>
      %cst_76 = arith.constant 0.000000e+00 : f32
      %164 = vector.broadcast %cst_76 : f32 to vector<128x128xf32>
      %165 = arith.maximumf %163, %164 : vector<128x128xf32>
      %166 = math.absf %163 : vector<128x128xf32>
      %cst_77 = arith.constant 0.000000e+00 : f32
      %167 = vector.broadcast %cst_77 : f32 to vector<128x128xf32>
      %168 = arith.subf %167, %166 : vector<128x128xf32>
      %169 = math.exp %168 : vector<128x128xf32>
      %cst_78 = arith.constant 1.000000e+00 : f32
      %170 = vector.broadcast %cst_78 : f32 to vector<128x128xf32>
      %171 = arith.addf %170, %169 : vector<128x128xf32>
      %172 = math.log %171 : vector<128x128xf32>
      %173 = arith.addf %165, %172 : vector<128x128xf32>
      %c2_79 = arith.constant 2 : index
      %c0_80 = arith.constant 0 : index
      %c0_81 = arith.constant 0 : index
      %174 = vector.load %arg6[%c2_79, %c0_80, %c0_81] : memref<3x128x128xbf16, #tpu.memory_space<vmem>>, vector<1x128x128xbf16>
      %175 = vector.shape_cast %174 : vector<1x128x128xbf16> to vector<128x128xbf16>
      %176 = arith.extf %175 : vector<128x128xbf16> to vector<128x128xf32>
      %177 = arith.subf %44, %176 : vector<128x128xf32>
      %cst_82 = arith.constant 1.000000e-10 : f32
      %178 = vector.broadcast %cst_82 : f32 to vector<128x128xf32>
      %179 = arith.addf %173, %178 : vector<128x128xf32>
      %180 = math.log %179 : vector<128x128xf32>
      %cst_83 = arith.constant 0.000000e+00 : f32
      %181 = vector.broadcast %cst_83 : f32 to vector<128x128xf32>
      %182 = arith.subf %181, %180 : vector<128x128xf32>
      %183 = arith.mulf %177, %177 : vector<128x128xf32>
      %cst_84 = arith.constant 2.000000e+00 : f32
      %184 = vector.broadcast %cst_84 : f32 to vector<128x128xf32>
      %185 = arith.mulf %184, %173 : vector<128x128xf32>
      %186 = arith.mulf %185, %173 : vector<128x128xf32>
      %187 = arith.divf %183, %186 : vector<128x128xf32>
      %188 = arith.subf %182, %187 : vector<128x128xf32>
      %189 = vector.shape_cast %188 : vector<128x128xf32> to vector<1x128x128xf32>
      %cst_85 = arith.constant dense<0.000000e+00> : vector<1xf32>
      %190 = vector.multi_reduction <add>, %189, %cst_85 [1, 2] : vector<1x128x128xf32> to vector<1xf32>
      %191 = vector.shape_cast %190 : vector<1xf32> to vector<1x1x1xf32>
      %192 = vector.extract %191[0, 0, 0] : f32 from vector<1x1x1xf32>
      %193 = arith.addf %147, %192 : f32
      %194 = vector.broadcast %63 : f32 to vector<128x128xf32>
      %195 = arith.subf %173, %194 : vector<128x128xf32>
      %196 = vector.shape_cast %195 : vector<128x128xf32> to vector<1x128x128xf32>
      %cst_86 = arith.constant dense<0.000000e+00> : vector<1xf32>
      %197 = vector.multi_reduction <add>, %196, %cst_86 [1, 2] : vector<1x128x128xf32> to vector<1xf32>
      %198 = vector.shape_cast %197 : vector<1xf32> to vector<1x1x1xf32>
      %199 = vector.extract %198[0, 0, 0] : f32 from vector<1x1x1xf32>
      %200 = arith.addf %154, %199 : f32
      %201 = arith.mulf %195, %195 : vector<128x128xf32>
      %202 = vector.shape_cast %201 : vector<128x128xf32> to vector<1x128x128xf32>
      %cst_87 = arith.constant dense<0.000000e+00> : vector<1xf32>
      %203 = vector.multi_reduction <add>, %202, %cst_87 [1, 2] : vector<1x128x128xf32> to vector<1xf32>
      %204 = vector.shape_cast %203 : vector<1xf32> to vector<1x1x1xf32>
      %205 = vector.extract %204[0, 0, 0] : f32 from vector<1x1x1xf32>
      %206 = arith.addf %160, %205 : f32
      %207 = tpu.iota {dimensions = array<i32: 3>} : vector<1x1x1x128xi32>
      %c0_88 = arith.constant 0 : index
      %c0_89 = arith.constant 0 : index
      %c0_90 = arith.constant 0 : index
      %c0_91 = arith.constant 0 : index
      %208 = vector.load %arg13[%c0_88, %c0_89, %c0_90, %c0_91] : memref<1x1x1x128xf32, #tpu.memory_space<vmem>>, vector<1x1x1x128xf32>
      %c0_i32_92 = arith.constant 0 : i32
      %209 = vector.broadcast %c0_i32_92 : i32 to vector<1x1x1x128xi32>
      %210 = arith.cmpi eq, %207, %209 : vector<1x1x1x128xi32>
      %cst_93 = arith.constant 0.000000e+00 : f32
      %211 = vector.broadcast %193 : f32 to vector<1x1x1x128xf32>
      %212 = vector.broadcast %cst_93 : f32 to vector<1x1x1x128xf32>
      %213 = arith.select %210, %211, %212 : vector<1x1x1x128xi1>, vector<1x1x1x128xf32>
      %c2_i32_94 = arith.constant 2 : i32
      %214 = vector.broadcast %c2_i32_94 : i32 to vector<1x1x1x128xi32>
      %215 = arith.cmpi eq, %207, %214 : vector<1x1x1x128xi32>
      %cst_95 = arith.constant 0.000000e+00 : f32
      %216 = vector.broadcast %68 : f32 to vector<1x1x1x128xf32>
      %217 = vector.broadcast %cst_95 : f32 to vector<1x1x1x128xf32>
      %218 = arith.select %215, %216, %217 : vector<1x1x1x128xi1>, vector<1x1x1x128xf32>
      %219 = arith.addf %213, %218 : vector<1x1x1x128xf32>
      %c4_i32 = arith.constant 4 : i32
      %220 = vector.broadcast %c4_i32 : i32 to vector<1x1x1x128xi32>
      %221 = arith.cmpi eq, %207, %220 : vector<1x1x1x128xi32>
      %cst_96 = arith.constant 0.000000e+00 : f32
      %222 = vector.broadcast %200 : f32 to vector<1x1x1x128xf32>
      %223 = vector.broadcast %cst_96 : f32 to vector<1x1x1x128xf32>
      %224 = arith.select %221, %222, %223 : vector<1x1x1x128xi1>, vector<1x1x1x128xf32>
      %225 = arith.addf %219, %224 : vector<1x1x1x128xf32>
      %c5_i32 = arith.constant 5 : i32
      %226 = vector.broadcast %c5_i32 : i32 to vector<1x1x1x128xi32>
      %227 = arith.cmpi eq, %207, %226 : vector<1x1x1x128xi32>
      %cst_97 = arith.constant 0.000000e+00 : f32
      %228 = vector.broadcast %206 : f32 to vector<1x1x1x128xf32>
      %229 = vector.broadcast %cst_97 : f32 to vector<1x1x1x128xf32>
      %230 = arith.select %227, %228, %229 : vector<1x1x1x128xi1>, vector<1x1x1x128xf32>
      %231 = arith.addf %225, %230 : vector<1x1x1x128xf32>
      %232 = arith.addf %208, %231 : vector<1x1x1x128xf32>
      %c0_98 = arith.constant 0 : index
      %c0_99 = arith.constant 0 : index
      %c0_100 = arith.constant 0 : index
      %c0_101 = arith.constant 0 : index
      %233 = vector.load %arg13[%c0_98, %c0_99, %c0_100, %c0_101] : memref<1x1x1x128xf32, #tpu.memory_space<vmem>>, vector<1x1x1x128xf32>
      tpu.vector_store %arg13[%c0_98, %c0_99, %c0_100, %c0_101], %232 {strides = array<i32>} : memref<1x1x1x128xf32, #tpu.memory_space<vmem>>, vector<1x1x1x128xf32>,
    } else {
    }
    %c1_i32_33 = arith.constant 1 : i32
    %55 = arith.cmpi eq, %arg2, %c1_i32_33 : i32
    %56 = arith.extui %55 : i1 to i32
    %c0_i32_34 = arith.constant 0 : i32
    %57 = arith.cmpi ne, %56, %c0_i32_34 : i32
    scf.if %57 {
      %c0_38 = arith.constant 0 : index
      %c0_39 = arith.constant 0 : index
      %63 = vector.load %arg9[%c0_38, %c0_39] : memref<3x128xf32, #tpu.memory_space<vmem>>, vector<3x128xf32>
      %c0_40 = arith.constant 0 : index
      %c0_41 = arith.constant 0 : index
      %64 = vector.load %arg10[%c0_40, %c0_41] : memref<3x128xf32, #tpu.memory_space<vmem>>, vector<3x128xf32>
      %65 = tpu.iota {dimensions = array<i32: 0>} : vector<3x128xi32>
      %66 = vector.broadcast %0 : i32 to vector<3x128xi32>
      %67 = arith.cmpi eq, %65, %66 : vector<3x128xi32>
      %cst_42 = arith.constant 0.000000e+00 : f32
      %68 = vector.broadcast %cst_42 : f32 to vector<3x128xf32>
      %69 = arith.select %67, %63, %68 : vector<3x128xi1>, vector<3x128xf32>
      %cst_43 = arith.constant dense<0.000000e+00> : vector<128xf32>
      %70 = vector.multi_reduction <add>, %69, %cst_43 [0] : vector<3x128xf32> to vector<128xf32>
      %71 = vector.shape_cast %70 : vector<128xf32> to vector<1x128xf32>
      %cst_44 = arith.constant 0.000000e+00 : f32
      %72 = vector.broadcast %cst_44 : f32 to vector<3x128xf32>
      %73 = arith.select %67, %64, %72 : vector<3x128xi1>, vector<3x128xf32>
      %cst_45 = arith.constant dense<0.000000e+00> : vector<128xf32>
      %74 = vector.multi_reduction <add>, %73, %cst_45 [0] : vector<3x128xf32> to vector<128xf32>
      %75 = vector.shape_cast %74 : vector<128xf32> to vector<1x128xf32>
      %cst_46 = arith.constant 0.000000e+00 : f32
      %76 = vector.broadcast %cst_46 : f32 to vector<1x128xf32>
      %77 = arith.maximumf %75, %76 : vector<1x128xf32>
      %78 = math.absf %75 : vector<1x128xf32>
      %cst_47 = arith.constant 0.000000e+00 : f32
      %79 = vector.broadcast %cst_47 : f32 to vector<1x128xf32>
      %80 = arith.subf %79, %78 : vector<1x128xf32>
      %81 = math.exp %80 : vector<1x128xf32>
      %cst_48 = arith.constant 1.000000e+00 : f32
      %82 = vector.broadcast %cst_48 : f32 to vector<1x128xf32>
      %83 = arith.addf %82, %81 : vector<1x128xf32>
      %84 = math.log %83 : vector<1x128xf32>
      %85 = arith.addf %77, %84 : vector<1x128xf32>
      %c0_49 = arith.constant 0 : index
      %c0_50 = arith.constant 0 : index
      %c0_51 = arith.constant 0 : index
      %86 = vector.load %arg11[%c0_49, %c0_50, %c0_51] : memref<1x1x128xf32, #tpu.memory_space<vmem>>, vector<1x1x128xf32>
      %87 = vector.shape_cast %86 : vector<1x1x128xf32> to vector<1x128xf32>
      %88 = arith.mulf %85, %87 : vector<1x128xf32>
      %89 = arith.addf %71, %88 : vector<1x128xf32>
      %c0_52 = arith.constant 0 : index
      %c0_53 = arith.constant 0 : index
      %90 = vector.load %arg12[%c0_52, %c0_53] : memref<8x128xf32, #tpu.memory_space<vmem>>, vector<8x128xf32>
      %91 = vector.broadcast %89 : vector<1x128xf32> to vector<8x128xf32>
      %92 = arith.addf %90, %91 : vector<8x128xf32>
      %c0_54 = arith.constant 0 : index
      %c0_55 = arith.constant 0 : index
      %93 = vector.load %arg12[%c0_54, %c0_55] : memref<8x128xf32, #tpu.memory_space<vmem>>, vector<8x128xf32>
      tpu.vector_store %arg12[%c0_54, %c0_55], %92 {strides = array<i32>} : memref<8x128xf32, #tpu.memory_space<vmem>>, vector<8x128xf32>,
    } else {
    }
    %c1_i32_35 = arith.constant 1 : i32
    %58 = arith.cmpi eq, %arg2, %c1_i32_35 : i32
    %c0_i32_36 = arith.constant 0 : i32
    %59 = arith.cmpi eq, %arg0, %c0_i32_36 : i32
    %60 = arith.andi %58, %59 : i1
    %61 = arith.extui %60 : i1 to i32
    %c0_i32_37 = arith.constant 0 : i32
    %62 = arith.cmpi ne, %61, %c0_i32_37 : i32
    scf.if %62 {
      %c0_38 = arith.constant 0 : index
      %c0_39 = arith.constant 0 : index
      %63 = vector.load %arg9[%c0_38, %c0_39] : memref<3x128xf32, #tpu.memory_space<vmem>>, vector<3x128xf32>
      %c0_40 = arith.constant 0 : index
      %c0_41 = arith.constant 0 : index
      %64 = vector.load %arg10[%c0_40, %c0_41] : memref<3x128xf32, #tpu.memory_space<vmem>>, vector<3x128xf32>
      %65 = tpu.iota {dimensions = array<i32: 0>} : vector<3x128xi32>
      %66 = vector.broadcast %0 : i32 to vector<3x128xi32>
      %67 = arith.cmpi eq, %65, %66 : vector<3x128xi32>
      %cst_42 = arith.constant 0.000000e+00 : f32
      %68 = vector.broadcast %cst_42 : f32 to vector<3x128xf32>
      %69 = arith.select %67, %63, %68 : vector<3x128xi1>, vector<3x128xf32>
      %cst_43 = arith.constant dense<0.000000e+00> : vector<128xf32>
      %70 = vector.multi_reduction <add>, %69, %cst_43 [0] : vector<3x128xf32> to vector<128xf32>
      %71 = vector.shape_cast %70 : vector<128xf32> to vector<1x128xf32>
      %cst_44 = arith.constant 0.000000e+00 : f32
      %72 = vector.broadcast %cst_44 : f32 to vector<3x128xf32>
      %73 = arith.select %67, %64, %72 : vector<3x128xi1>, vector<3x128xf32>
      %cst_45 = arith.constant dense<0.000000e+00> : vector<128xf32>
      %74 = vector.multi_reduction <add>, %73, %cst_45 [0] : vector<3x128xf32> to vector<128xf32>
      %75 = vector.shape_cast %74 : vector<128xf32> to vector<1x128xf32>
      %cst_46 = arith.constant 0.000000e+00 : f32
      %76 = vector.broadcast %cst_46 : f32 to vector<1x128xf32>
      %77 = arith.maximumf %75, %76 : vector<1x128xf32>
      %78 = math.absf %75 : vector<1x128xf32>
      %cst_47 = arith.constant 0.000000e+00 : f32
      %79 = vector.broadcast %cst_47 : f32 to vector<1x128xf32>
      %80 = arith.subf %79, %78 : vector<1x128xf32>
      %81 = math.exp %80 : vector<1x128xf32>
      %cst_48 = arith.constant 1.000000e+00 : f32
      %82 = vector.broadcast %cst_48 : f32 to vector<1x128xf32>
      %83 = arith.addf %82, %81 : vector<1x128xf32>
      %84 = math.log %83 : vector<1x128xf32>
      %85 = arith.addf %77, %84 : vector<1x128xf32>
      %c0_49 = arith.constant 0 : index
      %c0_50 = arith.constant 0 : index
      %c0_51 = arith.constant 0 : index
      %86 = vector.load %arg11[%c0_49, %c0_50, %c0_51] : memref<1x1x128xf32, #tpu.memory_space<vmem>>, vector<1x1x128xf32>
      %87 = vector.shape_cast %86 : vector<1x1x128xf32> to vector<1x128xf32>
      %88 = arith.mulf %85, %87 : vector<1x128xf32>
      %89 = arith.addf %71, %88 : vector<1x128xf32>
      %cst_52 = arith.constant 0.000000e+00 : f32
      %90 = vector.broadcast %cst_52 : f32 to vector<3x128xf32>
      %91 = arith.maximumf %64, %90 : vector<3x128xf32>
      %92 = math.absf %64 : vector<3x128xf32>
      %cst_53 = arith.constant 0.000000e+00 : f32
      %93 = vector.broadcast %cst_53 : f32 to vector<3x128xf32>
      %94 = arith.subf %93, %92 : vector<3x128xf32>
      %95 = math.exp %94 : vector<3x128xf32>
      %cst_54 = arith.constant 1.000000e+00 : f32
      %96 = vector.broadcast %cst_54 : f32 to vector<3x128xf32>
      %97 = arith.addf %96, %95 : vector<3x128xf32>
      %98 = math.log %97 : vector<3x128xf32>
      %99 = arith.addf %91, %98 : vector<3x128xf32>
      %100 = vector.broadcast %89 : vector<1x128xf32> to vector<3x128xf32>
      %101 = arith.subf %100, %63 : vector<3x128xf32>
      %cst_55 = arith.constant 1.000000e-10 : f32
      %102 = vector.broadcast %cst_55 : f32 to vector<3x128xf32>
      %103 = arith.addf %99, %102 : vector<3x128xf32>
      %104 = math.log %103 : vector<3x128xf32>
      %cst_56 = arith.constant 0.000000e+00 : f32
      %105 = vector.broadcast %cst_56 : f32 to vector<3x128xf32>
      %106 = arith.subf %105, %104 : vector<3x128xf32>
      %107 = arith.mulf %101, %101 : vector<3x128xf32>
      %cst_57 = arith.constant 2.000000e+00 : f32
      %108 = vector.broadcast %cst_57 : f32 to vector<3x128xf32>
      %109 = arith.mulf %108, %99 : vector<3x128xf32>
      %110 = arith.mulf %109, %99 : vector<3x128xf32>
      %111 = arith.divf %107, %110 : vector<3x128xf32>
      %112 = arith.subf %106, %111 : vector<3x128xf32>
      %113 = vector.shape_cast %112 : vector<3x128xf32> to vector<1x3x128xf32>
      %cst_58 = arith.constant dense<0.000000e+00> : vector<1xf32>
      %114 = vector.multi_reduction <add>, %113, %cst_58 [1, 2] : vector<1x3x128xf32> to vector<1xf32>
      %115 = vector.shape_cast %114 : vector<1xf32> to vector<1x1x1xf32>
      %116 = vector.extract %115[0, 0, 0] : f32 from vector<1x1x1xf32>
      %117 = arith.mulf %89, %89 : vector<1x128xf32>
      %118 = vector.shape_cast %117 : vector<1x128xf32> to vector<1x1x128xf32>
      %cst_59 = arith.constant dense<0.000000e+00> : vector<1xf32>
      %119 = vector.multi_reduction <add>, %118, %cst_59 [1, 2] : vector<1x1x128xf32> to vector<1xf32>
      %120 = vector.shape_cast %119 : vector<1xf32> to vector<1x1x1xf32>
      %121 = vector.extract %120[0, 0, 0] : f32 from vector<1x1x1xf32>
      %122 = tpu.iota {dimensions = array<i32: 3>} : vector<1x1x1x128xi32>
      %c0_60 = arith.constant 0 : index
      %c0_61 = arith.constant 0 : index
      %c0_62 = arith.constant 0 : index
      %c0_63 = arith.constant 0 : index
      %123 = vector.load %arg13[%c0_60, %c0_61, %c0_62, %c0_63] : memref<1x1x1x128xf32, #tpu.memory_space<vmem>>, vector<1x1x1x128xf32>
      %c1_i32_64 = arith.constant 1 : i32
      %124 = vector.broadcast %c1_i32_64 : i32 to vector<1x1x1x128xi32>
      %125 = arith.cmpi eq, %122, %124 : vector<1x1x1x128xi32>
      %cst_65 = arith.constant 0.000000e+00 : f32
      %126 = vector.broadcast %116 : f32 to vector<1x1x1x128xf32>
      %127 = vector.broadcast %cst_65 : f32 to vector<1x1x1x128xf32>
      %128 = arith.select %125, %126, %127 : vector<1x1x1x128xi1>, vector<1x1x1x128xf32>
      %c3_i32 = arith.constant 3 : i32
      %129 = vector.broadcast %c3_i32 : i32 to vector<1x1x1x128xi32>
      %130 = arith.cmpi eq, %122, %129 : vector<1x1x1x128xi32>
      %cst_66 = arith.constant 0.000000e+00 : f32
      %131 = vector.broadcast %121 : f32 to vector<1x1x1x128xf32>
      %132 = vector.broadcast %cst_66 : f32 to vector<1x1x1x128xf32>
      %133 = arith.select %130, %131, %132 : vector<1x1x1x128xi1>, vector<1x1x1x128xf32>
      %134 = arith.addf %128, %133 : vector<1x1x1x128xf32>
      %135 = arith.addf %123, %134 : vector<1x1x1x128xf32>
      %c0_67 = arith.constant 0 : index
      %c0_68 = arith.constant 0 : index
      %c0_69 = arith.constant 0 : index
      %c0_70 = arith.constant 0 : index
      %136 = vector.load %arg13[%c0_67, %c0_68, %c0_69, %c0_70] : memref<1x1x1x128xf32, #tpu.memory_space<vmem>>, vector<1x1x1x128xf32>
      tpu.vector_store %arg13[%c0_67, %c0_68, %c0_69, %c0_70], %135 {strides = array<i32>} : memref<1x1x1x128xf32, #tpu.memory_space<vmem>>, vector<1x1x1x128xf32>,
    } else {
    }
    return
  }
  func.func @transform_0(%arg0: i32, %arg1: i32, %arg2: i32, %arg3: memref<1xi32, #tpu.memory_space<smem>>, %arg4: memref<1xf32, #tpu.memory_space<smem>>) -> (i32, i32) {
    %c0_i32 = arith.constant 0 : i32
    return %arg0, %arg2 : i32, i32
  }
  func.func @transform_1(%arg0: i32, %arg1: i32, %arg2: i32, %arg3: memref<1xi32, #tpu.memory_space<smem>>, %arg4: memref<1xf32, #tpu.memory_space<smem>>) -> (i32, i32, i32) {
    %c0_i32 = arith.constant 0 : i32
    %c0_i32_0 = arith.constant 0 : i32
    return %c0_i32, %arg2, %arg1 : i32, i32, i32
  }
  func.func @transform_2(%arg0: i32, %arg1: i32, %arg2: i32, %arg3: memref<1xi32, #tpu.memory_space<smem>>, %arg4: memref<1xf32, #tpu.memory_space<smem>>) -> (i32, i32, i32) {
    %c0_i32 = arith.constant 0 : i32
    %c0_i32_0 = arith.constant 0 : i32
    return %c0_i32, %arg2, %arg1 : i32, i32, i32
  }
  func.func @transform_3(%arg0: i32, %arg1: i32, %arg2: i32, %arg3: memref<1xi32, #tpu.memory_space<smem>>, %arg4: memref<1xf32, #tpu.memory_space<smem>>) -> (i32, i32, i32) {
    %c0 = arith.constant 0 : index
    %0 = memref.load %arg3[%c0] : memref<1xi32, #tpu.memory_space<smem>>
    %c0_i32 = arith.constant 0 : i32
    return %0, %arg2, %arg1 : i32, i32, i32
  }
  func.func @transform_4(%arg0: i32, %arg1: i32, %arg2: i32, %arg3: memref<1xi32, #tpu.memory_space<smem>>, %arg4: memref<1xf32, #tpu.memory_space<smem>>) -> (i32, i32) {
    %c0_i32 = arith.constant 0 : i32
    %c0_i32_0 = arith.constant 0 : i32
    return %c0_i32, %arg1 : i32, i32
  }
  func.func @transform_5(%arg0: i32, %arg1: i32, %arg2: i32, %arg3: memref<1xi32, #tpu.memory_space<smem>>, %arg4: memref<1xf32, #tpu.memory_space<smem>>) -> (i32, i32) {
    %c0_i32 = arith.constant 0 : i32
    %c0_i32_0 = arith.constant 0 : i32
    return %c0_i32, %arg1 : i32, i32
  }
  func.func @transform_6(%arg0: i32, %arg1: i32, %arg2: i32, %arg3: memref<1xi32, #tpu.memory_space<smem>>, %arg4: memref<1xf32, #tpu.memory_space<smem>>) -> (i32, i32, i32) {
    %c0 = arith.constant 0 : index
    %0 = memref.load %arg3[%c0] : memref<1xi32, #tpu.memory_space<smem>>
    %c0_i32 = arith.constant 0 : i32
    %c0_i32_0 = arith.constant 0 : i32
    return %0, %c0_i32, %arg1 : i32, i32, i32
  }
  func.func @transform_7(%arg0: i32, %arg1: i32, %arg2: i32, %arg3: memref<1xi32, #tpu.memory_space<smem>>, %arg4: memref<1xf32, #tpu.memory_space<smem>>) -> (i32, i32) {
    %c0_i32 = arith.constant 0 : i32
    return %arg0, %arg1 : i32, i32
  }
  func.func @transform_8(%arg0: i32, %arg1: i32, %arg2: i32, %arg3: memref<1xi32, #tpu.memory_space<smem>>, %arg4: memref<1xf32, #tpu.memory_space<smem>>) -> (i32, i32, i32, i32) {
    %c0_i32 = arith.constant 0 : i32
    %c0_i32_0 = arith.constant 0 : i32
    %c0_i32_1 = arith.constant 0 : i32
    return %arg0, %arg1, %c0_i32, %c0_i32_0 : i32, i32, i32, i32
  }
}

</mosaic_0001>

<llo_original>
// kernel: tpu_custom_call.1
$region0: #{tpu_custom_call.1}
  #allocation0 [shape = 'u32[]', space=smem, size = 0x4, offset = 0x4, fixed_abs, tag = 'smem constant byte address 0x4 - core index']
  #allocation1 [shape = 'u32[144,128]{1,0:T(1,128)}', space=vmem, size = 0x12000, scoped, tag = 'internal scratch']
  #allocation2 [shape = 's32[1]{0}', space=sflag, size = 0x4, scoped, tag = 'scoped memory for tpu_custom_call.1']
  #allocation3 [shape = 's32[1]{0:T(128)S(6)}', space=smem, size = 0x200, scoped, tag = 'prefetched SMEM operand 0']
  #allocation4 [shape = 'f32[1]{0:T(128)S(6)}', space=smem, size = 0x200, scoped, tag = 'prefetched SMEM operand 1']
  #allocation17 [shape = 's32[]', space=sflag, size = 0x4, offset = 0, fixed_abs, tag = 'sflag constant byte address 0x0 - dummy sync flag']
  #allocation19 [shape = 's32[]', space=sflag, size = 0x4, offset = 0, fixed_abs, tag = 'sflag constant byte address 0x0 - dummy sync flag']
  %s0 = inlined_call_operand.<no memory space> [shape: s32[1], index: 0, kind: input, shape index: {}]
  %s1 = inlined_call_operand.<no memory space> [shape: f32[1], index: 1, kind: input, shape index: {}]
  %s2 = inlined_call_operand.hbm [shape: f32[16,256], index: 2, kind: input, shape index: {}]
  %s3 = inlined_call_operand.hbm [shape: bf16[3,256,256], index: 3, kind: input, shape index: {}]
  %s4 = inlined_call_operand.hbm [shape: bf16[3,256,256], index: 4, kind: input, shape index: {}]
  %s5 = inlined_call_operand.hbm [shape: bf16[3,256,256], index: 5, kind: input, shape index: {}]
  %s6 = inlined_call_operand.vmem [shape: f32[3,256], index: 6, kind: input, shape index: {}]
  %s7 = inlined_call_operand.hbm [shape: f32[3,256], index: 7, kind: input, shape index: {}]
  %s8 = inlined_call_operand.vmem [shape: f32[3,1,256], index: 8, kind: input, shape index: {}]
  %s9 = inlined_call_operand.hbm [shape: f32[16,256], index: 9, kind: output, shape index: {0}]
  %s10 = inlined_call_operand.hbm [shape: f32[2,2,1,128], index: 10, kind: output, shape index: {1}]
  %11 = xla_tuple %s9, %s10
  %s12 = sld [smem:[#allocation0]]
  $region105: #{tpu_custom_call.1} parent=0
    _
  %s14 = ssub.s32 1, %s12
  %s15 = scalar_select 0, %s14, %s12
  %16 = sst [smem:[#allocation3]] %s0
  %17 = sst [smem:[#allocation4]] %s1
  $region1: #{tpu_custom_call.1} parent=0
    #allocation5 [shape = 'u8[8192]{0}', space=vmem, size = 0x2000, scoped, tag = 'input window, operand 2']
    #allocation6 [shape = 's32[2]{0}', space=sflag, size = 0x8, scoped, tag = 'scoped memory for tpu_custom_call.1']
    #allocation7 [shape = 's32[2]{0}', space=sflag, size = 0x8, scoped, tag = 'scoped memory for tpu_custom_call.1']
    #allocation8 [shape = 'u8[196608]{0}', space=vmem, size = 0x30000, scoped, tag = 'input window, operand 3']
    #allocation9 [shape = 's32[2]{0}', space=sflag, size = 0x8, scoped, tag = 'scoped memory for tpu_custom_call.1']
    #allocation10 [shape = 'u8[196608]{0}', space=vmem, size = 0x30000, scoped, tag = 'input window, operand 4']
    #allocation11 [shape = 'u8[65536]{0}', space=vmem, size = 0x10000, scoped, tag = 'input window, operand 5']
    #allocation12 [shape = 's32[2]{0}', space=sflag, size = 0x8, scoped, tag = 'scoped memory for tpu_custom_call.1']
    #allocation13 [shape = 'u8[4096]{0}', space=vmem, size = 0x1000, scoped, tag = 'input window, operand 7']
    #allocation14 [shape = 'u8[8192]{0}', space=vmem, size = 0x2000, scoped, tag = 'output window, operand 0']
    #allocation15 [shape = 'u8[1024]{0}', space=vmem, size = 0x400, scoped, tag = 'output window, operand 1']
    #allocation16 [shape = 's32[2]{0}', space=sflag, size = 0x8, scoped, tag = 'scoped memory for tpu_custom_call.1']
    %18 = vsyncpa [#allocation6], 0
    %s19 = scalar_lea.sflag [#allocation6], 1
    %20 = vsyncpa %s19, 0
    %21 = vsyncpa [#allocation9], 0
    %s22 = scalar_lea.sflag [#allocation9], 1
    %23 = vsyncpa %s22, 0
    %24 = vsyncpa [#allocation12], 0
    %s25 = scalar_lea.sflag [#allocation12], 1
    %26 = vsyncpa %s25, 0
    %27 = vsyncpa [#allocation7], 0
    %s28 = scalar_lea.sflag [#allocation7], 1
    %29 = vsyncpa %s28, 0
    %30 = vsyncpa [#allocation16], 0
    %s31 = scalar_lea.sflag [#allocation16], 1
    %32 = vsyncpa %s31, 0
    loop: start=0, step=1, limit=10
    $region2: #{tpu_custom_call.1} parent=1 // loop_pre_header
      _
    $region3: #{tpu_custom_call.1} parent=1 // loop_header
      %s34 = sphi 0, %s38
      %p35 = scmp.ge.s32.totalorder %s34, 10
      %s41 = sphi 0, %s60
      %s42 = sphi 0, %s56
      %s43 = sphi 0, %s52
      %s44 = sphi 0, %s41
      %s45 = sphi 0, %s42
      %s46 = sphi 0, %s43
      %s47 = sphi 0, %s44
      %s48 = sphi 0, %s45
      %s49 = sphi 0, %s46
      %s65 = sphi 0, %s67
      %s68 = sphi 0, %s65
      %s69 = sphi 0, %s68
      %s85 = sphi 0, %s69
      %s93 = sphi 0, %s95
      %s96 = sphi 0, %s93
      %s97 = sphi 0, %s96
      %s113 = sphi 0, %s97
      %s121 = sphi 0, %s123
      %s124 = sphi 0, %s121
      %s125 = sphi 0, %s124
      %s141 = sphi 0, %s125
      %s153 = sphi 0, %s155
      %s156 = sphi 0, %s153
      %s157 = sphi 0, %s156
      %s173 = sphi 0, %s157
      %s179 = sphi 0, %s181
      %s182 = sphi 0, %s179
      %s183 = sphi 0, %s182
      %s199 = sphi 0, %s183
      %s205 = sphi 0, %s207
      %s208 = sphi 0, %s205
      %s209 = sphi 0, %s208
      %s225 = sphi 0, %s209
      %s235 = sphi 0, %s237
      %s238 = sphi 0, %s235
      %s239 = sphi 0, %s238
      %s255 = sphi 0, %s239
      %s263 = sphi 0, %s265
      %s266 = sphi 0, %s263
      %s267 = sphi 0, %s266
      %s283 = sphi 0, %s267
      %s291 = sphi 0, %s293
      %s294 = sphi 0, %s291
      %s295 = sphi 0, %s294
      %s311 = sphi 0, %s295
    $region4: #{tpu_custom_call.1} parent=1 // loop_header_branch
      %37 = sbr.rel (%p35) target = $region8
    $region5: #{tpu_custom_call.1} parent=1 // loop_body
      %s39 = ssub.s32 %s34, 1
      %s40 = ssub.s32 %s34, 2
      %s50 = sadd.s32 1, %s43
      %p51 = scmp.ge.s32.totalorder %s50, 2
      %s52 = scalar_select %p51, 0, %s50
      %s53 = sadd.s32 1, %s42
      %s54 = scalar_select %p51, %s53, %s42
      %p55 = scmp.ge.s32.totalorder %s54, 2
      %s56 = scalar_select %p55, 0, %s54
      %s57 = sadd.s32 1, %s41
      %s58 = scalar_select %p55, %s57, %s41
      %p59 = scmp.ge.s32.totalorder %s58, 2
      %s60 = scalar_select %p59, 0, %s58
      %s61 = ssub.s32 %s41, %s60
      %s62 = ssub.s32 %s43, %s52
      %s63 = sor.u32 %s61, %s62
      %p64 = scmp.eq.s32.totalorder %s63, 0
      %s66 = sadd.s32 %s65, 1
      %s67 = scalar_select %p64, %s65, %s66
      %p70 = pneg %p64
      %p71 = scmp.eq.s32.totalorder %s34, 7
      %p72 = por %p70, %p71
      %p73 = scmp.ne.s32.totalorder %s65, %s68
      %p74 = scmp.eq.s32.totalorder %s34, 0
      %p75 = por %p73, %p74
      %p76 = scmp.ne.s32.totalorder %s65, %s68
      %p77 = scmp.eq.s32.totalorder %s39, 7
      %p78 = por %p76, %p77
      %p79 = scmp.ne.s32.totalorder %s68, %s69
      %p80 = scmp.eq.s32.totalorder %s39, 0
      %p81 = por %p79, %p80
      %p82 = scmp.ne.s32.totalorder %s68, %s69
      %p83 = scmp.eq.s32.totalorder %s40, 7
      %p84 = por %p82, %p83
      %p86 = scmp.ne.s32.totalorder %s69, %s85
      %p87 = scmp.eq.s32.totalorder %s40, 0
      %p88 = por %p86, %p87
      %s89 = ssub.s32 %s43, %s52
      %s90 = ssub.s32 %s42, %s56
      %s91 = sor.u32 %s89, %s90
      %p92 = scmp.eq.s32.totalorder %s91, 0
      %s94 = sadd.s32 %s93, 1
      %s95 = scalar_select %p92, %s93, %s94
      %p98 = pneg %p92
      %p99 = scmp.eq.s32.totalorder %s34, 7
      %p100 = por %p98, %p99
      %p101 = scmp.ne.s32.totalorder %s93, %s96
      %p102 = scmp.eq.s32.totalorder %s34, 0
      %p103 = por %p101, %p102
      %p104 = scmp.ne.s32.totalorder %s93, %s96
      %p105 = scmp.eq.s32.totalorder %s39, 7
      %p106 = por %p104, %p105
      %p107 = scmp.ne.s32.totalorder %s96, %s97
      %p108 = scmp.eq.s32.totalorder %s39, 0
      %p109 = por %p107, %p108
      %p110 = scmp.ne.s32.totalorder %s96, %s97
      %p111 = scmp.eq.s32.totalorder %s40, 7
      %p112 = por %p110, %p111
      %p114 = scmp.ne.s32.totalorder %s97, %s113
      %p115 = scmp.eq.s32.totalorder %s40, 0
      %p116 = por %p114, %p115
      %s117 = ssub.s32 %s43, %s52
      %s118 = ssub.s32 %s42, %s56
      %s119 = sor.u32 %s117, %s118
      %p120 = scmp.eq.s32.totalorder %s119, 0
      %s122 = sadd.s32 %s121, 1
      %s123 = scalar_select %p120, %s121, %s122
      %p126 = pneg %p120
      %p127 = scmp.eq.s32.totalorder %s34, 7
      %p128 = por %p126, %p127
      %p129 = scmp.ne.s32.totalorder %s121, %s124
      %p130 = scmp.eq.s32.totalorder %s34, 0
      %p131 = por %p129, %p130
      %p132 = scmp.ne.s32.totalorder %s121, %s124
      %p133 = scmp.eq.s32.totalorder %s39, 7
      %p134 = por %p132, %p133
      %p135 = scmp.ne.s32.totalorder %s124, %s125
      %p136 = scmp.eq.s32.totalorder %s39, 0
      %p137 = por %p135, %p136
      %p138 = scmp.ne.s32.totalorder %s124, %s125
      %p139 = scmp.eq.s32.totalorder %s40, 7
      %p140 = por %p138, %p139
      %p142 = scmp.ne.s32.totalorder %s125, %s141
      %p143 = scmp.eq.s32.totalorder %s40, 0
      %p144 = por %p142, %p143
      %s145 = sld [smem:[#allocation3]]
      %s146 = sld [smem:[#allocation3]]
      %s147 = ssub.s32 %s145, %s146
      %s148 = ssub.s32 %s43, %s52
      %s149 = sor.u32 %s147, %s148
      %s150 = ssub.s32 %s42, %s56
      %s151 = sor.u32 %s149, %s150
      %p152 = scmp.eq.s32.totalorder %s151, 0
      %s154 = sadd.s32 %s153, 1
      %s155 = scalar_select %p152, %s153, %s154
      %p158 = pneg %p152
      %p159 = scmp.eq.s32.totalorder %s34, 7
      %p160 = por %p158, %p159
      %p161 = scmp.ne.s32.totalorder %s153, %s156
      %p162 = scmp.eq.s32.totalorder %s34, 0
      %p163 = por %p161, %p162
      %p164 = scmp.ne.s32.totalorder %s153, %s156
      %p165 = scmp.eq.s32.totalorder %s39, 7
      %p166 = por %p164, %p165
      %p167 = scmp.ne.s32.totalorder %s156, %s157
      %p168 = scmp.eq.s32.totalorder %s39, 0
      %p169 = por %p167, %p168
      %p170 = scmp.ne.s32.totalorder %s156, %s157
      %p171 = scmp.eq.s32.totalorder %s40, 7
      %p172 = por %p170, %p171
      %p174 = scmp.ne.s32.totalorder %s157, %s173
      %p175 = scmp.eq.s32.totalorder %s40, 0
      %p176 = por %p174, %p175
      %s177 = ssub.s32 %s42, %s56
      %p178 = scmp.eq.s32.totalorder %s177, 0
      %s180 = sadd.s32 %s179, 1
      %s181 = scalar_select %p178, %s179, %s180
      %p184 = pneg %p178
      %p185 = scmp.eq.s32.totalorder %s34, 7
      %p186 = por %p184, %p185
      %p187 = scmp.ne.s32.totalorder %s179, %s182
      %p188 = scmp.eq.s32.totalorder %s34, 0
      %p189 = por %p187, %p188
      %p190 = scmp.ne.s32.totalorder %s179, %s182
      %p191 = scmp.eq.s32.totalorder %s39, 7
      %p192 = por %p190, %p191
      %p193 = scmp.ne.s32.totalorder %s182, %s183
      %p194 = scmp.eq.s32.totalorder %s39, 0
      %p195 = por %p193, %p194
      %p196 = scmp.ne.s32.totalorder %s182, %s183
      %p197 = scmp.eq.s32.totalorder %s40, 7
      %p198 = por %p196, %p197
      %p200 = scmp.ne.s32.totalorder %s183, %s199
      %p201 = scmp.eq.s32.totalorder %s40, 0
      %p202 = por %p200, %p201
      %s203 = ssub.s32 %s42, %s56
      %p204 = scmp.eq.s32.totalorder %s203, 0
      %s206 = sadd.s32 %s205, 1
      %s207 = scalar_select %p204, %s205, %s206
      %p210 = pneg %p204
      %p211 = scmp.eq.s32.totalorder %s34, 7
      %p212 = por %p210, %p211
      %p213 = scmp.ne.s32.totalorder %s205, %s208
      %p214 = scmp.eq.s32.totalorder %s34, 0
      %p215 = por %p213, %p214
      %p216 = scmp.ne.s32.totalorder %s205, %s208
      %p217 = scmp.eq.s32.totalorder %s39, 7
      %p218 = por %p216, %p217
      %p219 = scmp.ne.s32.totalorder %s208, %s209
      %p220 = scmp.eq.s32.totalorder %s39, 0
      %p221 = por %p219, %p220
      %p222 = scmp.ne.s32.totalorder %s208, %s209
      %p223 = scmp.eq.s32.totalorder %s40, 7
      %p224 = por %p222, %p223
      %p226 = scmp.ne.s32.totalorder %s209, %s225
      %p227 = scmp.eq.s32.totalorder %s40, 0
      %p228 = por %p226, %p227
      %s229 = sld [smem:[#allocation3]]
      %s230 = sld [smem:[#allocation3]]
      %s231 = ssub.s32 %s229, %s230
      %s232 = ssub.s32 %s42, %s56
      %s233 = sor.u32 %s231, %s232
      %p234 = scmp.eq.s32.totalorder %s233, 0
      %s236 = sadd.s32 %s235, 1
      %s237 = scalar_select %p234, %s235, %s236
      %p240 = pneg %p234
      %p241 = scmp.eq.s32.totalorder %s34, 7
      %p242 = por %p240, %p241
      %p243 = scmp.ne.s32.totalorder %s235, %s238
      %p244 = scmp.eq.s32.totalorder %s34, 0
      %p245 = por %p243, %p244
      %p246 = scmp.ne.s32.totalorder %s235, %s238
      %p247 = scmp.eq.s32.totalorder %s39, 7
      %p248 = por %p246, %p247
      %p249 = scmp.ne.s32.totalorder %s238, %s239
      %p250 = scmp.eq.s32.totalorder %s39, 0
      %p251 = por %p249, %p250
      %p252 = scmp.ne.s32.totalorder %s238, %s239
      %p253 = scmp.eq.s32.totalorder %s40, 7
      %p254 = por %p252, %p253
      %p256 = scmp.ne.s32.totalorder %s239, %s255
      %p257 = scmp.eq.s32.totalorder %s40, 0
      %p258 = por %p256, %p257
      %s259 = ssub.s32 %s41, %s60
      %s260 = ssub.s32 %s42, %s56
      %s261 = sor.u32 %s259, %s260
      %p262 = scmp.eq.s32.totalorder %s261, 0
      %s264 = sadd.s32 %s263, 1
      %s265 = scalar_select %p262, %s263, %s264
      %p268 = pneg %p262
      %p269 = scmp.eq.s32.totalorder %s34, 7
      %p270 = por %p268, %p269
      %p271 = scmp.ne.s32.totalorder %s263, %s266
      %p272 = scmp.eq.s32.totalorder %s34, 0
      %p273 = por %p271, %p272
      %p274 = scmp.ne.s32.totalorder %s263, %s266
      %p275 = scmp.eq.s32.totalorder %s39, 7
      %p276 = por %p274, %p275
      %p277 = scmp.ne.s32.totalorder %s266, %s267
      %p278 = scmp.eq.s32.totalorder %s39, 0
      %p279 = por %p277, %p278
      %p280 = scmp.ne.s32.totalorder %s266, %s267
      %p281 = scmp.eq.s32.totalorder %s40, 7
      %p282 = por %p280, %p281
      %p284 = scmp.ne.s32.totalorder %s267, %s283
      %p285 = scmp.eq.s32.totalorder %s40, 0
      %p286 = por %p284, %p285
      %s287 = ssub.s32 %s41, %s60
      %s288 = ssub.s32 %s42, %s56
      %s289 = sor.u32 %s287, %s288
      %p290 = scmp.eq.s32.totalorder %s289, 0
      %s292 = sadd.s32 %s291, 1
      %s293 = scalar_select %p290, %s291, %s292
      %p296 = pneg %p290
      %p297 = scmp.eq.s32.totalorder %s34, 7
      %p298 = por %p296, %p297
      %p299 = scmp.ne.s32.totalorder %s291, %s294
      %p300 = scmp.eq.s32.totalorder %s34, 0
      %p301 = por %p299, %p300
      %p302 = scmp.ne.s32.totalorder %s291, %s294
      %p303 = scmp.eq.s32.totalorder %s39, 7
      %p304 = por %p302, %p303
      %p305 = scmp.ne.s32.totalorder %s294, %s295
      %p306 = scmp.eq.s32.totalorder %s39, 0
      %p307 = por %p305, %p306
      %p308 = scmp.ne.s32.totalorder %s294, %s295
      %p309 = scmp.eq.s32.totalorder %s40, 7
      %p310 = por %p308, %p309
      %p312 = scmp.ne.s32.totalorder %s295, %s311
      %p313 = scmp.eq.s32.totalorder %s40, 0
      %p314 = por %p312, %p313
      %p315 = scmp.le.s32.totalorder 1, %s34
      %p316 = scmp.lt.s32.totalorder %s34, 9
      %p317 = pnand %p315, %p316
      %p318 = pneg %p317
      // Predicated region
      $region9: #{tpu_custom_call.1} parent=5 // pred_check
        _
      $region10: #{tpu_custom_call.1} parent=5 // pred_check_branch
        %320 = sbr.rel (%p317) target = $region12
      $region11: #{tpu_custom_call.1} parent=5 // pred_region
        %s321 = ssub.s32 %s34, 1
      $region12: #{tpu_custom_call.1} parent=5 // pred_fallthru
        _
      %p322 = scmp.lt.s32.totalorder %s34, 8
      // Predicated region
      $region13: #{tpu_custom_call.1} parent=5 // pred_check
        %p323 = pneg %p322
      $region14: #{tpu_custom_call.1} parent=5 // pred_check_branch
        %325 = sbr.rel (%p323) target = $region16
      $region15: #{tpu_custom_call.1} parent=5 // pred_region
        // Predicated region
        $region17: #{tpu_custom_call.1} parent=15 // pred_check
          %p326 = pneg %p75
        $region18: #{tpu_custom_call.1} parent=15 // pred_check_branch
          %328 = sbr.rel (%p326) target = $region20
        $region19: #{tpu_custom_call.1} parent=15 // pred_region
          %s329 = sand.u32 %s65, 1
          %s330 = scalar_lea.sflag [#allocation6], %s329
          %s331 = sand.u32 %s65, 1
          %s332 = smul.addr %s331, 8
          %s333 = scalar_lea.vmem [#allocation5], %s332
          %s335 = ssub.s32 128, 128
          %336 = vsyncadd %s330, %s335
          %s337 = smul.addr %s41, 2
          %s338 = sadd.s32 %s43, %s337
          %s339 = smul.addr %s338, 128
          %s340 = scalar_lea.hbm %s2, %s339
          %s342 = sshll.u32 %s333, 4
          %s343 = int_to_ptr.vmem [resolvable:$true] %s342
          %345 = dma.hbm_to_vmem [thread:$0]  %s340, 128, %s343, %s330
        $region20: #{tpu_custom_call.1} parent=15 // pred_fallthru
          _
        // Predicated region
        $region21: #{tpu_custom_call.1} parent=15 // pred_check
          %p346 = pneg %p103
        $region22: #{tpu_custom_call.1} parent=15 // pred_check_branch
          %348 = sbr.rel (%p346) target = $region24
        $region23: #{tpu_custom_call.1} parent=15 // pred_region
          #allocation18 [shape = 'u32[6]{0}', space=smem, size = 0x18, scoped, tag = 'DMA stride descriptor']
          %s349 = sand.u32 %s34, 1
          %s350 = scalar_lea.sflag [#allocation9], %s349
          %s351 = sand.u32 %s93, 1
          %s352 = smul.addr %s351, 192
          %s353 = scalar_lea.vmem [#allocation8], %s352
          %s354 = smul.u32 16, %s43
          %s356 = ssub.s32 3072, 3072
          %357 = vsyncadd %s350, %s356
          %s358 = smul.addr %s354, 2
          %s359 = sadd.s32 %s42, %s358
          %s360 = smul.addr %s359, 64
          %s361 = scalar_lea.hbm %s3, %s360
          %s363 = sshll.u32 1, 14
          %s364 = sxor.u32 4294967295, %s363
          %s366 = sld [smem:[#allocation0]]
          %s367 = sadd.s32 2, %s366
          %s369 = sshll.u32 7, 26
          %s370 = sxor.u32 4294967295, %s369
          %s371 = sand.u32 0, %s370
          %s372 = sshll.u32 %s367, 26
          %s373 = sor.u32 %s371, %s372
          %s374 = sshll.u32 %s353, 4
          %s375 = int_to_ptr.vmem [resolvable:$true] %s374
          %381 = sst [smem:[#allocation18]] 4096
          %s382 = scalar_lea.smem [#allocation18], 1
          %383 = sst [smem:[%s382]] 1024
          %s384 = scalar_lea.smem [#allocation18], 2
          %385 = sst [smem:[%s384]] 16
          %s386 = scalar_lea.smem [#allocation18], 3
          %387 = sst [smem:[%s386]] 128
          %s388 = scalar_lea.smem [#allocation18], 4
          %389 = sst [smem:[%s388]] 64
          %s390 = scalar_lea.smem [#allocation18], 5
          %391 = sst [smem:[%s390]] 4
          %393 = dma.general %s361, 3072, %s375, %s350, 131072, [#allocation18], %s373, 0
        $region24: #{tpu_custom_call.1} parent=15 // pred_fallthru
          _
        // Predicated region
        $region25: #{tpu_custom_call.1} parent=15 // pred_check
          %p394 = pneg %p131
        $region26: #{tpu_custom_call.1} parent=15 // pred_check_branch
          %396 = sbr.rel (%p394) target = $region28
        $region27: #{tpu_custom_call.1} parent=15 // pred_region
          #allocation20 [shape = 'u32[6]{0}', space=smem, size = 0x18, scoped, tag = 'DMA stride descriptor']
          %s397 = sand.u32 %s34, 1
          %s398 = scalar_lea.sflag [#allocation9], %s397
          %s399 = sand.u32 %s121, 1
          %s400 = smul.addr %s399, 192
          %s401 = scalar_lea.vmem [#allocation10], %s400
          %s402 = smul.u32 16, %s43
          %s404 = ssub.s32 3072, 3072
          %405 = vsyncadd %s398, %s404
          %s406 = smul.addr %s402, 2
          %s407 = sadd.s32 %s42, %s406
          %s408 = smul.addr %s407, 64
          %s409 = scalar_lea.hbm %s4, %s408
          %s411 = sshll.u32 1, 14
          %s412 = sxor.u32 4294967295, %s411
          %s414 = sld [smem:[#allocation0]]
          %s415 = sadd.s32 2, %s414
          %s417 = sshll.u32 7, 26
          %s418 = sxor.u32 4294967295, %s417
          %s419 = sand.u32 0, %s418
          %s420 = sshll.u32 %s415, 26
          %s421 = sor.u32 %s419, %s420
          %s422 = sshll.u32 %s401, 4
          %s423 = int_to_ptr.vmem [resolvable:$true] %s422
          %429 = sst [smem:[#allocation20]] 4096
          %s430 = scalar_lea.smem [#allocation20], 1
          %431 = sst [smem:[%s430]] 1024
          %s432 = scalar_lea.smem [#allocation20], 2
          %433 = sst [smem:[%s432]] 16
          %s434 = scalar_lea.smem [#allocation20], 3
          %435 = sst [smem:[%s434]] 128
          %s436 = scalar_lea.smem [#allocation20], 4
          %437 = sst [smem:[%s436]] 64
          %s438 = scalar_lea.smem [#allocation20], 5
          %439 = sst [smem:[%s438]] 4
          %441 = dma.general %s409, 3072, %s423, %s398, 131072, [#allocation20], %s421, 0
        $region28: #{tpu_custom_call.1} parent=15 // pred_fallthru
          _
        // Predicated region
        $region29: #{tpu_custom_call.1} parent=15 // pred_check
          %p442 = pneg %p163
        $region30: #{tpu_custom_call.1} parent=15 // pred_check_branch
          %444 = sbr.rel (%p442) target = $region32
        $region31: #{tpu_custom_call.1} parent=15 // pred_region
          %s445 = sand.u32 %s34, 1
          %s446 = scalar_lea.sflag [#allocation12], %s445
          %s447 = sand.u32 %s153, 1
          %s448 = smul.addr %s447, 64
          %s449 = scalar_lea.vmem [#allocation11], %s448
          %s450 = sld [smem:[#allocation3]]
          %s451 = smul.u32 16, %s43
          %s453 = ssub.s32 1024, 1024
          %454 = vsyncadd %s446, %s453
          %s455 = smul.addr %s451, 2
          %s456 = sadd.s32 %s42, %s455
          %s457 = smul.addr %s450, 64
          %s458 = sadd.s32 %s456, %s457
          %s459 = smul.addr %s458, 64
          %s460 = scalar_lea.hbm %s5, %s459
          %s461 = sshll.u32 %s449, 4
          %s462 = int_to_ptr.vmem [resolvable:$true] %s461
          %467 = dma.hbm_to_vmem [thread:$0]  %s460, 1024, %s462, %s446, 128, 64, 4
        $region32: #{tpu_custom_call.1} parent=15 // pred_fallthru
          _
        // Predicated region
        $region33: #{tpu_custom_call.1} parent=15 // pred_check
          %p468 = pneg %p189
        $region34: #{tpu_custom_call.1} parent=15 // pred_check_branch
          %470 = sbr.rel (%p468) target = $region36
        $region35: #{tpu_custom_call.1} parent=15 // pred_region
          %p471 = scmp.lt.s32.totalorder %s42, 1
          %s472 = scalar_select %p471, %s42, 1
          %s473 = smul.addr %s472, 4
          %s474 = scalar_lea.vmem %s6, %s473
        $region36: #{tpu_custom_call.1} parent=15 // pred_fallthru
          _
        // Predicated region
        $region37: #{tpu_custom_call.1} parent=15 // pred_check
          %p475 = pneg %p215
        $region38: #{tpu_custom_call.1} parent=15 // pred_check_branch
          %477 = sbr.rel (%p475) target = $region40
        $region39: #{tpu_custom_call.1} parent=15 // pred_region
          %s478 = sand.u32 %s34, 1
          %s479 = scalar_lea.sflag [#allocation12], %s478
          %s480 = sand.u32 %s205, 1
          %s481 = smul.addr %s480, 4
          %s482 = scalar_lea.vmem [#allocation13], %s481
          %s484 = ssub.s32 64, 64
          %485 = vsyncadd %s479, %s484
          %s486 = smul.addr %s42, 64
          %s487 = scalar_lea.hbm %s7, %s486
          %s489 = sshll.u32 %s482, 4
          %s490 = int_to_ptr.vmem [resolvable:$true] %s489
          %492 = dma.hbm_to_vmem [thread:$0]  %s487, 64, %s490, %s479
        $region40: #{tpu_custom_call.1} parent=15 // pred_fallthru
          _
        // Predicated region
        $region41: #{tpu_custom_call.1} parent=15 // pred_check
          %p493 = pneg %p245
        $region42: #{tpu_custom_call.1} parent=15 // pred_check_branch
          %495 = sbr.rel (%p493) target = $region44
        $region43: #{tpu_custom_call.1} parent=15 // pred_region
          %s496 = sld [smem:[#allocation3]]
          %p497 = scmp.lt.s32.totalorder %s496, 2
          %s498 = scalar_select %p497, %s496, 2
          %p499 = scmp.lt.s32.totalorder %s42, 1
          %s500 = scalar_select %p499, %s42, 1
          %s501 = smul.addr %s498, 2
          %s502 = sadd.s32 %s500, %s501
          %s503 = scalar_lea.vmem %s8, %s502
          %s504 = sld [smem:[#allocation3]]
        $region44: #{tpu_custom_call.1} parent=15 // pred_fallthru
          _
      $region16: #{tpu_custom_call.1} parent=5 // pred_fallthru
        _
      %p505 = scmp.le.s32.totalorder 1, %s34
      %p506 = scmp.lt.s32.totalorder %s34, 9
      %p507 = pnand %p505, %p506
      %p508 = pneg %p507
      // Predicated region
      $region45: #{tpu_custom_call.1} parent=5 // pred_check
        _
      $region46: #{tpu_custom_call.1} parent=5 // pred_check_branch
        %510 = sbr.rel (%p507) target = $region48
      $region47: #{tpu_custom_call.1} parent=5 // pred_region
        %s511 = ssub.s32 %s34, 1
        %s512 = sand.u32 %s68, 1
        %s513 = scalar_lea.sflag [#allocation6], %s512
        %s514 = sand.u32 %s68, 1
        %s515 = smul.addr %s514, 8
        %s516 = scalar_lea.vmem [#allocation5], %s515
        // Predicated region
        $region49: #{tpu_custom_call.1} parent=47 // pred_check
          %p517 = pneg %p81
        $region50: #{tpu_custom_call.1} parent=47 // pred_check_branch
          %519 = sbr.rel (%p517) target = $region52
        $region51: #{tpu_custom_call.1} parent=47 // pred_region
          %520 = dma.done %s513, 128
        $region52: #{tpu_custom_call.1} parent=47 // pred_fallthru
          _
        %s521 = sand.u32 %s39, 1
        %s522 = scalar_lea.sflag [#allocation9], %s521
        %s523 = sand.u32 %s96, 1
        %s524 = smul.addr %s523, 192
        %s525 = scalar_lea.vmem [#allocation8], %s524
        // Predicated region
        $region53: #{tpu_custom_call.1} parent=47 // pred_check
          %p526 = pneg %p109
        $region54: #{tpu_custom_call.1} parent=47 // pred_check_branch
          %528 = sbr.rel (%p526) target = $region56
        $region55: #{tpu_custom_call.1} parent=47 // pred_region
          %529 = dma.done %s522, 3072
        $region56: #{tpu_custom_call.1} parent=47 // pred_fallthru
          _
        %s530 = sand.u32 %s39, 1
        %s531 = scalar_lea.sflag [#allocation9], %s530
        %s532 = sand.u32 %s124, 1
        %s533 = smul.addr %s532, 192
        %s534 = scalar_lea.vmem [#allocation10], %s533
        // Predicated region
        $region57: #{tpu_custom_call.1} parent=47 // pred_check
          %p535 = pneg %p137
        $region58: #{tpu_custom_call.1} parent=47 // pred_check_branch
          %537 = sbr.rel (%p535) target = $region60
        $region59: #{tpu_custom_call.1} parent=47 // pred_region
          %538 = dma.done %s531, 3072
        $region60: #{tpu_custom_call.1} parent=47 // pred_fallthru
          _
        %s539 = sand.u32 %s39, 1
        %s540 = scalar_lea.sflag [#allocation12], %s539
        %s541 = sand.u32 %s156, 1
        %s542 = smul.addr %s541, 64
        %s543 = scalar_lea.vmem [#allocation11], %s542
        // Predicated region
        $region61: #{tpu_custom_call.1} parent=47 // pred_check
          %p544 = pneg %p169
        $region62: #{tpu_custom_call.1} parent=47 // pred_check_branch
          %546 = sbr.rel (%p544) target = $region64
        $region63: #{tpu_custom_call.1} parent=47 // pred_region
          %547 = dma.done %s540, 1024
        $region64: #{tpu_custom_call.1} parent=47 // pred_fallthru
          _
        %s548 = sand.u32 %s39, 1
        %s549 = scalar_lea.sflag [#allocation12], %s548
        %s550 = sand.u32 %s208, 1
        %s551 = smul.addr %s550, 4
        %s552 = scalar_lea.vmem [#allocation13], %s551
        // Predicated region
        $region65: #{tpu_custom_call.1} parent=47 // pred_check
          %p553 = pneg %p221
        $region66: #{tpu_custom_call.1} parent=47 // pred_check_branch
          %555 = sbr.rel (%p553) target = $region68
        $region67: #{tpu_custom_call.1} parent=47 // pred_region
          %556 = dma.done %s549, 64
        $region68: #{tpu_custom_call.1} parent=47 // pred_fallthru
          _
        %s557 = sand.u32 %s68, 1
        %s558 = scalar_lea.sflag [#allocation6], %s557
        %s559 = sand.u32 %s68, 1
        %s560 = smul.addr %s559, 8
        %s561 = scalar_lea.vmem [#allocation5], %s560
        %p562 = pneg %p81
        %p563 = pneg %p78
        %s564 = sand.u32 %s39, 1
        %s565 = scalar_lea.sflag [#allocation9], %s564
        %s566 = sand.u32 %s96, 1
        %s567 = smul.addr %s566, 192
        %s568 = scalar_lea.vmem [#allocation8], %s567
        %p569 = pneg %p109
        %p570 = pneg %p106
        %s571 = sand.u32 %s39, 1
        %s572 = scalar_lea.sflag [#allocation9], %s571
        %s573 = sand.u32 %s124, 1
        %s574 = smul.addr %s573, 192
        %s575 = scalar_lea.vmem [#allocation10], %s574
        %p576 = pneg %p137
        %p577 = pneg %p134
        %s578 = sand.u32 %s39, 1
        %s579 = scalar_lea.sflag [#allocation12], %s578
        %s580 = sand.u32 %s156, 1
        %s581 = smul.addr %s580, 64
        %s582 = scalar_lea.vmem [#allocation11], %s581
        %p583 = pneg %p169
        %p584 = pneg %p166
        %p585 = scmp.lt.s32.totalorder %s45, 1
        %s586 = scalar_select %p585, %s45, 1
        %s587 = smul.addr %s586, 4
        %s588 = scalar_lea.vmem %s6, %s587
        %p589 = pneg %p195
        %p590 = pneg %p192
        %s591 = sand.u32 %s39, 1
        %s592 = scalar_lea.sflag [#allocation12], %s591
        %s593 = sand.u32 %s208, 1
        %s594 = smul.addr %s593, 4
        %s595 = scalar_lea.vmem [#allocation13], %s594
        %p596 = pneg %p221
        %p597 = pneg %p218
        %s598 = sld [smem:[#allocation3]]
        %p599 = scmp.lt.s32.totalorder %s598, 2
        %s600 = scalar_select %p599, %s598, 2
        %p601 = scmp.lt.s32.totalorder %s45, 1
        %s602 = scalar_select %p601, %s45, 1
        %s603 = smul.addr %s600, 2
        %s604 = sadd.s32 %s602, %s603
        %s605 = scalar_lea.vmem %s8, %s604
        %p606 = pneg %p251
        %p607 = pneg %p248
        %p608 = pneg %p279
        %p609 = pneg %p276
        %s610 = sand.u32 %s266, 1
        %s611 = scalar_lea.sflag [#allocation7], %s610
        %s612 = sand.u32 %s266, 1
        %s613 = smul.addr %s612, 8
        %s614 = scalar_lea.vmem [#allocation14], %s613
        %p615 = pneg %p307
        %p616 = pneg %p304
        %s617 = sand.u32 %s294, 1
        %s618 = scalar_lea.sflag [#allocation16], %s617
        %s619 = sand.u32 %s294, 1
        %s620 = scalar_lea.vmem [#allocation15], %s619
        %s621 = smul.u32 16, %s46
        %s622 = smul.u32 16, %s46
        %s623 = sld [smem:[#allocation3]]
        %s624 = smul.u32 16, %s46
        %p625 = scmp.lt.s32.totalorder %s45, 1
        %s626 = scalar_select %p625, %s45, 1
        %s627 = smul.addr %s626, 4
        %s628 = scalar_lea.vmem %s6, %s627
        %s629 = sld [smem:[#allocation3]]
        %p630 = scmp.lt.s32.totalorder %s629, 2
        %s631 = scalar_select %p630, %s629, 2
        %p632 = scmp.lt.s32.totalorder %s45, 1
        %s633 = scalar_select %p632, %s45, 1
        %s634 = smul.addr %s631, 2
        %s635 = sadd.s32 %s633, %s634
        %s636 = scalar_lea.vmem %s8, %s635
        %s637 = sld [smem:[#allocation3]]
        %s639 = sld [smem:[#allocation3]]
        %p640 = scmp.eq.s32.totalorder %s46, 0
        // Predicated region
        $region69: #{tpu_custom_call.1} parent=47 // pred_check
          %p641 = pneg %p640
        $region70: #{tpu_custom_call.1} parent=47 // pred_check_branch
          %643 = sbr.rel (%p641) target = $region72
        $region71: #{tpu_custom_call.1} parent=47 // pred_region
          %644 = vst [vmem:[%s614] sm:$0xff] 0.0
          %645 = vst [vmem:[%s620] sm:$0x1] 0.0
        $region72: #{tpu_custom_call.1} parent=47 // pred_fallthru
          _
        %v646 = vld [vmem:[%s525] sm:$0xf]
        %v647 = vld [vmem:[%s525 + $0x4] sm:$0xf]
        %v648 = vld [vmem:[%s525 + $0x8] sm:$0xf]
        %v649 = vld [vmem:[%s525 + $0xc] sm:$0xf]
        %v650 = vld [vmem:[%s525 + $0x10] sm:$0xf]
        %v651 = vld [vmem:[%s525 + $0x14] sm:$0xf]
        %v652 = vld [vmem:[%s525 + $0x18] sm:$0xf]
        %v653 = vld [vmem:[%s525 + $0x1c] sm:$0xf]
        %v654 = vld [vmem:[%s525 + $0x20] sm:$0xf]
        %v655 = vld [vmem:[%s525 + $0x24] sm:$0xf]
        %v656 = vld [vmem:[%s525 + $0x28] sm:$0xf]
        %v657 = vld [vmem:[%s525 + $0x2c] sm:$0xf]
        %v658 = vld [vmem:[%s525 + $0x30] sm:$0xf]
        %v659 = vld [vmem:[%s525 + $0x34] sm:$0xf]
        %v660 = vld [vmem:[%s525 + $0x38] sm:$0xf]
        %v661 = vld [vmem:[%s525 + $0x3c] sm:$0xf]
        %v662 = vunpack.c.l.bf16 %v646
        %v663 = vunpack.c.l.bf16 %v647
        %v664 = vunpack.c.l.bf16 %v648
        %v665 = vunpack.c.l.bf16 %v649
        %v666 = vunpack.c.l.bf16 %v650
        %v667 = vunpack.c.l.bf16 %v651
        %v668 = vunpack.c.l.bf16 %v652
        %v669 = vunpack.c.l.bf16 %v653
        %v670 = vunpack.c.l.bf16 %v654
        %v671 = vunpack.c.l.bf16 %v655
        %v672 = vunpack.c.l.bf16 %v656
        %v673 = vunpack.c.l.bf16 %v657
        %v674 = vunpack.c.l.bf16 %v658
        %v675 = vunpack.c.l.bf16 %v659
        %v676 = vunpack.c.l.bf16 %v660
        %v677 = vunpack.c.l.bf16 %v661
        %v678 = vld [vmem:[%s534] sm:$0xf]
        %v679 = vld [vmem:[%s534 + $0x4] sm:$0xf]
        %v680 = vld [vmem:[%s534 + $0x8] sm:$0xf]
        %v681 = vld [vmem:[%s534 + $0xc] sm:$0xf]
        %v682 = vld [vmem:[%s534 + $0x10] sm:$0xf]
        %v683 = vld [vmem:[%s534 + $0x14] sm:$0xf]
        %v684 = vld [vmem:[%s534 + $0x18] sm:$0xf]
        %v685 = vld [vmem:[%s534 + $0x1c] sm:$0xf]
        %v686 = vld [vmem:[%s534 + $0x20] sm:$0xf]
        %v687 = vld [vmem:[%s534 + $0x24] sm:$0xf]
        %v688 = vld [vmem:[%s534 + $0x28] sm:$0xf]
        %v689 = vld [vmem:[%s534 + $0x2c] sm:$0xf]
        %v690 = vld [vmem:[%s534 + $0x30] sm:$0xf]
        %v691 = vld [vmem:[%s534 + $0x34] sm:$0xf]
        %v692 = vld [vmem:[%s534 + $0x38] sm:$0xf]
        %v693 = vld [vmem:[%s534 + $0x3c] sm:$0xf]
        %v694 = vunpack.c.l.bf16 %v678
        %v695 = vunpack.c.l.bf16 %v679
        %v696 = vunpack.c.l.bf16 %v680
        %v697 = vunpack.c.l.bf16 %v681
        %v698 = vunpack.c.l.bf16 %v682
        %v699 = vunpack.c.l.bf16 %v683
        %v700 = vunpack.c.l.bf16 %v684
        %v701 = vunpack.c.l.bf16 %v685
        %v702 = vunpack.c.l.bf16 %v686
        %v703 = vunpack.c.l.bf16 %v687
        %v704 = vunpack.c.l.bf16 %v688
        %v705 = vunpack.c.l.bf16 %v689
        %v706 = vunpack.c.l.bf16 %v690
        %v707 = vunpack.c.l.bf16 %v691
        %v708 = vunpack.c.l.bf16 %v692
        %v709 = vunpack.c.l.bf16 %v693
        %p710 = scmp.eq.s32.totalorder %s639, 1
        %s711 = scalar_lea.vmem %s525, 64 [#allocation8]
        %v712 = vld [vmem:[%s711] sm:$0xf]
        %v713 = vld [vmem:[%s711 + $0x4] sm:$0xf]
        %v714 = vld [vmem:[%s711 + $0x8] sm:$0xf]
        %v715 = vld [vmem:[%s711 + $0xc] sm:$0xf]
        %v716 = vld [vmem:[%s711 + $0x10] sm:$0xf]
        %v717 = vld [vmem:[%s711 + $0x14] sm:$0xf]
        %v718 = vld [vmem:[%s711 + $0x18] sm:$0xf]
        %v719 = vld [vmem:[%s711 + $0x1c] sm:$0xf]
        %v720 = vld [vmem:[%s711 + $0x20] sm:$0xf]
        %v721 = vld [vmem:[%s711 + $0x24] sm:$0xf]
        %v722 = vld [vmem:[%s711 + $0x28] sm:$0xf]
        %v723 = vld [vmem:[%s711 + $0x2c] sm:$0xf]
        %v724 = vld [vmem:[%s711 + $0x30] sm:$0xf]
        %v725 = vld [vmem:[%s711 + $0x34] sm:$0xf]
        %v726 = vld [vmem:[%s711 + $0x38] sm:$0xf]
        %v727 = vld [vmem:[%s711 + $0x3c] sm:$0xf]
        %v728 = vunpack.c.l.bf16 %v712
        %v729 = vunpack.c.l.bf16 %v713
        %v730 = vunpack.c.l.bf16 %v714
        %v731 = vunpack.c.l.bf16 %v715
        %v732 = vunpack.c.l.bf16 %v716
        %v733 = vunpack.c.l.bf16 %v717
        %v734 = vunpack.c.l.bf16 %v718
        %v735 = vunpack.c.l.bf16 %v719
        %v736 = vunpack.c.l.bf16 %v720
        %v737 = vunpack.c.l.bf16 %v721
        %v738 = vunpack.c.l.bf16 %v722
        %v739 = vunpack.c.l.bf16 %v723
        %v740 = vunpack.c.l.bf16 %v724
        %v741 = vunpack.c.l.bf16 %v725
        %v742 = vunpack.c.l.bf16 %v726
        %v743 = vunpack.c.l.bf16 %v727
        %s744 = scalar_select %p710, 1, 0
        %v745 = vstv %s744
        %vm746 = vcmp.eq.s32.totalorder %v745, 1
        %v747 = vsel %vm746, %v728, %v662
        %v748 = vsel %vm746, %v729, %v663
        %v749 = vsel %vm746, %v730, %v664
        %v750 = vsel %vm746, %v731, %v665
        %v751 = vsel %vm746, %v732, %v666
        %v752 = vsel %vm746, %v733, %v667
        %v753 = vsel %vm746, %v734, %v668
        %v754 = vsel %vm746, %v735, %v669
        %v755 = vsel %vm746, %v736, %v670
        %v756 = vsel %vm746, %v737, %v671
        %v757 = vsel %vm746, %v738, %v672
        %v758 = vsel %vm746, %v739, %v673
        %v759 = vsel %vm746, %v740, %v674
        %v760 = vsel %vm746, %v741, %v675
        %v761 = vsel %vm746, %v742, %v676
        %v762 = vsel %vm746, %v743, %v677
        %s763 = scalar_lea.vmem %s534, 64 [#allocation10]
        %v764 = vld [vmem:[%s763] sm:$0xf]
        %v765 = vld [vmem:[%s763 + $0x4] sm:$0xf]
        %v766 = vld [vmem:[%s763 + $0x8] sm:$0xf]
        %v767 = vld [vmem:[%s763 + $0xc] sm:$0xf]
        %v768 = vld [vmem:[%s763 + $0x10] sm:$0xf]
        %v769 = vld [vmem:[%s763 + $0x14] sm:$0xf]
        %v770 = vld [vmem:[%s763 + $0x18] sm:$0xf]
        %v771 = vld [vmem:[%s763 + $0x1c] sm:$0xf]
        %v772 = vld [vmem:[%s763 + $0x20] sm:$0xf]
        %v773 = vld [vmem:[%s763 + $0x24] sm:$0xf]
        %v774 = vld [vmem:[%s763 + $0x28] sm:$0xf]
        %v775 = vld [vmem:[%s763 + $0x2c] sm:$0xf]
        %v776 = vld [vmem:[%s763 + $0x30] sm:$0xf]
        %v777 = vld [vmem:[%s763 + $0x34] sm:$0xf]
        %v778 = vld [vmem:[%s763 + $0x38] sm:$0xf]
        %v779 = vld [vmem:[%s763 + $0x3c] sm:$0xf]
        %v780 = vunpack.c.l.bf16 %v764
        %v781 = vunpack.c.l.bf16 %v765
        %v782 = vunpack.c.l.bf16 %v766
        %v783 = vunpack.c.l.bf16 %v767
        %v784 = vunpack.c.l.bf16 %v768
        %v785 = vunpack.c.l.bf16 %v769
        %v786 = vunpack.c.l.bf16 %v770
        %v787 = vunpack.c.l.bf16 %v771
        %v788 = vunpack.c.l.bf16 %v772
        %v789 = vunpack.c.l.bf16 %v773
        %v790 = vunpack.c.l.bf16 %v774
        %v791 = vunpack.c.l.bf16 %v775
        %v792 = vunpack.c.l.bf16 %v776
        %v793 = vunpack.c.l.bf16 %v777
        %v794 = vunpack.c.l.bf16 %v778
        %v795 = vunpack.c.l.bf16 %v779
        %v796 = vsel %vm746, %v780, %v694
        %v797 = vsel %vm746, %v781, %v695
        %v798 = vsel %vm746, %v782, %v696
        %v799 = vsel %vm746, %v783, %v697
        %v800 = vsel %vm746, %v784, %v698
        %v801 = vsel %vm746, %v785, %v699
        %v802 = vsel %vm746, %v786, %v700
        %v803 = vsel %vm746, %v787, %v701
        %v804 = vsel %vm746, %v788, %v702
        %v805 = vsel %vm746, %v789, %v703
        %v806 = vsel %vm746, %v790, %v704
        %v807 = vsel %vm746, %v791, %v705
        %v808 = vsel %vm746, %v792, %v706
        %v809 = vsel %vm746, %v793, %v707
        %v810 = vsel %vm746, %v794, %v708
        %v811 = vsel %vm746, %v795, %v709
        %p812 = scmp.eq.s32.totalorder %s639, 2
        %s813 = scalar_lea.vmem %s525, 128 [#allocation8]
        %v814 = vld [vmem:[%s813] sm:$0xf]
        %v815 = vld [vmem:[%s813 + $0x4] sm:$0xf]
        %v816 = vld [vmem:[%s813 + $0x8] sm:$0xf]
        %v817 = vld [vmem:[%s813 + $0xc] sm:$0xf]
        %v818 = vld [vmem:[%s813 + $0x10] sm:$0xf]
        %v819 = vld [vmem:[%s813 + $0x14] sm:$0xf]
        %v820 = vld [vmem:[%s813 + $0x18] sm:$0xf]
        %v821 = vld [vmem:[%s813 + $0x1c] sm:$0xf]
        %v822 = vld [vmem:[%s813 + $0x20] sm:$0xf]
        %v823 = vld [vmem:[%s813 + $0x24] sm:$0xf]
        %v824 = vld [vmem:[%s813 + $0x28] sm:$0xf]
        %v825 = vld [vmem:[%s813 + $0x2c] sm:$0xf]
        %v826 = vld [vmem:[%s813 + $0x30] sm:$0xf]
        %v827 = vld [vmem:[%s813 + $0x34] sm:$0xf]
        %v828 = vld [vmem:[%s813 + $0x38] sm:$0xf]
        %v829 = vld [vmem:[%s813 + $0x3c] sm:$0xf]
        %v830 = vunpack.c.l.bf16 %v814
        %v831 = vunpack.c.l.bf16 %v815
        %v832 = vunpack.c.l.bf16 %v816
        %v833 = vunpack.c.l.bf16 %v817
        %v834 = vunpack.c.l.bf16 %v818
        %v835 = vunpack.c.l.bf16 %v819
        %v836 = vunpack.c.l.bf16 %v820
        %v837 = vunpack.c.l.bf16 %v821
        %v838 = vunpack.c.l.bf16 %v822
        %v839 = vunpack.c.l.bf16 %v823
        %v840 = vunpack.c.l.bf16 %v824
        %v841 = vunpack.c.l.bf16 %v825
        %v842 = vunpack.c.l.bf16 %v826
        %v843 = vunpack.c.l.bf16 %v827
        %v844 = vunpack.c.l.bf16 %v828
        %v845 = vunpack.c.l.bf16 %v829
        %s846 = scalar_select %p812, 1, 0
        %v847 = vstv %s846
        %vm848 = vcmp.eq.s32.totalorder %v847, 1
        %v849 = vsel %vm848, %v830, %v747
        %v850 = vsel %vm848, %v831, %v748
        %v851 = vsel %vm848, %v832, %v749
        %v852 = vsel %vm848, %v833, %v750
        %v853 = vsel %vm848, %v834, %v751
        %v854 = vsel %vm848, %v835, %v752
        %v855 = vsel %vm848, %v836, %v753
        %v856 = vsel %vm848, %v837, %v754
        %v857 = vsel %vm848, %v838, %v755
        %v858 = vsel %vm848, %v839, %v756
        %v859 = vsel %vm848, %v840, %v757
        %v860 = vsel %vm848, %v841, %v758
        %v861 = vsel %vm848, %v842, %v759
        %v862 = vsel %vm848, %v843, %v760
        %v863 = vsel %vm848, %v844, %v761
        %v864 = vsel %vm848, %v845, %v762
        %s865 = scalar_lea.vmem %s534, 128 [#allocation10]
        %v866 = vld [vmem:[%s865] sm:$0xf]
        %v867 = vld [vmem:[%s865 + $0x4] sm:$0xf]
        %v868 = vld [vmem:[%s865 + $0x8] sm:$0xf]
        %v869 = vld [vmem:[%s865 + $0xc] sm:$0xf]
        %v870 = vld [vmem:[%s865 + $0x10] sm:$0xf]
        %v871 = vld [vmem:[%s865 + $0x14] sm:$0xf]
        %v872 = vld [vmem:[%s865 + $0x18] sm:$0xf]
        %v873 = vld [vmem:[%s865 + $0x1c] sm:$0xf]
        %v874 = vld [vmem:[%s865 + $0x20] sm:$0xf]
        %v875 = vld [vmem:[%s865 + $0x24] sm:$0xf]
        %v876 = vld [vmem:[%s865 + $0x28] sm:$0xf]
        %v877 = vld [vmem:[%s865 + $0x2c] sm:$0xf]
        %v878 = vld [vmem:[%s865 + $0x30] sm:$0xf]
        %v879 = vld [vmem:[%s865 + $0x34] sm:$0xf]
        %v880 = vld [vmem:[%s865 + $0x38] sm:$0xf]
        %v881 = vld [vmem:[%s865 + $0x3c] sm:$0xf]
        %v882 = vunpack.c.l.bf16 %v866
        %v883 = vunpack.c.l.bf16 %v867
        %v884 = vunpack.c.l.bf16 %v868
        %v885 = vunpack.c.l.bf16 %v869
        %v886 = vunpack.c.l.bf16 %v870
        %v887 = vunpack.c.l.bf16 %v871
        %v888 = vunpack.c.l.bf16 %v872
        %v889 = vunpack.c.l.bf16 %v873
        %v890 = vunpack.c.l.bf16 %v874
        %v891 = vunpack.c.l.bf16 %v875
        %v892 = vunpack.c.l.bf16 %v876
        %v893 = vunpack.c.l.bf16 %v877
        %v894 = vunpack.c.l.bf16 %v878
        %v895 = vunpack.c.l.bf16 %v879
        %v896 = vunpack.c.l.bf16 %v880
        %v897 = vunpack.c.l.bf16 %v881
        %v898 = vsel %vm848, %v882, %v796
        %v899 = vsel %vm848, %v883, %v797
        %v900 = vsel %vm848, %v884, %v798
        %v901 = vsel %vm848, %v885, %v799
        %v902 = vsel %vm848, %v886, %v800
        %v903 = vsel %vm848, %v887, %v801
        %v904 = vsel %vm848, %v888, %v802
        %v905 = vsel %vm848, %v889, %v803
        %v906 = vsel %vm848, %v890, %v804
        %v907 = vsel %vm848, %v891, %v805
        %v908 = vsel %vm848, %v892, %v806
        %v909 = vsel %vm848, %v893, %v807
        %v910 = vsel %vm848, %v894, %v808
        %v911 = vsel %vm848, %v895, %v809
        %v912 = vsel %vm848, %v896, %v810
        %v913 = vsel %vm848, %v897, %v811
        %v914 = vmax.f32 %v898, 0.0
        %v915 = vmax.f32 %v899, 0.0
        %v916 = vmax.f32 %v900, 0.0
        %v917 = vmax.f32 %v901, 0.0
        %v918 = vmax.f32 %v902, 0.0
        %v919 = vmax.f32 %v903, 0.0
        %v920 = vmax.f32 %v904, 0.0
        %v921 = vmax.f32 %v905, 0.0
        %v922 = vmax.f32 %v906, 0.0
        %v923 = vmax.f32 %v907, 0.0
        %v924 = vmax.f32 %v908, 0.0
        %v925 = vmax.f32 %v909, 0.0
        %v926 = vmax.f32 %v910, 0.0
        %v927 = vmax.f32 %v911, 0.0
        %v928 = vmax.f32 %v912, 0.0
        %v929 = vmax.f32 %v913, 0.0
        %v930 = vand.u32 2147483647, %v898
        %v931 = vand.u32 2147483647, %v899
        %v932 = vand.u32 2147483647, %v900
        %v933 = vand.u32 2147483647, %v901
        %v934 = vand.u32 2147483647, %v902
        %v935 = vand.u32 2147483647, %v903
        %v936 = vand.u32 2147483647, %v904
        %v937 = vand.u32 2147483647, %v905
        %v938 = vand.u32 2147483647, %v906
        %v939 = vand.u32 2147483647, %v907
        %v940 = vand.u32 2147483647, %v908
        %v941 = vand.u32 2147483647, %v909
        %v942 = vand.u32 2147483647, %v910
        %v943 = vand.u32 2147483647, %v911
        %v944 = vand.u32 2147483647, %v912
        %v945 = vand.u32 2147483647, %v913
        %v946 = vsub.f32 0.0, %v930
        %v947 = vsub.f32 0.0, %v931
        %v948 = vsub.f32 0.0, %v932
        %v949 = vsub.f32 0.0, %v933
        %v950 = vsub.f32 0.0, %v934
        %v951 = vsub.f32 0.0, %v935
        %v952 = vsub.f32 0.0, %v936
        %v953 = vsub.f32 0.0, %v937
        %v954 = vsub.f32 0.0, %v938
        %v955 = vsub.f32 0.0, %v939
        %v956 = vsub.f32 0.0, %v940
        %v957 = vsub.f32 0.0, %v941
        %v958 = vsub.f32 0.0, %v942
        %v959 = vsub.f32 0.0, %v943
        %v960 = vsub.f32 0.0, %v944
        %v961 = vsub.f32 0.0, %v945
        %v962 = vmul.f32 %v946, 1.442695
        %v963 = vpow.pop %v962
        %v964 = vmul.f32 %v947, 1.442695
        %v965 = vpow.pop %v964
        %v966 = vmul.f32 %v948, 1.442695
        %v967 = vpow.pop %v966
        %v968 = vmul.f32 %v949, 1.442695
        %v969 = vpow.pop %v968
        %v970 = vmul.f32 %v950, 1.442695
        %v971 = vpow.pop %v970
        %v972 = vmul.f32 %v951, 1.442695
        %v973 = vpow.pop %v972
        %v974 = vmul.f32 %v952, 1.442695
        %v975 = vpow.pop %v974
        %v976 = vmul.f32 %v953, 1.442695
        %v977 = vpow.pop %v976
        %v978 = vmul.f32 %v954, 1.442695
        %v979 = vpow.pop %v978
        %v980 = vmul.f32 %v955, 1.442695
        %v981 = vpow.pop %v980
        %v982 = vmul.f32 %v956, 1.442695
        %v983 = vpow.pop %v982
        %v984 = vmul.f32 %v957, 1.442695
        %v985 = vpow.pop %v984
        %v986 = vmul.f32 %v958, 1.442695
        %v987 = vpow.pop %v986
        %v988 = vmul.f32 %v959, 1.442695
        %v989 = vpow.pop %v988
        %v990 = vmul.f32 %v960, 1.442695
        %v991 = vpow.pop %v990
        %v992 = vmul.f32 %v961, 1.442695
        %v993 = vpow.pop %v992
        %v994 = vadd.f32 %v963, 1.0
        %v995 = vadd.f32 %v965, 1.0
        %v996 = vadd.f32 %v967, 1.0
        %v997 = vadd.f32 %v969, 1.0
        %v998 = vadd.f32 %v971, 1.0
        %v999 = vadd.f32 %v973, 1.0
        %v1000 = vadd.f32 %v975, 1.0
        %v1001 = vadd.f32 %v977, 1.0
        %v1002 = vadd.f32 %v979, 1.0
        %v1003 = vadd.f32 %v981, 1.0
        %v1004 = vadd.f32 %v983, 1.0
        %v1005 = vadd.f32 %v985, 1.0
        %v1006 = vadd.f32 %v987, 1.0
        %v1007 = vadd.f32 %v989, 1.0
        %v1008 = vadd.f32 %v991, 1.0
        %v1009 = vadd.f32 %v993, 1.0
        %v1010 = vlog2.pop %v994
        %v1011 = vmul.f32 %v1010, 0.6931472
        %v1012 = vlog2.pop %v995
        %v1013 = vmul.f32 %v1012, 0.6931472
        %v1014 = vlog2.pop %v996
        %v1015 = vmul.f32 %v1014, 0.6931472
        %v1016 = vlog2.pop %v997
        %v1017 = vmul.f32 %v1016, 0.6931472
        %v1018 = vlog2.pop %v998
        %v1019 = vmul.f32 %v1018, 0.6931472
        %v1020 = vlog2.pop %v999
        %v1021 = vmul.f32 %v1020, 0.6931472
        %v1022 = vlog2.pop %v1000
        %v1023 = vmul.f32 %v1022, 0.6931472
        %v1024 = vlog2.pop %v1001
        %v1025 = vmul.f32 %v1024, 0.6931472
        %v1026 = vlog2.pop %v1002
        %v1027 = vmul.f32 %v1026, 0.6931472
        %v1028 = vlog2.pop %v1003
        %v1029 = vmul.f32 %v1028, 0.6931472
        %v1030 = vlog2.pop %v1004
        %v1031 = vmul.f32 %v1030, 0.6931472
        %v1032 = vlog2.pop %v1005
        %v1033 = vmul.f32 %v1032, 0.6931472
        %v1034 = vlog2.pop %v1006
        %v1035 = vmul.f32 %v1034, 0.6931472
        %v1036 = vlog2.pop %v1007
        %v1037 = vmul.f32 %v1036, 0.6931472
        %v1038 = vlog2.pop %v1008
        %v1039 = vmul.f32 %v1038, 0.6931472
        %v1040 = vlog2.pop %v1009
        %v1041 = vmul.f32 %v1040, 0.6931472
        %v1042 = vadd.f32 %v914, %v1011
        %v1043 = vadd.f32 %v915, %v1013
        %v1044 = vadd.f32 %v916, %v1015
        %v1045 = vadd.f32 %v917, %v1017
        %v1046 = vadd.f32 %v918, %v1019
        %v1047 = vadd.f32 %v919, %v1021
        %v1048 = vadd.f32 %v920, %v1023
        %v1049 = vadd.f32 %v921, %v1025
        %v1050 = vadd.f32 %v922, %v1027
        %v1051 = vadd.f32 %v923, %v1029
        %v1052 = vadd.f32 %v924, %v1031
        %v1053 = vadd.f32 %v925, %v1033
        %v1054 = vadd.f32 %v926, %v1035
        %v1055 = vadd.f32 %v927, %v1037
        %v1056 = vadd.f32 %v928, %v1039
        %v1057 = vadd.f32 %v929, %v1041
        %v1058 = vld [vmem:[%s543] sm:$0xf]
        %v1059 = vld [vmem:[%s543 + $0x4] sm:$0xf]
        %v1060 = vld [vmem:[%s543 + $0x8] sm:$0xf]
        %v1061 = vld [vmem:[%s543 + $0xc] sm:$0xf]
        %v1062 = vld [vmem:[%s543 + $0x10] sm:$0xf]
        %v1063 = vld [vmem:[%s543 + $0x14] sm:$0xf]
        %v1064 = vld [vmem:[%s543 + $0x18] sm:$0xf]
        %v1065 = vld [vmem:[%s543 + $0x1c] sm:$0xf]
        %v1066 = vld [vmem:[%s543 + $0x20] sm:$0xf]
        %v1067 = vld [vmem:[%s543 + $0x24] sm:$0xf]
        %v1068 = vld [vmem:[%s543 + $0x28] sm:$0xf]
        %v1069 = vld [vmem:[%s543 + $0x2c] sm:$0xf]
        %v1070 = vld [vmem:[%s543 + $0x30] sm:$0xf]
        %v1071 = vld [vmem:[%s543 + $0x34] sm:$0xf]
        %v1072 = vld [vmem:[%s543 + $0x38] sm:$0xf]
        %v1073 = vld [vmem:[%s543 + $0x3c] sm:$0xf]
        %v1074 = vunpack.c.l.bf16 %v1058
        %v1075 = vunpack.c.l.bf16 %v1059
        %v1076 = vunpack.c.l.bf16 %v1060
        %v1077 = vunpack.c.l.bf16 %v1061
        %v1078 = vunpack.c.l.bf16 %v1062
        %v1079 = vunpack.c.l.bf16 %v1063
        %v1080 = vunpack.c.l.bf16 %v1064
        %v1081 = vunpack.c.l.bf16 %v1065
        %v1082 = vunpack.c.l.bf16 %v1066
        %v1083 = vunpack.c.l.bf16 %v1067
        %v1084 = vunpack.c.l.bf16 %v1068
        %v1085 = vunpack.c.l.bf16 %v1069
        %v1086 = vunpack.c.l.bf16 %v1070
        %v1087 = vunpack.c.l.bf16 %v1071
        %v1088 = vunpack.c.l.bf16 %v1072
        %v1089 = vunpack.c.l.bf16 %v1073
        %v1090 = vmul.f32 %v1042, %v1074
        %v1091 = vmul.f32 %v1043, %v1075
        %v1092 = vmul.f32 %v1044, %v1076
        %v1093 = vmul.f32 %v1045, %v1077
        %v1094 = vmul.f32 %v1046, %v1078
        %v1095 = vmul.f32 %v1047, %v1079
        %v1096 = vmul.f32 %v1048, %v1080
        %v1097 = vmul.f32 %v1049, %v1081
        %v1098 = vmul.f32 %v1050, %v1082
        %v1099 = vmul.f32 %v1051, %v1083
        %v1100 = vmul.f32 %v1052, %v1084
        %v1101 = vmul.f32 %v1053, %v1085
        %v1102 = vmul.f32 %v1054, %v1086
        %v1103 = vmul.f32 %v1055, %v1087
        %v1104 = vmul.f32 %v1056, %v1088
        %v1105 = vmul.f32 %v1057, %v1089
        %v1106 = vadd.f32 %v849, %v1090
        %v1107 = vadd.f32 %v850, %v1091
        %v1108 = vadd.f32 %v851, %v1092
        %v1109 = vadd.f32 %v852, %v1093
        %v1110 = vadd.f32 %v853, %v1094
        %v1111 = vadd.f32 %v854, %v1095
        %v1112 = vadd.f32 %v855, %v1096
        %v1113 = vadd.f32 %v856, %v1097
        %v1114 = vadd.f32 %v857, %v1098
        %v1115 = vadd.f32 %v858, %v1099
        %v1116 = vadd.f32 %v859, %v1100
        %v1117 = vadd.f32 %v860, %v1101
        %v1118 = vadd.f32 %v861, %v1102
        %v1119 = vadd.f32 %v862, %v1103
        %v1120 = vadd.f32 %v863, %v1104
        %v1121 = vadd.f32 %v864, %v1105
        %v1122 = vld [vmem:[%s614] sm:$0xff]
        %v1123 = vld [vmem:[%s516] sm:$0xff]
        %v1124 = vpack.c.bf16 %v1123, %v1123
        %v1125 = vpack.c.bf16 %v1107, %v1106
        %v1126 = vpack.c.bf16 %v1109, %v1108
        %v1127 = vpack.c.bf16 %v1111, %v1110
        %v1128 = vpack.c.bf16 %v1113, %v1112
        %v1129 = vpack.c.bf16 %v1115, %v1114
        %v1130 = vpack.c.bf16 %v1117, %v1116
        %v1131 = vpack.c.bf16 %v1119, %v1118
        %v1132 = vpack.c.bf16 %v1121, %v1120
        %1133 = vmatprep.subr.bf16.mxu0 0
        %1134 = vmatpush1.bf16.msra.mxu0 %v1132
        %1135 = vmatprep.subr.bf16.mxu0 0
        %1136 = vmatpush1.bf16.msra.mxu0 %v1131
        %1137 = vmatprep.subr.bf16.mxu0 0
        %1138 = vmatpush1.bf16.msra.mxu0 %v1130
        %1139 = vmatprep.subr.bf16.mxu0 0
        %1140 = vmatpush1.bf16.msra.mxu0 %v1129
        %1141 = vmatprep.subr.bf16.mxu0 0
        %1142 = vmatpush1.bf16.msra.mxu0 %v1128
        %1143 = vmatprep.subr.bf16.mxu0 0
        %1144 = vmatpush1.bf16.msra.mxu0 %v1127
        %1145 = vmatprep.subr.bf16.mxu0 0
        %1146 = vmatpush1.bf16.msra.mxu0 %v1126
        %1147 = vmatprep.subr.bf16.mxu0 0
        %1148 = vmatpush1.bf16.msra.mxu0 %v1125
        %1149 = vmatprep.subr.bf16.mxu0 0
        %1150 = vmatpush2.bf16.msra.mxu0 0
        %1151 = vmatprep.subr.bf16.mxu0 0
        %1152 = vmatpush2.bf16.msra.mxu0 0
        %1153 = vmatprep.subr.bf16.mxu0 0
        %1154 = vmatpush2.bf16.msra.mxu0 0
        %1155 = vmatprep.subr.bf16.mxu0 0
        %1156 = vmatpush2.bf16.msra.mxu0 0
        %1157 = vmatprep.subr.bf16.mxu0 0
        %1158 = vmatpush2.bf16.msra.mxu0 0
        %1159 = vmatprep.subr.bf16.mxu0 0
        %1160 = vmatpush2.bf16.msra.mxu0 0
        %1161 = vmatprep.subr.bf16.mxu0 0
        %1162 = vmatpush2.bf16.msra.mxu0 0
        %1163 = vmatprep.subr.bf16.mxu0 0
        %1164 = vmatpush2.bf16.msra.mxu0 0
        %1165 = vmatprep.mubr.bf16.mxu0 0
        %1166 = vmatmul.mubr.bf16.gmra.mxu0 %v1124
        %v1167 = vpop.f32.mrf.mxu0
        %v1168 = vadd.f32 0.0, %v1167
        %v1169 = vpop.f32.mrf.mxu0
        %v1170 = vpop.f32.mrf.mxu0
        %v1171 = vpop.f32.mrf.mxu0
        %1172 = vdwg.mxu0
        %v1173 = vadd.f32 %v1122, %v1168
        %1174 = vst [vmem:[%s614] sm:$0xff] %v1173
        %p1175 = scmp.eq.s32.totalorder %s44, 0
        // Predicated region
        $region73: #{tpu_custom_call.1} parent=47 // pred_check
          %p1176 = pneg %p1175
        $region74: #{tpu_custom_call.1} parent=47 // pred_check_branch
          %1178 = sbr.rel (%p1176) target = $region76
        $region75: #{tpu_custom_call.1} parent=47 // pred_region
          %s1179 = sld [smem:[#allocation4]]
          %v1180 = vmul.f32 %v1106, %v1106
          %v1181 = vmul.f32 %v1107, %v1107
          %v1182 = vmul.f32 %v1108, %v1108
          %v1183 = vmul.f32 %v1109, %v1109
          %v1184 = vmul.f32 %v1110, %v1110
          %v1185 = vmul.f32 %v1111, %v1111
          %v1186 = vmul.f32 %v1112, %v1112
          %v1187 = vmul.f32 %v1113, %v1113
          %v1188 = vmul.f32 %v1114, %v1114
          %v1189 = vmul.f32 %v1115, %v1115
          %v1190 = vmul.f32 %v1116, %v1116
          %v1191 = vmul.f32 %v1117, %v1117
          %v1192 = vmul.f32 %v1118, %v1118
          %v1193 = vmul.f32 %v1119, %v1119
          %v1194 = vmul.f32 %v1120, %v1120
          %v1195 = vmul.f32 %v1121, %v1121
          %v1196 = vadd.f32 %v1180, %v1181
          %v1197 = vadd.f32 %v1196, %v1182
          %v1198 = vadd.f32 %v1197, %v1183
          %v1199 = vadd.f32 %v1198, %v1184
          %v1200 = vadd.f32 %v1199, %v1185
          %v1201 = vadd.f32 %v1200, %v1186
          %v1202 = vadd.f32 %v1201, %v1187
          %v1203 = vadd.f32 %v1202, %v1188
          %v1204 = vadd.f32 %v1203, %v1189
          %v1205 = vadd.f32 %v1204, %v1190
          %v1206 = vadd.f32 %v1205, %v1191
          %v1207 = vadd.f32 %v1206, %v1192
          %v1208 = vadd.f32 %v1207, %v1193
          %v1209 = vadd.f32 %v1208, %v1194
          %v1210 = vadd.f32 %v1209, %v1195
          %1211 = vadd.xlane.f32.xlu0 %v1210
          %v1212 = vpop.xlane.xlu0 %1211
          %v1213 = vrot.slane %v1212, 4
          %v1214 = vadd.f32 %v1212, %v1213
          %v1215 = vrot.slane %v1214, 2
          %v1216 = vadd.f32 %v1214, %v1215
          %v1217 = vrot.slane %v1216, 1
          %v1218 = vadd.f32 %v1216, %v1217
          %s1219 = vtos %v1218
          %v1220 = vld [vmem:[%s534] sm:$0xf]
          %v1221 = vld [vmem:[%s534 + $0x4] sm:$0xf]
          %v1222 = vld [vmem:[%s534 + $0x8] sm:$0xf]
          %v1223 = vld [vmem:[%s534 + $0xc] sm:$0xf]
          %v1224 = vld [vmem:[%s534 + $0x10] sm:$0xf]
          %v1225 = vld [vmem:[%s534 + $0x14] sm:$0xf]
          %v1226 = vld [vmem:[%s534 + $0x18] sm:$0xf]
          %v1227 = vld [vmem:[%s534 + $0x1c] sm:$0xf]
          %v1228 = vld [vmem:[%s534 + $0x20] sm:$0xf]
          %v1229 = vld [vmem:[%s534 + $0x24] sm:$0xf]
          %v1230 = vld [vmem:[%s534 + $0x28] sm:$0xf]
          %v1231 = vld [vmem:[%s534 + $0x2c] sm:$0xf]
          %v1232 = vld [vmem:[%s534 + $0x30] sm:$0xf]
          %v1233 = vld [vmem:[%s534 + $0x34] sm:$0xf]
          %v1234 = vld [vmem:[%s534 + $0x38] sm:$0xf]
          %v1235 = vld [vmem:[%s534 + $0x3c] sm:$0xf]
          %v1236 = vunpack.c.l.bf16 %v1220
          %v1237 = vunpack.c.l.bf16 %v1221
          %v1238 = vunpack.c.l.bf16 %v1222
          %v1239 = vunpack.c.l.bf16 %v1223
          %v1240 = vunpack.c.l.bf16 %v1224
          %v1241 = vunpack.c.l.bf16 %v1225
          %v1242 = vunpack.c.l.bf16 %v1226
          %v1243 = vunpack.c.l.bf16 %v1227
          %v1244 = vunpack.c.l.bf16 %v1228
          %v1245 = vunpack.c.l.bf16 %v1229
          %v1246 = vunpack.c.l.bf16 %v1230
          %v1247 = vunpack.c.l.bf16 %v1231
          %v1248 = vunpack.c.l.bf16 %v1232
          %v1249 = vunpack.c.l.bf16 %v1233
          %v1250 = vunpack.c.l.bf16 %v1234
          %v1251 = vunpack.c.l.bf16 %v1235
          %v1252 = vmax.f32 %v1236, 0.0
          %v1253 = vmax.f32 %v1237, 0.0
          %v1254 = vmax.f32 %v1238, 0.0
          %v1255 = vmax.f32 %v1239, 0.0
          %v1256 = vmax.f32 %v1240, 0.0
          %v1257 = vmax.f32 %v1241, 0.0
          %v1258 = vmax.f32 %v1242, 0.0
          %v1259 = vmax.f32 %v1243, 0.0
          %v1260 = vmax.f32 %v1244, 0.0
          %v1261 = vmax.f32 %v1245, 0.0
          %v1262 = vmax.f32 %v1246, 0.0
          %v1263 = vmax.f32 %v1247, 0.0
          %v1264 = vmax.f32 %v1248, 0.0
          %v1265 = vmax.f32 %v1249, 0.0
          %v1266 = vmax.f32 %v1250, 0.0
          %v1267 = vmax.f32 %v1251, 0.0
          %v1268 = vand.u32 2147483647, %v1236
          %v1269 = vand.u32 2147483647, %v1237
          %v1270 = vand.u32 2147483647, %v1238
          %v1271 = vand.u32 2147483647, %v1239
          %v1272 = vand.u32 2147483647, %v1240
          %v1273 = vand.u32 2147483647, %v1241
          %v1274 = vand.u32 2147483647, %v1242
          %v1275 = vand.u32 2147483647, %v1243
          %v1276 = vand.u32 2147483647, %v1244
          %v1277 = vand.u32 2147483647, %v1245
          %v1278 = vand.u32 2147483647, %v1246
          %v1279 = vand.u32 2147483647, %v1247
          %v1280 = vand.u32 2147483647, %v1248
          %v1281 = vand.u32 2147483647, %v1249
          %v1282 = vand.u32 2147483647, %v1250
          %v1283 = vand.u32 2147483647, %v1251
          %v1284 = vsub.f32 0.0, %v1268
          %v1285 = vsub.f32 0.0, %v1269
          %v1286 = vsub.f32 0.0, %v1270
          %v1287 = vsub.f32 0.0, %v1271
          %v1288 = vsub.f32 0.0, %v1272
          %v1289 = vsub.f32 0.0, %v1273
          %v1290 = vsub.f32 0.0, %v1274
          %v1291 = vsub.f32 0.0, %v1275
          %v1292 = vsub.f32 0.0, %v1276
          %v1293 = vsub.f32 0.0, %v1277
          %v1294 = vsub.f32 0.0, %v1278
          %v1295 = vsub.f32 0.0, %v1279
          %v1296 = vsub.f32 0.0, %v1280
          %v1297 = vsub.f32 0.0, %v1281
          %v1298 = vsub.f32 0.0, %v1282
          %v1299 = vsub.f32 0.0, %v1283
          %v1300 = vmul.f32 %v1284, 1.442695
          %v1301 = vpow.pop %v1300
          %v1302 = vmul.f32 %v1285, 1.442695
          %v1303 = vpow.pop %v1302
          %v1304 = vmul.f32 %v1286, 1.442695
          %v1305 = vpow.pop %v1304
          %v1306 = vmul.f32 %v1287, 1.442695
          %v1307 = vpow.pop %v1306
          %v1308 = vmul.f32 %v1288, 1.442695
          %v1309 = vpow.pop %v1308
          %v1310 = vmul.f32 %v1289, 1.442695
          %v1311 = vpow.pop %v1310
          %v1312 = vmul.f32 %v1290, 1.442695
          %v1313 = vpow.pop %v1312
          %v1314 = vmul.f32 %v1291, 1.442695
          %v1315 = vpow.pop %v1314
          %v1316 = vmul.f32 %v1292, 1.442695
          %v1317 = vpow.pop %v1316
          %v1318 = vmul.f32 %v1293, 1.442695
          %v1319 = vpow.pop %v1318
          %v1320 = vmul.f32 %v1294, 1.442695
          %v1321 = vpow.pop %v1320
          %v1322 = vmul.f32 %v1295, 1.442695
          %v1323 = vpow.pop %v1322
          %v1324 = vmul.f32 %v1296, 1.442695
          %v1325 = vpow.pop %v1324
          %v1326 = vmul.f32 %v1297, 1.442695
          %v1327 = vpow.pop %v1326
          %v1328 = vmul.f32 %v1298, 1.442695
          %v1329 = vpow.pop %v1328
          %v1330 = vmul.f32 %v1299, 1.442695
          %v1331 = vpow.pop %v1330
          %v1332 = vadd.f32 %v1301, 1.0
          %v1333 = vadd.f32 %v1303, 1.0
          %v1334 = vadd.f32 %v1305, 1.0
          %v1335 = vadd.f32 %v1307, 1.0
          %v1336 = vadd.f32 %v1309, 1.0
          %v1337 = vadd.f32 %v1311, 1.0
          %v1338 = vadd.f32 %v1313, 1.0
          %v1339 = vadd.f32 %v1315, 1.0
          %v1340 = vadd.f32 %v1317, 1.0
          %v1341 = vadd.f32 %v1319, 1.0
          %v1342 = vadd.f32 %v1321, 1.0
          %v1343 = vadd.f32 %v1323, 1.0
          %v1344 = vadd.f32 %v1325, 1.0
          %v1345 = vadd.f32 %v1327, 1.0
          %v1346 = vadd.f32 %v1329, 1.0
          %v1347 = vadd.f32 %v1331, 1.0
          %v1348 = vlog2.pop %v1332
          %v1349 = vmul.f32 %v1348, 0.6931472
          %v1350 = vlog2.pop %v1333
          %v1351 = vmul.f32 %v1350, 0.6931472
          %v1352 = vlog2.pop %v1334
          %v1353 = vmul.f32 %v1352, 0.6931472
          %v1354 = vlog2.pop %v1335
          %v1355 = vmul.f32 %v1354, 0.6931472
          %v1356 = vlog2.pop %v1336
          %v1357 = vmul.f32 %v1356, 0.6931472
          %v1358 = vlog2.pop %v1337
          %v1359 = vmul.f32 %v1358, 0.6931472
          %v1360 = vlog2.pop %v1338
          %v1361 = vmul.f32 %v1360, 0.6931472
          %v1362 = vlog2.pop %v1339
          %v1363 = vmul.f32 %v1362, 0.6931472
          %v1364 = vlog2.pop %v1340
          %v1365 = vmul.f32 %v1364, 0.6931472
          %v1366 = vlog2.pop %v1341
          %v1367 = vmul.f32 %v1366, 0.6931472
          %v1368 = vlog2.pop %v1342
          %v1369 = vmul.f32 %v1368, 0.6931472
          %v1370 = vlog2.pop %v1343
          %v1371 = vmul.f32 %v1370, 0.6931472
          %v1372 = vlog2.pop %v1344
          %v1373 = vmul.f32 %v1372, 0.6931472
          %v1374 = vlog2.pop %v1345
          %v1375 = vmul.f32 %v1374, 0.6931472
          %v1376 = vlog2.pop %v1346
          %v1377 = vmul.f32 %v1376, 0.6931472
          %v1378 = vlog2.pop %v1347
          %v1379 = vmul.f32 %v1378, 0.6931472
          %v1380 = vadd.f32 %v1252, %v1349
          %v1381 = vadd.f32 %v1253, %v1351
          %v1382 = vadd.f32 %v1254, %v1353
          %v1383 = vadd.f32 %v1255, %v1355
          %v1384 = vadd.f32 %v1256, %v1357
          %v1385 = vadd.f32 %v1257, %v1359
          %v1386 = vadd.f32 %v1258, %v1361
          %v1387 = vadd.f32 %v1259, %v1363
          %v1388 = vadd.f32 %v1260, %v1365
          %v1389 = vadd.f32 %v1261, %v1367
          %v1390 = vadd.f32 %v1262, %v1369
          %v1391 = vadd.f32 %v1263, %v1371
          %v1392 = vadd.f32 %v1264, %v1373
          %v1393 = vadd.f32 %v1265, %v1375
          %v1394 = vadd.f32 %v1266, %v1377
          %v1395 = vadd.f32 %v1267, %v1379
          %v1396 = vld [vmem:[%s525] sm:$0xf]
          %v1397 = vld [vmem:[%s525 + $0x4] sm:$0xf]
          %v1398 = vld [vmem:[%s525 + $0x8] sm:$0xf]
          %v1399 = vld [vmem:[%s525 + $0xc] sm:$0xf]
          %v1400 = vld [vmem:[%s525 + $0x10] sm:$0xf]
          %v1401 = vld [vmem:[%s525 + $0x14] sm:$0xf]
          %v1402 = vld [vmem:[%s525 + $0x18] sm:$0xf]
          %v1403 = vld [vmem:[%s525 + $0x1c] sm:$0xf]
          %v1404 = vld [vmem:[%s525 + $0x20] sm:$0xf]
          %v1405 = vld [vmem:[%s525 + $0x24] sm:$0xf]
          %v1406 = vld [vmem:[%s525 + $0x28] sm:$0xf]
          %v1407 = vld [vmem:[%s525 + $0x2c] sm:$0xf]
          %v1408 = vld [vmem:[%s525 + $0x30] sm:$0xf]
          %v1409 = vld [vmem:[%s525 + $0x34] sm:$0xf]
          %v1410 = vld [vmem:[%s525 + $0x38] sm:$0xf]
          %v1411 = vld [vmem:[%s525 + $0x3c] sm:$0xf]
          %v1412 = vunpack.c.l.bf16 %v1396
          %v1413 = vunpack.c.l.bf16 %v1397
          %v1414 = vunpack.c.l.bf16 %v1398
          %v1415 = vunpack.c.l.bf16 %v1399
          %v1416 = vunpack.c.l.bf16 %v1400
          %v1417 = vunpack.c.l.bf16 %v1401
          %v1418 = vunpack.c.l.bf16 %v1402
          %v1419 = vunpack.c.l.bf16 %v1403
          %v1420 = vunpack.c.l.bf16 %v1404
          %v1421 = vunpack.c.l.bf16 %v1405
          %v1422 = vunpack.c.l.bf16 %v1406
          %v1423 = vunpack.c.l.bf16 %v1407
          %v1424 = vunpack.c.l.bf16 %v1408
          %v1425 = vunpack.c.l.bf16 %v1409
          %v1426 = vunpack.c.l.bf16 %v1410
          %v1427 = vunpack.c.l.bf16 %v1411
          %v1428 = vsub.f32 %v1106, %v1412
          %v1429 = vsub.f32 %v1107, %v1413
          %v1430 = vsub.f32 %v1108, %v1414
          %v1431 = vsub.f32 %v1109, %v1415
          %v1432 = vsub.f32 %v1110, %v1416
          %v1433 = vsub.f32 %v1111, %v1417
          %v1434 = vsub.f32 %v1112, %v1418
          %v1435 = vsub.f32 %v1113, %v1419
          %v1436 = vsub.f32 %v1114, %v1420
          %v1437 = vsub.f32 %v1115, %v1421
          %v1438 = vsub.f32 %v1116, %v1422
          %v1439 = vsub.f32 %v1117, %v1423
          %v1440 = vsub.f32 %v1118, %v1424
          %v1441 = vsub.f32 %v1119, %v1425
          %v1442 = vsub.f32 %v1120, %v1426
          %v1443 = vsub.f32 %v1121, %v1427
          %v1444 = vadd.f32 %v1380, 1e-10
          %v1445 = vadd.f32 %v1381, 1e-10
          %v1446 = vadd.f32 %v1382, 1e-10
          %v1447 = vadd.f32 %v1383, 1e-10
          %v1448 = vadd.f32 %v1384, 1e-10
          %v1449 = vadd.f32 %v1385, 1e-10
          %v1450 = vadd.f32 %v1386, 1e-10
          %v1451 = vadd.f32 %v1387, 1e-10
          %v1452 = vadd.f32 %v1388, 1e-10
          %v1453 = vadd.f32 %v1389, 1e-10
          %v1454 = vadd.f32 %v1390, 1e-10
          %v1455 = vadd.f32 %v1391, 1e-10
          %v1456 = vadd.f32 %v1392, 1e-10
          %v1457 = vadd.f32 %v1393, 1e-10
          %v1458 = vadd.f32 %v1394, 1e-10
          %v1459 = vadd.f32 %v1395, 1e-10
          %v1460 = vlog2.pop %v1444
          %v1461 = vmul.f32 %v1460, 0.6931472
          %v1462 = vlog2.pop %v1445
          %v1463 = vmul.f32 %v1462, 0.6931472
          %v1464 = vlog2.pop %v1446
          %v1465 = vmul.f32 %v1464, 0.6931472
          %v1466 = vlog2.pop %v1447
          %v1467 = vmul.f32 %v1466, 0.6931472
          %v1468 = vlog2.pop %v1448
          %v1469 = vmul.f32 %v1468, 0.6931472
          %v1470 = vlog2.pop %v1449
          %v1471 = vmul.f32 %v1470, 0.6931472
          %v1472 = vlog2.pop %v1450
          %v1473 = vmul.f32 %v1472, 0.6931472
          %v1474 = vlog2.pop %v1451
          %v1475 = vmul.f32 %v1474, 0.6931472
          %v1476 = vlog2.pop %v1452
          %v1477 = vmul.f32 %v1476, 0.6931472
          %v1478 = vlog2.pop %v1453
          %v1479 = vmul.f32 %v1478, 0.6931472
          %v1480 = vlog2.pop %v1454
          %v1481 = vmul.f32 %v1480, 0.6931472
          %v1482 = vlog2.pop %v1455
          %v1483 = vmul.f32 %v1482, 0.6931472
          %v1484 = vlog2.pop %v1456
          %v1485 = vmul.f32 %v1484, 0.6931472
          %v1486 = vlog2.pop %v1457
          %v1487 = vmul.f32 %v1486, 0.6931472
          %v1488 = vlog2.pop %v1458
          %v1489 = vmul.f32 %v1488, 0.6931472
          %v1490 = vlog2.pop %v1459
          %v1491 = vmul.f32 %v1490, 0.6931472
          %v1492 = vsub.f32 0.0, %v1461
          %v1493 = vsub.f32 0.0, %v1463
          %v1494 = vsub.f32 0.0, %v1465
          %v1495 = vsub.f32 0.0, %v1467
          %v1496 = vsub.f32 0.0, %v1469
          %v1497 = vsub.f32 0.0, %v1471
          %v1498 = vsub.f32 0.0, %v1473
          %v1499 = vsub.f32 0.0, %v1475
          %v1500 = vsub.f32 0.0, %v1477
          %v1501 = vsub.f32 0.0, %v1479
          %v1502 = vsub.f32 0.0, %v1481
          %v1503 = vsub.f32 0.0, %v1483
          %v1504 = vsub.f32 0.0, %v1485
          %v1505 = vsub.f32 0.0, %v1487
          %v1506 = vsub.f32 0.0, %v1489
          %v1507 = vsub.f32 0.0, %v1491
          %v1508 = vmul.f32 %v1428, %v1428
          %v1509 = vmul.f32 %v1429, %v1429
          %v1510 = vmul.f32 %v1430, %v1430
          %v1511 = vmul.f32 %v1431, %v1431
          %v1512 = vmul.f32 %v1432, %v1432
          %v1513 = vmul.f32 %v1433, %v1433
          %v1514 = vmul.f32 %v1434, %v1434
          %v1515 = vmul.f32 %v1435, %v1435
          %v1516 = vmul.f32 %v1436, %v1436
          %v1517 = vmul.f32 %v1437, %v1437
          %v1518 = vmul.f32 %v1438, %v1438
          %v1519 = vmul.f32 %v1439, %v1439
          %v1520 = vmul.f32 %v1440, %v1440
          %v1521 = vmul.f32 %v1441, %v1441
          %v1522 = vmul.f32 %v1442, %v1442
          %v1523 = vmul.f32 %v1443, %v1443
          %v1524 = vmul.f32 %v1380, 2.0
          %v1525 = vmul.f32 %v1381, 2.0
          %v1526 = vmul.f32 %v1382, 2.0
          %v1527 = vmul.f32 %v1383, 2.0
          %v1528 = vmul.f32 %v1384, 2.0
          %v1529 = vmul.f32 %v1385, 2.0
          %v1530 = vmul.f32 %v1386, 2.0
          %v1531 = vmul.f32 %v1387, 2.0
          %v1532 = vmul.f32 %v1388, 2.0
          %v1533 = vmul.f32 %v1389, 2.0
          %v1534 = vmul.f32 %v1390, 2.0
          %v1535 = vmul.f32 %v1391, 2.0
          %v1536 = vmul.f32 %v1392, 2.0
          %v1537 = vmul.f32 %v1393, 2.0
          %v1538 = vmul.f32 %v1394, 2.0
          %v1539 = vmul.f32 %v1395, 2.0
          %v1540 = vmul.f32 %v1524, %v1380
          %v1541 = vmul.f32 %v1525, %v1381
          %v1542 = vmul.f32 %v1526, %v1382
          %v1543 = vmul.f32 %v1527, %v1383
          %v1544 = vmul.f32 %v1528, %v1384
          %v1545 = vmul.f32 %v1529, %v1385
          %v1546 = vmul.f32 %v1530, %v1386
          %v1547 = vmul.f32 %v1531, %v1387
          %v1548 = vmul.f32 %v1532, %v1388
          %v1549 = vmul.f32 %v1533, %v1389
          %v1550 = vmul.f32 %v1534, %v1390
          %v1551 = vmul.f32 %v1535, %v1391
          %v1552 = vmul.f32 %v1536, %v1392
          %v1553 = vmul.f32 %v1537, %v1393
          %v1554 = vmul.f32 %v1538, %v1394
          %v1555 = vmul.f32 %v1539, %v1395
          %v1556 = vrcp.pop %v1540
          %v1557 = vmul.f32 %v1508, %v1556
          %v1558 = vrcp.pop %v1541
          %v1559 = vmul.f32 %v1509, %v1558
          %v1560 = vrcp.pop %v1542
          %v1561 = vmul.f32 %v1510, %v1560
          %v1562 = vrcp.pop %v1543
          %v1563 = vmul.f32 %v1511, %v1562
          %v1564 = vrcp.pop %v1544
          %v1565 = vmul.f32 %v1512, %v1564
          %v1566 = vrcp.pop %v1545
          %v1567 = vmul.f32 %v1513, %v1566
          %v1568 = vrcp.pop %v1546
          %v1569 = vmul.f32 %v1514, %v1568
          %v1570 = vrcp.pop %v1547
          %v1571 = vmul.f32 %v1515, %v1570
          %v1572 = vrcp.pop %v1548
          %v1573 = vmul.f32 %v1516, %v1572
          %v1574 = vrcp.pop %v1549
          %v1575 = vmul.f32 %v1517, %v1574
          %v1576 = vrcp.pop %v1550
          %v1577 = vmul.f32 %v1518, %v1576
          %v1578 = vrcp.pop %v1551
          %v1579 = vmul.f32 %v1519, %v1578
          %v1580 = vrcp.pop %v1552
          %v1581 = vmul.f32 %v1520, %v1580
          %v1582 = vrcp.pop %v1553
          %v1583 = vmul.f32 %v1521, %v1582
          %v1584 = vrcp.pop %v1554
          %v1585 = vmul.f32 %v1522, %v1584
          %v1586 = vrcp.pop %v1555
          %v1587 = vmul.f32 %v1523, %v1586
          %v1588 = vsub.f32 %v1492, %v1557
          %v1589 = vsub.f32 %v1493, %v1559
          %v1590 = vsub.f32 %v1494, %v1561
          %v1591 = vsub.f32 %v1495, %v1563
          %v1592 = vsub.f32 %v1496, %v1565
          %v1593 = vsub.f32 %v1497, %v1567
          %v1594 = vsub.f32 %v1498, %v1569
          %v1595 = vsub.f32 %v1499, %v1571
          %v1596 = vsub.f32 %v1500, %v1573
          %v1597 = vsub.f32 %v1501, %v1575
          %v1598 = vsub.f32 %v1502, %v1577
          %v1599 = vsub.f32 %v1503, %v1579
          %v1600 = vsub.f32 %v1504, %v1581
          %v1601 = vsub.f32 %v1505, %v1583
          %v1602 = vsub.f32 %v1506, %v1585
          %v1603 = vsub.f32 %v1507, %v1587
          %v1604 = vadd.f32 %v1588, %v1589
          %v1605 = vadd.f32 %v1604, %v1590
          %v1606 = vadd.f32 %v1605, %v1591
          %v1607 = vadd.f32 %v1606, %v1592
          %v1608 = vadd.f32 %v1607, %v1593
          %v1609 = vadd.f32 %v1608, %v1594
          %v1610 = vadd.f32 %v1609, %v1595
          %v1611 = vadd.f32 %v1610, %v1596
          %v1612 = vadd.f32 %v1611, %v1597
          %v1613 = vadd.f32 %v1612, %v1598
          %v1614 = vadd.f32 %v1613, %v1599
          %v1615 = vadd.f32 %v1614, %v1600
          %v1616 = vadd.f32 %v1615, %v1601
          %v1617 = vadd.f32 %v1616, %v1602
          %v1618 = vadd.f32 %v1617, %v1603
          %1619 = vadd.xlane.f32.xlu0 %v1618
          %v1620 = vpop.xlane.xlu0 %1619
          %v1621 = vrot.slane %v1620, 4
          %v1622 = vadd.f32 %v1620, %v1621
          %v1623 = vrot.slane %v1622, 2
          %v1624 = vadd.f32 %v1622, %v1623
          %v1625 = vrot.slane %v1624, 1
          %v1626 = vadd.f32 %v1624, %v1625
          %s1627 = vtos %v1626
          %s1628 = sadd.f32 %s1627, 0.0
          %v1629 = vstv %s1179
          %v1630 = vsub.f32 %v1380, %v1629
          %v1631 = vsub.f32 %v1381, %v1629
          %v1632 = vsub.f32 %v1382, %v1629
          %v1633 = vsub.f32 %v1383, %v1629
          %v1634 = vsub.f32 %v1384, %v1629
          %v1635 = vsub.f32 %v1385, %v1629
          %v1636 = vsub.f32 %v1386, %v1629
          %v1637 = vsub.f32 %v1387, %v1629
          %v1638 = vsub.f32 %v1388, %v1629
          %v1639 = vsub.f32 %v1389, %v1629
          %v1640 = vsub.f32 %v1390, %v1629
          %v1641 = vsub.f32 %v1391, %v1629
          %v1642 = vsub.f32 %v1392, %v1629
          %v1643 = vsub.f32 %v1393, %v1629
          %v1644 = vsub.f32 %v1394, %v1629
          %v1645 = vsub.f32 %v1395, %v1629
          %v1646 = vadd.f32 %v1630, %v1631
          %v1647 = vadd.f32 %v1646, %v1632
          %v1648 = vadd.f32 %v1647, %v1633
          %v1649 = vadd.f32 %v1648, %v1634
          %v1650 = vadd.f32 %v1649, %v1635
          %v1651 = vadd.f32 %v1650, %v1636
          %v1652 = vadd.f32 %v1651, %v1637
          %v1653 = vadd.f32 %v1652, %v1638
          %v1654 = vadd.f32 %v1653, %v1639
          %v1655 = vadd.f32 %v1654, %v1640
          %v1656 = vadd.f32 %v1655, %v1641
          %v1657 = vadd.f32 %v1656, %v1642
          %v1658 = vadd.f32 %v1657, %v1643
          %v1659 = vadd.f32 %v1658, %v1644
          %v1660 = vadd.f32 %v1659, %v1645
          %1661 = vadd.xlane.f32.xlu0 %v1660
          %v1662 = vpop.xlane.xlu0 %1661
          %v1663 = vrot.slane %v1662, 4
          %v1664 = vadd.f32 %v1662, %v1663
          %v1665 = vrot.slane %v1664, 2
          %v1666 = vadd.f32 %v1664, %v1665
          %v1667 = vrot.slane %v1666, 1
          %v1668 = vadd.f32 %v1666, %v1667
          %s1669 = vtos %v1668
          %s1670 = sadd.f32 %s1669, 0.0
          %v1671 = vmul.f32 %v1630, %v1630
          %v1672 = vmul.f32 %v1631, %v1631
          %v1673 = vmul.f32 %v1632, %v1632
          %v1674 = vmul.f32 %v1633, %v1633
          %v1675 = vmul.f32 %v1634, %v1634
          %v1676 = vmul.f32 %v1635, %v1635
          %v1677 = vmul.f32 %v1636, %v1636
          %v1678 = vmul.f32 %v1637, %v1637
          %v1679 = vmul.f32 %v1638, %v1638
          %v1680 = vmul.f32 %v1639, %v1639
          %v1681 = vmul.f32 %v1640, %v1640
          %v1682 = vmul.f32 %v1641, %v1641
          %v1683 = vmul.f32 %v1642, %v1642
          %v1684 = vmul.f32 %v1643, %v1643
          %v1685 = vmul.f32 %v1644, %v1644
          %v1686 = vmul.f32 %v1645, %v1645
          %v1687 = vadd.f32 %v1671, %v1672
          %v1688 = vadd.f32 %v1687, %v1673
          %v1689 = vadd.f32 %v1688, %v1674
          %v1690 = vadd.f32 %v1689, %v1675
          %v1691 = vadd.f32 %v1690, %v1676
          %v1692 = vadd.f32 %v1691, %v1677
          %v1693 = vadd.f32 %v1692, %v1678
          %v1694 = vadd.f32 %v1693, %v1679
          %v1695 = vadd.f32 %v1694, %v1680
          %v1696 = vadd.f32 %v1695, %v1681
          %v1697 = vadd.f32 %v1696, %v1682
          %v1698 = vadd.f32 %v1697, %v1683
          %v1699 = vadd.f32 %v1698, %v1684
          %v1700 = vadd.f32 %v1699, %v1685
          %v1701 = vadd.f32 %v1700, %v1686
          %1702 = vadd.xlane.f32.xlu0 %v1701
          %v1703 = vpop.xlane.xlu0 %1702
          %v1704 = vrot.slane %v1703, 4
          %v1705 = vadd.f32 %v1703, %v1704
          %v1706 = vrot.slane %v1705, 2
          %v1707 = vadd.f32 %v1705, %v1706
          %v1708 = vrot.slane %v1707, 1
          %v1709 = vadd.f32 %v1707, %v1708
          %s1710 = vtos %v1709
          %s1711 = sadd.f32 %s1710, 0.0
          %v1712 = vld [vmem:[%s763] sm:$0xf]
          %v1713 = vld [vmem:[%s763 + $0x4] sm:$0xf]
          %v1714 = vld [vmem:[%s763 + $0x8] sm:$0xf]
          %v1715 = vld [vmem:[%s763 + $0xc] sm:$0xf]
          %v1716 = vld [vmem:[%s763 + $0x10] sm:$0xf]
          %v1717 = vld [vmem:[%s763 + $0x14] sm:$0xf]
          %v1718 = vld [vmem:[%s763 + $0x18] sm:$0xf]
          %v1719 = vld [vmem:[%s763 + $0x1c] sm:$0xf]
          %v1720 = vld [vmem:[%s763 + $0x20] sm:$0xf]
          %v1721 = vld [vmem:[%s763 + $0x24] sm:$0xf]
          %v1722 = vld [vmem:[%s763 + $0x28] sm:$0xf]
          %v1723 = vld [vmem:[%s763 + $0x2c] sm:$0xf]
          %v1724 = vld [vmem:[%s763 + $0x30] sm:$0xf]
          %v1725 = vld [vmem:[%s763 + $0x34] sm:$0xf]
          %v1726 = vld [vmem:[%s763 + $0x38] sm:$0xf]
          %v1727 = vld [vmem:[%s763 + $0x3c] sm:$0xf]
          %v1728 = vunpack.c.l.bf16 %v1712
          %v1729 = vunpack.c.l.bf16 %v1713
          %v1730 = vunpack.c.l.bf16 %v1714
          %v1731 = vunpack.c.l.bf16 %v1715
          %v1732 = vunpack.c.l.bf16 %v1716
          %v1733 = vunpack.c.l.bf16 %v1717
          %v1734 = vunpack.c.l.bf16 %v1718
          %v1735 = vunpack.c.l.bf16 %v1719
          %v1736 = vunpack.c.l.bf16 %v1720
          %v1737 = vunpack.c.l.bf16 %v1721
          %v1738 = vunpack.c.l.bf16 %v1722
          %v1739 = vunpack.c.l.bf16 %v1723
          %v1740 = vunpack.c.l.bf16 %v1724
          %v1741 = vunpack.c.l.bf16 %v1725
          %v1742 = vunpack.c.l.bf16 %v1726
          %v1743 = vunpack.c.l.bf16 %v1727
          %v1744 = vmax.f32 %v1728, 0.0
          %v1745 = vmax.f32 %v1729, 0.0
          %v1746 = vmax.f32 %v1730, 0.0
          %v1747 = vmax.f32 %v1731, 0.0
          %v1748 = vmax.f32 %v1732, 0.0
          %v1749 = vmax.f32 %v1733, 0.0
          %v1750 = vmax.f32 %v1734, 0.0
          %v1751 = vmax.f32 %v1735, 0.0
          %v1752 = vmax.f32 %v1736, 0.0
          %v1753 = vmax.f32 %v1737, 0.0
          %v1754 = vmax.f32 %v1738, 0.0
          %v1755 = vmax.f32 %v1739, 0.0
          %v1756 = vmax.f32 %v1740, 0.0
          %v1757 = vmax.f32 %v1741, 0.0
          %v1758 = vmax.f32 %v1742, 0.0
          %v1759 = vmax.f32 %v1743, 0.0
          %v1760 = vand.u32 2147483647, %v1728
          %v1761 = vand.u32 2147483647, %v1729
          %v1762 = vand.u32 2147483647, %v1730
          %v1763 = vand.u32 2147483647, %v1731
          %v1764 = vand.u32 2147483647, %v1732
          %v1765 = vand.u32 2147483647, %v1733
          %v1766 = vand.u32 2147483647, %v1734
          %v1767 = vand.u32 2147483647, %v1735
          %v1768 = vand.u32 2147483647, %v1736
          %v1769 = vand.u32 2147483647, %v1737
          %v1770 = vand.u32 2147483647, %v1738
          %v1771 = vand.u32 2147483647, %v1739
          %v1772 = vand.u32 2147483647, %v1740
          %v1773 = vand.u32 2147483647, %v1741
          %v1774 = vand.u32 2147483647, %v1742
          %v1775 = vand.u32 2147483647, %v1743
          %v1776 = vsub.f32 0.0, %v1760
          %v1777 = vsub.f32 0.0, %v1761
          %v1778 = vsub.f32 0.0, %v1762
          %v1779 = vsub.f32 0.0, %v1763
          %v1780 = vsub.f32 0.0, %v1764
          %v1781 = vsub.f32 0.0, %v1765
          %v1782 = vsub.f32 0.0, %v1766
          %v1783 = vsub.f32 0.0, %v1767
          %v1784 = vsub.f32 0.0, %v1768
          %v1785 = vsub.f32 0.0, %v1769
          %v1786 = vsub.f32 0.0, %v1770
          %v1787 = vsub.f32 0.0, %v1771
          %v1788 = vsub.f32 0.0, %v1772
          %v1789 = vsub.f32 0.0, %v1773
          %v1790 = vsub.f32 0.0, %v1774
          %v1791 = vsub.f32 0.0, %v1775
          %v1792 = vmul.f32 %v1776, 1.442695
          %v1793 = vpow.pop %v1792
          %v1794 = vmul.f32 %v1777, 1.442695
          %v1795 = vpow.pop %v1794
          %v1796 = vmul.f32 %v1778, 1.442695
          %v1797 = vpow.pop %v1796
          %v1798 = vmul.f32 %v1779, 1.442695
          %v1799 = vpow.pop %v1798
          %v1800 = vmul.f32 %v1780, 1.442695
          %v1801 = vpow.pop %v1800
          %v1802 = vmul.f32 %v1781, 1.442695
          %v1803 = vpow.pop %v1802
          %v1804 = vmul.f32 %v1782, 1.442695
          %v1805 = vpow.pop %v1804
          %v1806 = vmul.f32 %v1783, 1.442695
          %v1807 = vpow.pop %v1806
          %v1808 = vmul.f32 %v1784, 1.442695
          %v1809 = vpow.pop %v1808
          %v1810 = vmul.f32 %v1785, 1.442695
          %v1811 = vpow.pop %v1810
          %v1812 = vmul.f32 %v1786, 1.442695
          %v1813 = vpow.pop %v1812
          %v1814 = vmul.f32 %v1787, 1.442695
          %v1815 = vpow.pop %v1814
          %v1816 = vmul.f32 %v1788, 1.442695
          %v1817 = vpow.pop %v1816
          %v1818 = vmul.f32 %v1789, 1.442695
          %v1819 = vpow.pop %v1818
          %v1820 = vmul.f32 %v1790, 1.442695
          %v1821 = vpow.pop %v1820
          %v1822 = vmul.f32 %v1791, 1.442695
          %v1823 = vpow.pop %v1822
          %v1824 = vadd.f32 %v1793, 1.0
          %v1825 = vadd.f32 %v1795, 1.0
          %v1826 = vadd.f32 %v1797, 1.0
          %v1827 = vadd.f32 %v1799, 1.0
          %v1828 = vadd.f32 %v1801, 1.0
          %v1829 = vadd.f32 %v1803, 1.0
          %v1830 = vadd.f32 %v1805, 1.0
          %v1831 = vadd.f32 %v1807, 1.0
          %v1832 = vadd.f32 %v1809, 1.0
          %v1833 = vadd.f32 %v1811, 1.0
          %v1834 = vadd.f32 %v1813, 1.0
          %v1835 = vadd.f32 %v1815, 1.0
          %v1836 = vadd.f32 %v1817, 1.0
          %v1837 = vadd.f32 %v1819, 1.0
          %v1838 = vadd.f32 %v1821, 1.0
          %v1839 = vadd.f32 %v1823, 1.0
          %v1840 = vlog2.pop %v1824
          %v1841 = vmul.f32 %v1840, 0.6931472
          %v1842 = vlog2.pop %v1825
          %v1843 = vmul.f32 %v1842, 0.6931472
          %v1844 = vlog2.pop %v1826
          %v1845 = vmul.f32 %v1844, 0.6931472
          %v1846 = vlog2.pop %v1827
          %v1847 = vmul.f32 %v1846, 0.6931472
          %v1848 = vlog2.pop %v1828
          %v1849 = vmul.f32 %v1848, 0.6931472
          %v1850 = vlog2.pop %v1829
          %v1851 = vmul.f32 %v1850, 0.6931472
          %v1852 = vlog2.pop %v1830
          %v1853 = vmul.f32 %v1852, 0.6931472
          %v1854 = vlog2.pop %v1831
          %v1855 = vmul.f32 %v1854, 0.6931472
          %v1856 = vlog2.pop %v1832
          %v1857 = vmul.f32 %v1856, 0.6931472
          %v1858 = vlog2.pop %v1833
          %v1859 = vmul.f32 %v1858, 0.6931472
          %v1860 = vlog2.pop %v1834
          %v1861 = vmul.f32 %v1860, 0.6931472
          %v1862 = vlog2.pop %v1835
          %v1863 = vmul.f32 %v1862, 0.6931472
          %v1864 = vlog2.pop %v1836
          %v1865 = vmul.f32 %v1864, 0.6931472
          %v1866 = vlog2.pop %v1837
          %v1867 = vmul.f32 %v1866, 0.6931472
          %v1868 = vlog2.pop %v1838
          %v1869 = vmul.f32 %v1868, 0.6931472
          %v1870 = vlog2.pop %v1839
          %v1871 = vmul.f32 %v1870, 0.6931472
          %v1872 = vadd.f32 %v1744, %v1841
          %v1873 = vadd.f32 %v1745, %v1843
          %v1874 = vadd.f32 %v1746, %v1845
          %v1875 = vadd.f32 %v1747, %v1847
          %v1876 = vadd.f32 %v1748, %v1849
          %v1877 = vadd.f32 %v1749, %v1851
          %v1878 = vadd.f32 %v1750, %v1853
          %v1879 = vadd.f32 %v1751, %v1855
          %v1880 = vadd.f32 %v1752, %v1857
          %v1881 = vadd.f32 %v1753, %v1859
          %v1882 = vadd.f32 %v1754, %v1861
          %v1883 = vadd.f32 %v1755, %v1863
          %v1884 = vadd.f32 %v1756, %v1865
          %v1885 = vadd.f32 %v1757, %v1867
          %v1886 = vadd.f32 %v1758, %v1869
          %v1887 = vadd.f32 %v1759, %v1871
          %v1888 = vld [vmem:[%s711] sm:$0xf]
          %v1889 = vld [vmem:[%s711 + $0x4] sm:$0xf]
          %v1890 = vld [vmem:[%s711 + $0x8] sm:$0xf]
          %v1891 = vld [vmem:[%s711 + $0xc] sm:$0xf]
          %v1892 = vld [vmem:[%s711 + $0x10] sm:$0xf]
          %v1893 = vld [vmem:[%s711 + $0x14] sm:$0xf]
          %v1894 = vld [vmem:[%s711 + $0x18] sm:$0xf]
          %v1895 = vld [vmem:[%s711 + $0x1c] sm:$0xf]
          %v1896 = vld [vmem:[%s711 + $0x20] sm:$0xf]
          %v1897 = vld [vmem:[%s711 + $0x24] sm:$0xf]
          %v1898 = vld [vmem:[%s711 + $0x28] sm:$0xf]
          %v1899 = vld [vmem:[%s711 + $0x2c] sm:$0xf]
          %v1900 = vld [vmem:[%s711 + $0x30] sm:$0xf]
          %v1901 = vld [vmem:[%s711 + $0x34] sm:$0xf]
          %v1902 = vld [vmem:[%s711 + $0x38] sm:$0xf]
          %v1903 = vld [vmem:[%s711 + $0x3c] sm:$0xf]
          %v1904 = vunpack.c.l.bf16 %v1888
          %v1905 = vunpack.c.l.bf16 %v1889
          %v1906 = vunpack.c.l.bf16 %v1890
          %v1907 = vunpack.c.l.bf16 %v1891
          %v1908 = vunpack.c.l.bf16 %v1892
          %v1909 = vunpack.c.l.bf16 %v1893
          %v1910 = vunpack.c.l.bf16 %v1894
          %v1911 = vunpack.c.l.bf16 %v1895
          %v1912 = vunpack.c.l.bf16 %v1896
          %v1913 = vunpack.c.l.bf16 %v1897
          %v1914 = vunpack.c.l.bf16 %v1898
          %v1915 = vunpack.c.l.bf16 %v1899
          %v1916 = vunpack.c.l.bf16 %v1900
          %v1917 = vunpack.c.l.bf16 %v1901
          %v1918 = vunpack.c.l.bf16 %v1902
          %v1919 = vunpack.c.l.bf16 %v1903
          %v1920 = vsub.f32 %v1106, %v1904
          %v1921 = vsub.f32 %v1107, %v1905
          %v1922 = vsub.f32 %v1108, %v1906
          %v1923 = vsub.f32 %v1109, %v1907
          %v1924 = vsub.f32 %v1110, %v1908
          %v1925 = vsub.f32 %v1111, %v1909
          %v1926 = vsub.f32 %v1112, %v1910
          %v1927 = vsub.f32 %v1113, %v1911
          %v1928 = vsub.f32 %v1114, %v1912
          %v1929 = vsub.f32 %v1115, %v1913
          %v1930 = vsub.f32 %v1116, %v1914
          %v1931 = vsub.f32 %v1117, %v1915
          %v1932 = vsub.f32 %v1118, %v1916
          %v1933 = vsub.f32 %v1119, %v1917
          %v1934 = vsub.f32 %v1120, %v1918
          %v1935 = vsub.f32 %v1121, %v1919
          %v1936 = vadd.f32 %v1872, 1e-10
          %v1937 = vadd.f32 %v1873, 1e-10
          %v1938 = vadd.f32 %v1874, 1e-10
          %v1939 = vadd.f32 %v1875, 1e-10
          %v1940 = vadd.f32 %v1876, 1e-10
          %v1941 = vadd.f32 %v1877, 1e-10
          %v1942 = vadd.f32 %v1878, 1e-10
          %v1943 = vadd.f32 %v1879, 1e-10
          %v1944 = vadd.f32 %v1880, 1e-10
          %v1945 = vadd.f32 %v1881, 1e-10
          %v1946 = vadd.f32 %v1882, 1e-10
          %v1947 = vadd.f32 %v1883, 1e-10
          %v1948 = vadd.f32 %v1884, 1e-10
          %v1949 = vadd.f32 %v1885, 1e-10
          %v1950 = vadd.f32 %v1886, 1e-10
          %v1951 = vadd.f32 %v1887, 1e-10
          %v1952 = vlog2.pop %v1936
          %v1953 = vmul.f32 %v1952, 0.6931472
          %v1954 = vlog2.pop %v1937
          %v1955 = vmul.f32 %v1954, 0.6931472
          %v1956 = vlog2.pop %v1938
          %v1957 = vmul.f32 %v1956, 0.6931472
          %v1958 = vlog2.pop %v1939
          %v1959 = vmul.f32 %v1958, 0.6931472
          %v1960 = vlog2.pop %v1940
          %v1961 = vmul.f32 %v1960, 0.6931472
          %v1962 = vlog2.pop %v1941
          %v1963 = vmul.f32 %v1962, 0.6931472
          %v1964 = vlog2.pop %v1942
          %v1965 = vmul.f32 %v1964, 0.6931472
          %v1966 = vlog2.pop %v1943
          %v1967 = vmul.f32 %v1966, 0.6931472
          %v1968 = vlog2.pop %v1944
          %v1969 = vmul.f32 %v1968, 0.6931472
          %v1970 = vlog2.pop %v1945
          %v1971 = vmul.f32 %v1970, 0.6931472
          %v1972 = vlog2.pop %v1946
          %v1973 = vmul.f32 %v1972, 0.6931472
          %v1974 = vlog2.pop %v1947
          %v1975 = vmul.f32 %v1974, 0.6931472
          %v1976 = vlog2.pop %v1948
          %v1977 = vmul.f32 %v1976, 0.6931472
          %v1978 = vlog2.pop %v1949
          %v1979 = vmul.f32 %v1978, 0.6931472
          %v1980 = vlog2.pop %v1950
          %v1981 = vmul.f32 %v1980, 0.6931472
          %v1982 = vlog2.pop %v1951
          %v1983 = vmul.f32 %v1982, 0.6931472
          %v1984 = vsub.f32 0.0, %v1953
          %v1985 = vsub.f32 0.0, %v1955
          %v1986 = vsub.f32 0.0, %v1957
          %v1987 = vsub.f32 0.0, %v1959
          %v1988 = vsub.f32 0.0, %v1961
          %v1989 = vsub.f32 0.0, %v1963
          %v1990 = vsub.f32 0.0, %v1965
          %v1991 = vsub.f32 0.0, %v1967
          %v1992 = vsub.f32 0.0, %v1969
          %v1993 = vsub.f32 0.0, %v1971
          %v1994 = vsub.f32 0.0, %v1973
          %v1995 = vsub.f32 0.0, %v1975
          %v1996 = vsub.f32 0.0, %v1977
          %v1997 = vsub.f32 0.0, %v1979
          %v1998 = vsub.f32 0.0, %v1981
          %v1999 = vsub.f32 0.0, %v1983
          %v2000 = vmul.f32 %v1920, %v1920
          %v2001 = vmul.f32 %v1921, %v1921
          %v2002 = vmul.f32 %v1922, %v1922
          %v2003 = vmul.f32 %v1923, %v1923
          %v2004 = vmul.f32 %v1924, %v1924
          %v2005 = vmul.f32 %v1925, %v1925
          %v2006 = vmul.f32 %v1926, %v1926
          %v2007 = vmul.f32 %v1927, %v1927
          %v2008 = vmul.f32 %v1928, %v1928
          %v2009 = vmul.f32 %v1929, %v1929
          %v2010 = vmul.f32 %v1930, %v1930
          %v2011 = vmul.f32 %v1931, %v1931
          %v2012 = vmul.f32 %v1932, %v1932
          %v2013 = vmul.f32 %v1933, %v1933
          %v2014 = vmul.f32 %v1934, %v1934
          %v2015 = vmul.f32 %v1935, %v1935
          %v2016 = vmul.f32 %v1872, 2.0
          %v2017 = vmul.f32 %v1873, 2.0
          %v2018 = vmul.f32 %v1874, 2.0
          %v2019 = vmul.f32 %v1875, 2.0
          %v2020 = vmul.f32 %v1876, 2.0
          %v2021 = vmul.f32 %v1877, 2.0
          %v2022 = vmul.f32 %v1878, 2.0
          %v2023 = vmul.f32 %v1879, 2.0
          %v2024 = vmul.f32 %v1880, 2.0
          %v2025 = vmul.f32 %v1881, 2.0
          %v2026 = vmul.f32 %v1882, 2.0
          %v2027 = vmul.f32 %v1883, 2.0
          %v2028 = vmul.f32 %v1884, 2.0
          %v2029 = vmul.f32 %v1885, 2.0
          %v2030 = vmul.f32 %v1886, 2.0
          %v2031 = vmul.f32 %v1887, 2.0
          %v2032 = vmul.f32 %v2016, %v1872
          %v2033 = vmul.f32 %v2017, %v1873
          %v2034 = vmul.f32 %v2018, %v1874
          %v2035 = vmul.f32 %v2019, %v1875
          %v2036 = vmul.f32 %v2020, %v1876
          %v2037 = vmul.f32 %v2021, %v1877
          %v2038 = vmul.f32 %v2022, %v1878
          %v2039 = vmul.f32 %v2023, %v1879
          %v2040 = vmul.f32 %v2024, %v1880
          %v2041 = vmul.f32 %v2025, %v1881
          %v2042 = vmul.f32 %v2026, %v1882
          %v2043 = vmul.f32 %v2027, %v1883
          %v2044 = vmul.f32 %v2028, %v1884
          %v2045 = vmul.f32 %v2029, %v1885
          %v2046 = vmul.f32 %v2030, %v1886
          %v2047 = vmul.f32 %v2031, %v1887
          %v2048 = vrcp.pop %v2032
          %v2049 = vmul.f32 %v2000, %v2048
          %v2050 = vrcp.pop %v2033
          %v2051 = vmul.f32 %v2001, %v2050
          %v2052 = vrcp.pop %v2034
          %v2053 = vmul.f32 %v2002, %v2052
          %v2054 = vrcp.pop %v2035
          %v2055 = vmul.f32 %v2003, %v2054
          %v2056 = vrcp.pop %v2036
          %v2057 = vmul.f32 %v2004, %v2056
          %v2058 = vrcp.pop %v2037
          %v2059 = vmul.f32 %v2005, %v2058
          %v2060 = vrcp.pop %v2038
          %v2061 = vmul.f32 %v2006, %v2060
          %v2062 = vrcp.pop %v2039
          %v2063 = vmul.f32 %v2007, %v2062
          %v2064 = vrcp.pop %v2040
          %v2065 = vmul.f32 %v2008, %v2064
          %v2066 = vrcp.pop %v2041
          %v2067 = vmul.f32 %v2009, %v2066
          %v2068 = vrcp.pop %v2042
          %v2069 = vmul.f32 %v2010, %v2068
          %v2070 = vrcp.pop %v2043
          %v2071 = vmul.f32 %v2011, %v2070
          %v2072 = vrcp.pop %v2044
          %v2073 = vmul.f32 %v2012, %v2072
          %v2074 = vrcp.pop %v2045
          %v2075 = vmul.f32 %v2013, %v2074
          %v2076 = vrcp.pop %v2046
          %v2077 = vmul.f32 %v2014, %v2076
          %v2078 = vrcp.pop %v2047
          %v2079 = vmul.f32 %v2015, %v2078
          %v2080 = vsub.f32 %v1984, %v2049
          %v2081 = vsub.f32 %v1985, %v2051
          %v2082 = vsub.f32 %v1986, %v2053
          %v2083 = vsub.f32 %v1987, %v2055
          %v2084 = vsub.f32 %v1988, %v2057
          %v2085 = vsub.f32 %v1989, %v2059
          %v2086 = vsub.f32 %v1990, %v2061
          %v2087 = vsub.f32 %v1991, %v2063
          %v2088 = vsub.f32 %v1992, %v2065
          %v2089 = vsub.f32 %v1993, %v2067
          %v2090 = vsub.f32 %v1994, %v2069
          %v2091 = vsub.f32 %v1995, %v2071
          %v2092 = vsub.f32 %v1996, %v2073
          %v2093 = vsub.f32 %v1997, %v2075
          %v2094 = vsub.f32 %v1998, %v2077
          %v2095 = vsub.f32 %v1999, %v2079
          %v2096 = vadd.f32 %v2080, %v2081
          %v2097 = vadd.f32 %v2096, %v2082
          %v2098 = vadd.f32 %v2097, %v2083
          %v2099 = vadd.f32 %v2098, %v2084
          %v2100 = vadd.f32 %v2099, %v2085
          %v2101 = vadd.f32 %v2100, %v2086
          %v2102 = vadd.f32 %v2101, %v2087
          %v2103 = vadd.f32 %v2102, %v2088
          %v2104 = vadd.f32 %v2103, %v2089
          %v2105 = vadd.f32 %v2104, %v2090
          %v2106 = vadd.f32 %v2105, %v2091
          %v2107 = vadd.f32 %v2106, %v2092
          %v2108 = vadd.f32 %v2107, %v2093
          %v2109 = vadd.f32 %v2108, %v2094
          %v2110 = vadd.f32 %v2109, %v2095
          %2111 = vadd.xlane.f32.xlu0 %v2110
          %v2112 = vpop.xlane.xlu0 %2111
          %v2113 = vrot.slane %v2112, 4
          %v2114 = vadd.f32 %v2112, %v2113
          %v2115 = vrot.slane %v2114, 2
          %v2116 = vadd.f32 %v2114, %v2115
          %v2117 = vrot.slane %v2116, 1
          %v2118 = vadd.f32 %v2116, %v2117
          %s2119 = vtos %v2118
          %s2120 = sadd.f32 %s1628, %s2119
          %v2121 = vsub.f32 %v1872, %v1629
          %v2122 = vsub.f32 %v1873, %v1629
          %v2123 = vsub.f32 %v1874, %v1629
          %v2124 = vsub.f32 %v1875, %v1629
          %v2125 = vsub.f32 %v1876, %v1629
          %v2126 = vsub.f32 %v1877, %v1629
          %v2127 = vsub.f32 %v1878, %v1629
          %v2128 = vsub.f32 %v1879, %v1629
          %v2129 = vsub.f32 %v1880, %v1629
          %v2130 = vsub.f32 %v1881, %v1629
          %v2131 = vsub.f32 %v1882, %v1629
          %v2132 = vsub.f32 %v1883, %v1629
          %v2133 = vsub.f32 %v1884, %v1629
          %v2134 = vsub.f32 %v1885, %v1629
          %v2135 = vsub.f32 %v1886, %v1629
          %v2136 = vsub.f32 %v1887, %v1629
          %v2137 = vadd.f32 %v2121, %v2122
          %v2138 = vadd.f32 %v2137, %v2123
          %v2139 = vadd.f32 %v2138, %v2124
          %v2140 = vadd.f32 %v2139, %v2125
          %v2141 = vadd.f32 %v2140, %v2126
          %v2142 = vadd.f32 %v2141, %v2127
          %v2143 = vadd.f32 %v2142, %v2128
          %v2144 = vadd.f32 %v2143, %v2129
          %v2145 = vadd.f32 %v2144, %v2130
          %v2146 = vadd.f32 %v2145, %v2131
          %v2147 = vadd.f32 %v2146, %v2132
          %v2148 = vadd.f32 %v2147, %v2133
          %v2149 = vadd.f32 %v2148, %v2134
          %v2150 = vadd.f32 %v2149, %v2135
          %v2151 = vadd.f32 %v2150, %v2136
          %2152 = vadd.xlane.f32.xlu0 %v2151
          %v2153 = vpop.xlane.xlu0 %2152
          %v2154 = vrot.slane %v2153, 4
          %v2155 = vadd.f32 %v2153, %v2154
          %v2156 = vrot.slane %v2155, 2
          %v2157 = vadd.f32 %v2155, %v2156
          %v2158 = vrot.slane %v2157, 1
          %v2159 = vadd.f32 %v2157, %v2158
          %s2160 = vtos %v2159
          %s2161 = sadd.f32 %s1670, %s2160
          %v2162 = vmul.f32 %v2121, %v2121
          %v2163 = vmul.f32 %v2122, %v2122
          %v2164 = vmul.f32 %v2123, %v2123
          %v2165 = vmul.f32 %v2124, %v2124
          %v2166 = vmul.f32 %v2125, %v2125
          %v2167 = vmul.f32 %v2126, %v2126
          %v2168 = vmul.f32 %v2127, %v2127
          %v2169 = vmul.f32 %v2128, %v2128
          %v2170 = vmul.f32 %v2129, %v2129
          %v2171 = vmul.f32 %v2130, %v2130
          %v2172 = vmul.f32 %v2131, %v2131
          %v2173 = vmul.f32 %v2132, %v2132
          %v2174 = vmul.f32 %v2133, %v2133
          %v2175 = vmul.f32 %v2134, %v2134
          %v2176 = vmul.f32 %v2135, %v2135
          %v2177 = vmul.f32 %v2136, %v2136
          %v2178 = vadd.f32 %v2162, %v2163
          %v2179 = vadd.f32 %v2178, %v2164
          %v2180 = vadd.f32 %v2179, %v2165
          %v2181 = vadd.f32 %v2180, %v2166
          %v2182 = vadd.f32 %v2181, %v2167
          %v2183 = vadd.f32 %v2182, %v2168
          %v2184 = vadd.f32 %v2183, %v2169
          %v2185 = vadd.f32 %v2184, %v2170
          %v2186 = vadd.f32 %v2185, %v2171
          %v2187 = vadd.f32 %v2186, %v2172
          %v2188 = vadd.f32 %v2187, %v2173
          %v2189 = vadd.f32 %v2188, %v2174
          %v2190 = vadd.f32 %v2189, %v2175
          %v2191 = vadd.f32 %v2190, %v2176
          %v2192 = vadd.f32 %v2191, %v2177
          %2193 = vadd.xlane.f32.xlu0 %v2192
          %v2194 = vpop.xlane.xlu0 %2193
          %v2195 = vrot.slane %v2194, 4
          %v2196 = vadd.f32 %v2194, %v2195
          %v2197 = vrot.slane %v2196, 2
          %v2198 = vadd.f32 %v2196, %v2197
          %v2199 = vrot.slane %v2198, 1
          %v2200 = vadd.f32 %v2198, %v2199
          %s2201 = vtos %v2200
          %s2202 = sadd.f32 %s1711, %s2201
          %v2203 = vld [vmem:[%s865] sm:$0xf]
          %v2204 = vld [vmem:[%s865 + $0x4] sm:$0xf]
          %v2205 = vld [vmem:[%s865 + $0x8] sm:$0xf]
          %v2206 = vld [vmem:[%s865 + $0xc] sm:$0xf]
          %v2207 = vld [vmem:[%s865 + $0x10] sm:$0xf]
          %v2208 = vld [vmem:[%s865 + $0x14] sm:$0xf]
          %v2209 = vld [vmem:[%s865 + $0x18] sm:$0xf]
          %v2210 = vld [vmem:[%s865 + $0x1c] sm:$0xf]
          %v2211 = vld [vmem:[%s865 + $0x20] sm:$0xf]
          %v2212 = vld [vmem:[%s865 + $0x24] sm:$0xf]
          %v2213 = vld [vmem:[%s865 + $0x28] sm:$0xf]
          %v2214 = vld [vmem:[%s865 + $0x2c] sm:$0xf]
          %v2215 = vld [vmem:[%s865 + $0x30] sm:$0xf]
          %v2216 = vld [vmem:[%s865 + $0x34] sm:$0xf]
          %v2217 = vld [vmem:[%s865 + $0x38] sm:$0xf]
          %v2218 = vld [vmem:[%s865 + $0x3c] sm:$0xf]
          %v2219 = vunpack.c.l.bf16 %v2203
          %v2220 = vunpack.c.l.bf16 %v2204
          %v2221 = vunpack.c.l.bf16 %v2205
          %v2222 = vunpack.c.l.bf16 %v2206
          %v2223 = vunpack.c.l.bf16 %v2207
          %v2224 = vunpack.c.l.bf16 %v2208
          %v2225 = vunpack.c.l.bf16 %v2209
          %v2226 = vunpack.c.l.bf16 %v2210
          %v2227 = vunpack.c.l.bf16 %v2211
          %v2228 = vunpack.c.l.bf16 %v2212
          %v2229 = vunpack.c.l.bf16 %v2213
          %v2230 = vunpack.c.l.bf16 %v2214
          %v2231 = vunpack.c.l.bf16 %v2215
          %v2232 = vunpack.c.l.bf16 %v2216
          %v2233 = vunpack.c.l.bf16 %v2217
          %v2234 = vunpack.c.l.bf16 %v2218
          %v2235 = vmax.f32 %v2219, 0.0
          %v2236 = vmax.f32 %v2220, 0.0
          %v2237 = vmax.f32 %v2221, 0.0
          %v2238 = vmax.f32 %v2222, 0.0
          %v2239 = vmax.f32 %v2223, 0.0
          %v2240 = vmax.f32 %v2224, 0.0
          %v2241 = vmax.f32 %v2225, 0.0
          %v2242 = vmax.f32 %v2226, 0.0
          %v2243 = vmax.f32 %v2227, 0.0
          %v2244 = vmax.f32 %v2228, 0.0
          %v2245 = vmax.f32 %v2229, 0.0
          %v2246 = vmax.f32 %v2230, 0.0
          %v2247 = vmax.f32 %v2231, 0.0
          %v2248 = vmax.f32 %v2232, 0.0
          %v2249 = vmax.f32 %v2233, 0.0
          %v2250 = vmax.f32 %v2234, 0.0
          %v2251 = vand.u32 2147483647, %v2219
          %v2252 = vand.u32 2147483647, %v2220
          %v2253 = vand.u32 2147483647, %v2221
          %v2254 = vand.u32 2147483647, %v2222
          %v2255 = vand.u32 2147483647, %v2223
          %v2256 = vand.u32 2147483647, %v2224
          %v2257 = vand.u32 2147483647, %v2225
          %v2258 = vand.u32 2147483647, %v2226
          %v2259 = vand.u32 2147483647, %v2227
          %v2260 = vand.u32 2147483647, %v2228
          %v2261 = vand.u32 2147483647, %v2229
          %v2262 = vand.u32 2147483647, %v2230
          %v2263 = vand.u32 2147483647, %v2231
          %v2264 = vand.u32 2147483647, %v2232
          %v2265 = vand.u32 2147483647, %v2233
          %v2266 = vand.u32 2147483647, %v2234
          %v2267 = vsub.f32 0.0, %v2251
          %v2268 = vsub.f32 0.0, %v2252
          %v2269 = vsub.f32 0.0, %v2253
          %v2270 = vsub.f32 0.0, %v2254
          %v2271 = vsub.f32 0.0, %v2255
          %v2272 = vsub.f32 0.0, %v2256
          %v2273 = vsub.f32 0.0, %v2257
          %v2274 = vsub.f32 0.0, %v2258
          %v2275 = vsub.f32 0.0, %v2259
          %v2276 = vsub.f32 0.0, %v2260
          %v2277 = vsub.f32 0.0, %v2261
          %v2278 = vsub.f32 0.0, %v2262
          %v2279 = vsub.f32 0.0, %v2263
          %v2280 = vsub.f32 0.0, %v2264
          %v2281 = vsub.f32 0.0, %v2265
          %v2282 = vsub.f32 0.0, %v2266
          %v2283 = vmul.f32 %v2267, 1.442695
          %v2284 = vpow.pop %v2283
          %v2285 = vmul.f32 %v2268, 1.442695
          %v2286 = vpow.pop %v2285
          %v2287 = vmul.f32 %v2269, 1.442695
          %v2288 = vpow.pop %v2287
          %v2289 = vmul.f32 %v2270, 1.442695
          %v2290 = vpow.pop %v2289
          %v2291 = vmul.f32 %v2271, 1.442695
          %v2292 = vpow.pop %v2291
          %v2293 = vmul.f32 %v2272, 1.442695
          %v2294 = vpow.pop %v2293
          %v2295 = vmul.f32 %v2273, 1.442695
          %v2296 = vpow.pop %v2295
          %v2297 = vmul.f32 %v2274, 1.442695
          %v2298 = vpow.pop %v2297
          %v2299 = vmul.f32 %v2275, 1.442695
          %v2300 = vpow.pop %v2299
          %v2301 = vmul.f32 %v2276, 1.442695
          %v2302 = vpow.pop %v2301
          %v2303 = vmul.f32 %v2277, 1.442695
          %v2304 = vpow.pop %v2303
          %v2305 = vmul.f32 %v2278, 1.442695
          %v2306 = vpow.pop %v2305
          %v2307 = vmul.f32 %v2279, 1.442695
          %v2308 = vpow.pop %v2307
          %v2309 = vmul.f32 %v2280, 1.442695
          %v2310 = vpow.pop %v2309
          %v2311 = vmul.f32 %v2281, 1.442695
          %v2312 = vpow.pop %v2311
          %v2313 = vmul.f32 %v2282, 1.442695
          %v2314 = vpow.pop %v2313
          %v2315 = vadd.f32 %v2284, 1.0
          %v2316 = vadd.f32 %v2286, 1.0
          %v2317 = vadd.f32 %v2288, 1.0
          %v2318 = vadd.f32 %v2290, 1.0
          %v2319 = vadd.f32 %v2292, 1.0
          %v2320 = vadd.f32 %v2294, 1.0
          %v2321 = vadd.f32 %v2296, 1.0
          %v2322 = vadd.f32 %v2298, 1.0
          %v2323 = vadd.f32 %v2300, 1.0
          %v2324 = vadd.f32 %v2302, 1.0
          %v2325 = vadd.f32 %v2304, 1.0
          %v2326 = vadd.f32 %v2306, 1.0
          %v2327 = vadd.f32 %v2308, 1.0
          %v2328 = vadd.f32 %v2310, 1.0
          %v2329 = vadd.f32 %v2312, 1.0
          %v2330 = vadd.f32 %v2314, 1.0
          %v2331 = vlog2.pop %v2315
          %v2332 = vmul.f32 %v2331, 0.6931472
          %v2333 = vlog2.pop %v2316
          %v2334 = vmul.f32 %v2333, 0.6931472
          %v2335 = vlog2.pop %v2317
          %v2336 = vmul.f32 %v2335, 0.6931472
          %v2337 = vlog2.pop %v2318
          %v2338 = vmul.f32 %v2337, 0.6931472
          %v2339 = vlog2.pop %v2319
          %v2340 = vmul.f32 %v2339, 0.6931472
          %v2341 = vlog2.pop %v2320
          %v2342 = vmul.f32 %v2341, 0.6931472
          %v2343 = vlog2.pop %v2321
          %v2344 = vmul.f32 %v2343, 0.6931472
          %v2345 = vlog2.pop %v2322
          %v2346 = vmul.f32 %v2345, 0.6931472
          %v2347 = vlog2.pop %v2323
          %v2348 = vmul.f32 %v2347, 0.6931472
          %v2349 = vlog2.pop %v2324
          %v2350 = vmul.f32 %v2349, 0.6931472
          %v2351 = vlog2.pop %v2325
          %v2352 = vmul.f32 %v2351, 0.6931472
          %v2353 = vlog2.pop %v2326
          %v2354 = vmul.f32 %v2353, 0.6931472
          %v2355 = vlog2.pop %v2327
          %v2356 = vmul.f32 %v2355, 0.6931472
          %v2357 = vlog2.pop %v2328
          %v2358 = vmul.f32 %v2357, 0.6931472
          %v2359 = vlog2.pop %v2329
          %v2360 = vmul.f32 %v2359, 0.6931472
          %v2361 = vlog2.pop %v2330
          %v2362 = vmul.f32 %v2361, 0.6931472
          %v2363 = vadd.f32 %v2235, %v2332
          %v2364 = vadd.f32 %v2236, %v2334
          %v2365 = vadd.f32 %v2237, %v2336
          %v2366 = vadd.f32 %v2238, %v2338
          %v2367 = vadd.f32 %v2239, %v2340
          %v2368 = vadd.f32 %v2240, %v2342
          %v2369 = vadd.f32 %v2241, %v2344
          %v2370 = vadd.f32 %v2242, %v2346
          %v2371 = vadd.f32 %v2243, %v2348
          %v2372 = vadd.f32 %v2244, %v2350
          %v2373 = vadd.f32 %v2245, %v2352
          %v2374 = vadd.f32 %v2246, %v2354
          %v2375 = vadd.f32 %v2247, %v2356
          %v2376 = vadd.f32 %v2248, %v2358
          %v2377 = vadd.f32 %v2249, %v2360
          %v2378 = vadd.f32 %v2250, %v2362
          %v2379 = vld [vmem:[%s813] sm:$0xf]
          %v2380 = vld [vmem:[%s813 + $0x4] sm:$0xf]
          %v2381 = vld [vmem:[%s813 + $0x8] sm:$0xf]
          %v2382 = vld [vmem:[%s813 + $0xc] sm:$0xf]
          %v2383 = vld [vmem:[%s813 + $0x10] sm:$0xf]
          %v2384 = vld [vmem:[%s813 + $0x14] sm:$0xf]
          %v2385 = vld [vmem:[%s813 + $0x18] sm:$0xf]
          %v2386 = vld [vmem:[%s813 + $0x1c] sm:$0xf]
          %v2387 = vld [vmem:[%s813 + $0x20] sm:$0xf]
          %v2388 = vld [vmem:[%s813 + $0x24] sm:$0xf]
          %v2389 = vld [vmem:[%s813 + $0x28] sm:$0xf]
          %v2390 = vld [vmem:[%s813 + $0x2c] sm:$0xf]
          %v2391 = vld [vmem:[%s813 + $0x30] sm:$0xf]
          %v2392 = vld [vmem:[%s813 + $0x34] sm:$0xf]
          %v2393 = vld [vmem:[%s813 + $0x38] sm:$0xf]
          %v2394 = vld [vmem:[%s813 + $0x3c] sm:$0xf]
          %v2395 = vunpack.c.l.bf16 %v2379
          %v2396 = vunpack.c.l.bf16 %v2380
          %v2397 = vunpack.c.l.bf16 %v2381
          %v2398 = vunpack.c.l.bf16 %v2382
          %v2399 = vunpack.c.l.bf16 %v2383
          %v2400 = vunpack.c.l.bf16 %v2384
          %v2401 = vunpack.c.l.bf16 %v2385
          %v2402 = vunpack.c.l.bf16 %v2386
          %v2403 = vunpack.c.l.bf16 %v2387
          %v2404 = vunpack.c.l.bf16 %v2388
          %v2405 = vunpack.c.l.bf16 %v2389
          %v2406 = vunpack.c.l.bf16 %v2390
          %v2407 = vunpack.c.l.bf16 %v2391
          %v2408 = vunpack.c.l.bf16 %v2392
          %v2409 = vunpack.c.l.bf16 %v2393
          %v2410 = vunpack.c.l.bf16 %v2394
          %v2411 = vsub.f32 %v1106, %v2395
          %v2412 = vsub.f32 %v1107, %v2396
          %v2413 = vsub.f32 %v1108, %v2397
          %v2414 = vsub.f32 %v1109, %v2398
          %v2415 = vsub.f32 %v1110, %v2399
          %v2416 = vsub.f32 %v1111, %v2400
          %v2417 = vsub.f32 %v1112, %v2401
          %v2418 = vsub.f32 %v1113, %v2402
          %v2419 = vsub.f32 %v1114, %v2403
          %v2420 = vsub.f32 %v1115, %v2404
          %v2421 = vsub.f32 %v1116, %v2405
          %v2422 = vsub.f32 %v1117, %v2406
          %v2423 = vsub.f32 %v1118, %v2407
          %v2424 = vsub.f32 %v1119, %v2408
          %v2425 = vsub.f32 %v1120, %v2409
          %v2426 = vsub.f32 %v1121, %v2410
          %v2427 = vadd.f32 %v2363, 1e-10
          %v2428 = vadd.f32 %v2364, 1e-10
          %v2429 = vadd.f32 %v2365, 1e-10
          %v2430 = vadd.f32 %v2366, 1e-10
          %v2431 = vadd.f32 %v2367, 1e-10
          %v2432 = vadd.f32 %v2368, 1e-10
          %v2433 = vadd.f32 %v2369, 1e-10
          %v2434 = vadd.f32 %v2370, 1e-10
          %v2435 = vadd.f32 %v2371, 1e-10
          %v2436 = vadd.f32 %v2372, 1e-10
          %v2437 = vadd.f32 %v2373, 1e-10
          %v2438 = vadd.f32 %v2374, 1e-10
          %v2439 = vadd.f32 %v2375, 1e-10
          %v2440 = vadd.f32 %v2376, 1e-10
          %v2441 = vadd.f32 %v2377, 1e-10
          %v2442 = vadd.f32 %v2378, 1e-10
          %v2443 = vlog2.pop %v2427
          %v2444 = vmul.f32 %v2443, 0.6931472
          %v2445 = vlog2.pop %v2428
          %v2446 = vmul.f32 %v2445, 0.6931472
          %v2447 = vlog2.pop %v2429
          %v2448 = vmul.f32 %v2447, 0.6931472
          %v2449 = vlog2.pop %v2430
          %v2450 = vmul.f32 %v2449, 0.6931472
          %v2451 = vlog2.pop %v2431
          %v2452 = vmul.f32 %v2451, 0.6931472
          %v2453 = vlog2.pop %v2432
          %v2454 = vmul.f32 %v2453, 0.6931472
          %v2455 = vlog2.pop %v2433
          %v2456 = vmul.f32 %v2455, 0.6931472
          %v2457 = vlog2.pop %v2434
          %v2458 = vmul.f32 %v2457, 0.6931472
          %v2459 = vlog2.pop %v2435
          %v2460 = vmul.f32 %v2459, 0.6931472
          %v2461 = vlog2.pop %v2436
          %v2462 = vmul.f32 %v2461, 0.6931472
          %v2463 = vlog2.pop %v2437
          %v2464 = vmul.f32 %v2463, 0.6931472
          %v2465 = vlog2.pop %v2438
          %v2466 = vmul.f32 %v2465, 0.6931472
          %v2467 = vlog2.pop %v2439
          %v2468 = vmul.f32 %v2467, 0.6931472
          %v2469 = vlog2.pop %v2440
          %v2470 = vmul.f32 %v2469, 0.6931472
          %v2471 = vlog2.pop %v2441
          %v2472 = vmul.f32 %v2471, 0.6931472
          %v2473 = vlog2.pop %v2442
          %v2474 = vmul.f32 %v2473, 0.6931472
          %v2475 = vsub.f32 0.0, %v2444
          %v2476 = vsub.f32 0.0, %v2446
          %v2477 = vsub.f32 0.0, %v2448
          %v2478 = vsub.f32 0.0, %v2450
          %v2479 = vsub.f32 0.0, %v2452
          %v2480 = vsub.f32 0.0, %v2454
          %v2481 = vsub.f32 0.0, %v2456
          %v2482 = vsub.f32 0.0, %v2458
          %v2483 = vsub.f32 0.0, %v2460
          %v2484 = vsub.f32 0.0, %v2462
          %v2485 = vsub.f32 0.0, %v2464
          %v2486 = vsub.f32 0.0, %v2466
          %v2487 = vsub.f32 0.0, %v2468
          %v2488 = vsub.f32 0.0, %v2470
          %v2489 = vsub.f32 0.0, %v2472
          %v2490 = vsub.f32 0.0, %v2474
          %v2491 = vmul.f32 %v2411, %v2411
          %v2492 = vmul.f32 %v2412, %v2412
          %v2493 = vmul.f32 %v2413, %v2413
          %v2494 = vmul.f32 %v2414, %v2414
          %v2495 = vmul.f32 %v2415, %v2415
          %v2496 = vmul.f32 %v2416, %v2416
          %v2497 = vmul.f32 %v2417, %v2417
          %v2498 = vmul.f32 %v2418, %v2418
          %v2499 = vmul.f32 %v2419, %v2419
          %v2500 = vmul.f32 %v2420, %v2420
          %v2501 = vmul.f32 %v2421, %v2421
          %v2502 = vmul.f32 %v2422, %v2422
          %v2503 = vmul.f32 %v2423, %v2423
          %v2504 = vmul.f32 %v2424, %v2424
          %v2505 = vmul.f32 %v2425, %v2425
          %v2506 = vmul.f32 %v2426, %v2426
          %v2507 = vmul.f32 %v2363, 2.0
          %v2508 = vmul.f32 %v2364, 2.0
          %v2509 = vmul.f32 %v2365, 2.0
          %v2510 = vmul.f32 %v2366, 2.0
          %v2511 = vmul.f32 %v2367, 2.0
          %v2512 = vmul.f32 %v2368, 2.0
          %v2513 = vmul.f32 %v2369, 2.0
          %v2514 = vmul.f32 %v2370, 2.0
          %v2515 = vmul.f32 %v2371, 2.0
          %v2516 = vmul.f32 %v2372, 2.0
          %v2517 = vmul.f32 %v2373, 2.0
          %v2518 = vmul.f32 %v2374, 2.0
          %v2519 = vmul.f32 %v2375, 2.0
          %v2520 = vmul.f32 %v2376, 2.0
          %v2521 = vmul.f32 %v2377, 2.0
          %v2522 = vmul.f32 %v2378, 2.0
          %v2523 = vmul.f32 %v2507, %v2363
          %v2524 = vmul.f32 %v2508, %v2364
          %v2525 = vmul.f32 %v2509, %v2365
          %v2526 = vmul.f32 %v2510, %v2366
          %v2527 = vmul.f32 %v2511, %v2367
          %v2528 = vmul.f32 %v2512, %v2368
          %v2529 = vmul.f32 %v2513, %v2369
          %v2530 = vmul.f32 %v2514, %v2370
          %v2531 = vmul.f32 %v2515, %v2371
          %v2532 = vmul.f32 %v2516, %v2372
          %v2533 = vmul.f32 %v2517, %v2373
          %v2534 = vmul.f32 %v2518, %v2374
          %v2535 = vmul.f32 %v2519, %v2375
          %v2536 = vmul.f32 %v2520, %v2376
          %v2537 = vmul.f32 %v2521, %v2377
          %v2538 = vmul.f32 %v2522, %v2378
          %v2539 = vrcp.pop %v2523
          %v2540 = vmul.f32 %v2491, %v2539
          %v2541 = vrcp.pop %v2524
          %v2542 = vmul.f32 %v2492, %v2541
          %v2543 = vrcp.pop %v2525
          %v2544 = vmul.f32 %v2493, %v2543
          %v2545 = vrcp.pop %v2526
          %v2546 = vmul.f32 %v2494, %v2545
          %v2547 = vrcp.pop %v2527
          %v2548 = vmul.f32 %v2495, %v2547
          %v2549 = vrcp.pop %v2528
          %v2550 = vmul.f32 %v2496, %v2549
          %v2551 = vrcp.pop %v2529
          %v2552 = vmul.f32 %v2497, %v2551
          %v2553 = vrcp.pop %v2530
          %v2554 = vmul.f32 %v2498, %v2553
          %v2555 = vrcp.pop %v2531
          %v2556 = vmul.f32 %v2499, %v2555
          %v2557 = vrcp.pop %v2532
          %v2558 = vmul.f32 %v2500, %v2557
          %v2559 = vrcp.pop %v2533
          %v2560 = vmul.f32 %v2501, %v2559
          %v2561 = vrcp.pop %v2534
          %v2562 = vmul.f32 %v2502, %v2561
          %v2563 = vrcp.pop %v2535
          %v2564 = vmul.f32 %v2503, %v2563
          %v2565 = vrcp.pop %v2536
          %v2566 = vmul.f32 %v2504, %v2565
          %v2567 = vrcp.pop %v2537
          %v2568 = vmul.f32 %v2505, %v2567
          %v2569 = vrcp.pop %v2538
          %v2570 = vmul.f32 %v2506, %v2569
          %v2571 = vsub.f32 %v2475, %v2540
          %v2572 = vsub.f32 %v2476, %v2542
          %v2573 = vsub.f32 %v2477, %v2544
          %v2574 = vsub.f32 %v2478, %v2546
          %v2575 = vsub.f32 %v2479, %v2548
          %v2576 = vsub.f32 %v2480, %v2550
          %v2577 = vsub.f32 %v2481, %v2552
          %v2578 = vsub.f32 %v2482, %v2554
          %v2579 = vsub.f32 %v2483, %v2556
          %v2580 = vsub.f32 %v2484, %v2558
          %v2581 = vsub.f32 %v2485, %v2560
          %v2582 = vsub.f32 %v2486, %v2562
          %v2583 = vsub.f32 %v2487, %v2564
          %v2584 = vsub.f32 %v2488, %v2566
          %v2585 = vsub.f32 %v2489, %v2568
          %v2586 = vsub.f32 %v2490, %v2570
          %v2587 = vadd.f32 %v2571, %v2572
          %v2588 = vadd.f32 %v2587, %v2573
          %v2589 = vadd.f32 %v2588, %v2574
          %v2590 = vadd.f32 %v2589, %v2575
          %v2591 = vadd.f32 %v2590, %v2576
          %v2592 = vadd.f32 %v2591, %v2577
          %v2593 = vadd.f32 %v2592, %v2578
          %v2594 = vadd.f32 %v2593, %v2579
          %v2595 = vadd.f32 %v2594, %v2580
          %v2596 = vadd.f32 %v2595, %v2581
          %v2597 = vadd.f32 %v2596, %v2582
          %v2598 = vadd.f32 %v2597, %v2583
          %v2599 = vadd.f32 %v2598, %v2584
          %v2600 = vadd.f32 %v2599, %v2585
          %v2601 = vadd.f32 %v2600, %v2586
          %2602 = vadd.xlane.f32.xlu0 %v2601
          %v2603 = vpop.xlane.xlu0 %2602
          %v2604 = vrot.slane %v2603, 4
          %v2605 = vadd.f32 %v2603, %v2604
          %v2606 = vrot.slane %v2605, 2
          %v2607 = vadd.f32 %v2605, %v2606
          %v2608 = vrot.slane %v2607, 1
          %v2609 = vadd.f32 %v2607, %v2608
          %s2610 = vtos %v2609
          %s2611 = sadd.f32 %s2120, %s2610
          %v2612 = vsub.f32 %v2363, %v1629
          %v2613 = vsub.f32 %v2364, %v1629
          %v2614 = vsub.f32 %v2365, %v1629
          %v2615 = vsub.f32 %v2366, %v1629
          %v2616 = vsub.f32 %v2367, %v1629
          %v2617 = vsub.f32 %v2368, %v1629
          %v2618 = vsub.f32 %v2369, %v1629
          %v2619 = vsub.f32 %v2370, %v1629
          %v2620 = vsub.f32 %v2371, %v1629
          %v2621 = vsub.f32 %v2372, %v1629
          %v2622 = vsub.f32 %v2373, %v1629
          %v2623 = vsub.f32 %v2374, %v1629
          %v2624 = vsub.f32 %v2375, %v1629
          %v2625 = vsub.f32 %v2376, %v1629
          %v2626 = vsub.f32 %v2377, %v1629
          %v2627 = vsub.f32 %v2378, %v1629
          %v2628 = vadd.f32 %v2612, %v2613
          %v2629 = vadd.f32 %v2628, %v2614
          %v2630 = vadd.f32 %v2629, %v2615
          %v2631 = vadd.f32 %v2630, %v2616
          %v2632 = vadd.f32 %v2631, %v2617
          %v2633 = vadd.f32 %v2632, %v2618
          %v2634 = vadd.f32 %v2633, %v2619
          %v2635 = vadd.f32 %v2634, %v2620
          %v2636 = vadd.f32 %v2635, %v2621
          %v2637 = vadd.f32 %v2636, %v2622
          %v2638 = vadd.f32 %v2637, %v2623
          %v2639 = vadd.f32 %v2638, %v2624
          %v2640 = vadd.f32 %v2639, %v2625
          %v2641 = vadd.f32 %v2640, %v2626
          %v2642 = vadd.f32 %v2641, %v2627
          %2643 = vadd.xlane.f32.xlu0 %v2642
          %v2644 = vpop.xlane.xlu0 %2643
          %v2645 = vrot.slane %v2644, 4
          %v2646 = vadd.f32 %v2644, %v2645
          %v2647 = vrot.slane %v2646, 2
          %v2648 = vadd.f32 %v2646, %v2647
          %v2649 = vrot.slane %v2648, 1
          %v2650 = vadd.f32 %v2648, %v2649
          %s2651 = vtos %v2650
          %s2652 = sadd.f32 %s2161, %s2651
          %v2653 = vmul.f32 %v2612, %v2612
          %v2654 = vmul.f32 %v2613, %v2613
          %v2655 = vmul.f32 %v2614, %v2614
          %v2656 = vmul.f32 %v2615, %v2615
          %v2657 = vmul.f32 %v2616, %v2616
          %v2658 = vmul.f32 %v2617, %v2617
          %v2659 = vmul.f32 %v2618, %v2618
          %v2660 = vmul.f32 %v2619, %v2619
          %v2661 = vmul.f32 %v2620, %v2620
          %v2662 = vmul.f32 %v2621, %v2621
          %v2663 = vmul.f32 %v2622, %v2622
          %v2664 = vmul.f32 %v2623, %v2623
          %v2665 = vmul.f32 %v2624, %v2624
          %v2666 = vmul.f32 %v2625, %v2625
          %v2667 = vmul.f32 %v2626, %v2626
          %v2668 = vmul.f32 %v2627, %v2627
          %v2669 = vadd.f32 %v2653, %v2654
          %v2670 = vadd.f32 %v2669, %v2655
          %v2671 = vadd.f32 %v2670, %v2656
          %v2672 = vadd.f32 %v2671, %v2657
          %v2673 = vadd.f32 %v2672, %v2658
          %v2674 = vadd.f32 %v2673, %v2659
          %v2675 = vadd.f32 %v2674, %v2660
          %v2676 = vadd.f32 %v2675, %v2661
          %v2677 = vadd.f32 %v2676, %v2662
          %v2678 = vadd.f32 %v2677, %v2663
          %v2679 = vadd.f32 %v2678, %v2664
          %v2680 = vadd.f32 %v2679, %v2665
          %v2681 = vadd.f32 %v2680, %v2666
          %v2682 = vadd.f32 %v2681, %v2667
          %v2683 = vadd.f32 %v2682, %v2668
          %2684 = vadd.xlane.f32.xlu0 %v2683
          %v2685 = vpop.xlane.xlu0 %2684
          %v2686 = vrot.slane %v2685, 4
          %v2687 = vadd.f32 %v2685, %v2686
          %v2688 = vrot.slane %v2687, 2
          %v2689 = vadd.f32 %v2687, %v2688
          %v2690 = vrot.slane %v2689, 1
          %v2691 = vadd.f32 %v2689, %v2690
          %s2692 = vtos %v2691
          %s2693 = sadd.f32 %s2202, %s2692
          %v2694 = vlaneseq
          %v2695 = vand.u32 %v2694, 127
          %v2696 = vld [vmem:[%s620] sm:$0x1]
          %vm2697 = vcmp.eq.s32.totalorder %v2695, 0
          %v2698 = vstv %s2611
          %v2699 = vsel %vm2697, %v2698, 0.0
          %vm2700 = vcmp.eq.s32.totalorder %v2695, 2
          %v2701 = vstv %s1219
          %v2702 = vsel %vm2700, %v2701, 0.0
          %v2703 = vadd.f32 %v2699, %v2702
          %vm2704 = vcmp.eq.s32.totalorder %v2695, 4
          %v2705 = vstv %s2652
          %v2706 = vsel %vm2704, %v2705, 0.0
          %v2707 = vadd.f32 %v2703, %v2706
          %vm2708 = vcmp.eq.s32.totalorder %v2695, 5
          %v2709 = vstv %s2693
          %v2710 = vsel %vm2708, %v2709, 0.0
          %v2711 = vadd.f32 %v2707, %v2710
          %v2712 = vadd.f32 %v2696, %v2711
          %2713 = vst [vmem:[%s620] sm:$0x1] %v2712
        $region76: #{tpu_custom_call.1} parent=47 // pred_fallthru
          _
        %p2714 = scmp.eq.s32.totalorder %s46, 1
        // Predicated region
        $region77: #{tpu_custom_call.1} parent=47 // pred_check
          %p2715 = pneg %p2714
        $region78: #{tpu_custom_call.1} parent=47 // pred_check_branch
          %2717 = sbr.rel (%p2715) target = $region80
        $region79: #{tpu_custom_call.1} parent=47 // pred_region
          %v2718 = vld [vmem:[%s628] sm:$0x7]
          %v2719 = vld [vmem:[%s552] sm:$0x7]
          %v2720 = vlaneseq
          %v2721 = vshrl.u32 %v2720, 7
          %v2722 = vstv %s639
          %vm2723 = vcmp.eq.s32.totalorder %v2721, %v2722
          %v2724 = vsel %vm2723, %v2718, 0.0
          %vm2725 = vcmask 1042432
          %v2726 = vsel %vm2725, %v2724, 0.0
          %v2727 = vrot.slane %v2726, 4
          %v2728 = vadd.f32 %v2726, %v2727
          %v2729 = vrot.slane %v2728, 2
          %v2730 = vadd.f32 %v2728, %v2729
          %v2731 = vrot.slane %v2730, 1
          %v2732 = vadd.f32 %v2730, %v2731
          %v2733 = vsel %vm2723, %v2719, 0.0
          %v2734 = vsel %vm2725, %v2733, 0.0
          %v2735 = vrot.slane %v2734, 4
          %v2736 = vadd.f32 %v2734, %v2735
          %v2737 = vrot.slane %v2736, 2
          %v2738 = vadd.f32 %v2736, %v2737
          %v2739 = vrot.slane %v2738, 1
          %v2740 = vadd.f32 %v2738, %v2739
          %v2741 = vmax.f32 %v2740, 0.0
          %v2742 = vand.u32 2147483647, %v2740
          %v2743 = vsub.f32 0.0, %v2742
          %v2744 = vmul.f32 %v2743, 1.442695
          %v2745 = vpow.pop %v2744
          %v2746 = vadd.f32 %v2745, 1.0
          %v2747 = vlog2.pop %v2746
          %v2748 = vmul.f32 %v2747, 0.6931472
          %v2749 = vadd.f32 %v2741, %v2748
          %v2750 = vld [vmem:[%s636] sm:$0x1]
          %v2751 = vmul.f32 %v2749, %v2750
          %v2752 = vadd.f32 %v2732, %v2751
          %v2753 = vld [vmem:[%s614] sm:$0xff]
          %v2754 = vlaneseq
          %v2755 = vshrl.u32 %v2754, 7
          %v2756 = vsub.s32 0, %v2755
          %v2757 = vrot.slane %v2752, %v2756
          %v2758 = vadd.f32 %v2753, %v2757
          %2759 = vst [vmem:[%s614] sm:$0xff] %v2758
        $region80: #{tpu_custom_call.1} parent=47 // pred_fallthru
          _
        %p2760 = pnand %p2714, %p1175
        %p2761 = pneg %p2760
        // Predicated region
        $region81: #{tpu_custom_call.1} parent=47 // pred_check
          _
        $region82: #{tpu_custom_call.1} parent=47 // pred_check_branch
          %2763 = sbr.rel (%p2760) target = $region84
        $region83: #{tpu_custom_call.1} parent=47 // pred_region
          %v2764 = vld [vmem:[%s628] sm:$0x7]
          %v2765 = vld [vmem:[%s552] sm:$0x7]
          %v2766 = vlaneseq
          %v2767 = vshrl.u32 %v2766, 7
          %v2768 = vstv %s639
          %vm2769 = vcmp.eq.s32.totalorder %v2767, %v2768
          %v2770 = vsel %vm2769, %v2764, 0.0
          %vm2771 = vcmask 1042432
          %v2772 = vsel %vm2771, %v2770, 0.0
          %v2773 = vrot.slane %v2772, 4
          %v2774 = vadd.f32 %v2772, %v2773
          %v2775 = vrot.slane %v2774, 2
          %v2776 = vadd.f32 %v2774, %v2775
          %v2777 = vrot.slane %v2776, 1
          %v2778 = vadd.f32 %v2776, %v2777
          %v2779 = vsel %vm2769, %v2765, 0.0
          %v2780 = vsel %vm2771, %v2779, 0.0
          %v2781 = vrot.slane %v2780, 4
          %v2782 = vadd.f32 %v2780, %v2781
          %v2783 = vrot.slane %v2782, 2
          %v2784 = vadd.f32 %v2782, %v2783
          %v2785 = vrot.slane %v2784, 1
          %v2786 = vadd.f32 %v2784, %v2785
          %v2787 = vmax.f32 %v2786, 0.0
          %v2788 = vand.u32 2147483647, %v2786
          %v2789 = vsub.f32 0.0, %v2788
          %v2790 = vmul.f32 %v2789, 1.442695
          %v2791 = vpow.pop %v2790
          %v2792 = vadd.f32 %v2791, 1.0
          %v2793 = vlog2.pop %v2792
          %v2794 = vmul.f32 %v2793, 0.6931472
          %v2795 = vadd.f32 %v2787, %v2794
          %v2796 = vld [vmem:[%s636] sm:$0x1]
          %v2797 = vmul.f32 %v2795, %v2796
          %v2798 = vadd.f32 %v2778, %v2797
          %v2799 = vmax.f32 %v2765, 0.0
          %v2800 = vand.u32 2147483647, %v2765
          %v2801 = vsub.f32 0.0, %v2800
          %v2802 = vmul.f32 %v2801, 1.442695
          %v2803 = vpow.pop %v2802
          %v2804 = vadd.f32 %v2803, 1.0
          %v2805 = vlog2.pop %v2804
          %v2806 = vmul.f32 %v2805, 0.6931472
          %v2807 = vadd.f32 %v2799, %v2806
          %v2808 = vlaneseq
          %v2809 = vshrl.u32 %v2808, 7
          %v2810 = vsub.s32 0, %v2809
          %v2811 = vrot.slane %v2798, %v2810
          %v2812 = vsub.f32 %v2811, %v2764
          %v2813 = vadd.f32 %v2807, 1e-10
          %v2814 = vlog2.pop %v2813
          %v2815 = vmul.f32 %v2814, 0.6931472
          %v2816 = vsub.f32 0.0, %v2815
          %v2817 = vmul.f32 %v2812, %v2812
          %v2818 = vmul.f32 %v2807, 2.0
          %v2819 = vmul.f32 %v2818, %v2807
          %v2820 = vrcp.pop %v2819
          %v2821 = vmul.f32 %v2817, %v2820
          %v2822 = vsub.f32 %v2816, %v2821
          %v2823 = vsel %vm2771, %v2822, 0.0
          %2824 = vadd.xlane.f32.xlu0 %v2823
          %v2825 = vpop.xlane.xlu0 %2824
          %v2826 = vrot.slane %v2825, 4
          %v2827 = vadd.f32 %v2825, %v2826
          %v2828 = vrot.slane %v2827, 2
          %v2829 = vadd.f32 %v2827, %v2828
          %v2830 = vrot.slane %v2829, 1
          %v2831 = vadd.f32 %v2829, %v2830
          %s2832 = vtos %v2831
          %v2833 = vmul.f32 %v2798, %v2798
          %vm2834 = vcmask 1040384
          %v2835 = vsel %vm2834, %v2833, 0.0
          %2836 = vadd.xlane.f32.xlu0 %v2835
          %v2837 = vpop.xlane.xlu0 %2836
          %v2838 = vrot.slane %v2837, 4
          %v2839 = vadd.f32 %v2837, %v2838
          %v2840 = vrot.slane %v2839, 2
          %v2841 = vadd.f32 %v2839, %v2840
          %v2842 = vrot.slane %v2841, 1
          %v2843 = vadd.f32 %v2841, %v2842
          %s2844 = vtos %v2843
          %v2845 = vlaneseq
          %v2846 = vand.u32 %v2845, 127
          %v2847 = vld [vmem:[%s620] sm:$0x1]
          %vm2848 = vcmp.eq.s32.totalorder %v2846, 1
          %v2849 = vstv %s2832
          %v2850 = vsel %vm2848, %v2849, 0.0
          %vm2851 = vcmp.eq.s32.totalorder %v2846, 3
          %v2852 = vstv %s2844
          %v2853 = vsel %vm2851, %v2852, 0.0
          %v2854 = vadd.f32 %v2850, %v2853
          %v2855 = vadd.f32 %v2847, %v2854
          %2856 = vst [vmem:[%s620] sm:$0x1] %v2855
        $region84: #{tpu_custom_call.1} parent=47 // pred_fallthru
          _
        %s2857 = sand.u32 %s266, 1
        %s2858 = scalar_lea.sflag [#allocation7], %s2857
        %s2859 = sand.u32 %s266, 1
        %s2860 = smul.addr %s2859, 8
        %s2861 = scalar_lea.vmem [#allocation14], %s2860
        %s2862 = sand.u32 %s294, 1
        %s2863 = scalar_lea.sflag [#allocation16], %s2862
        %s2864 = sand.u32 %s294, 1
        %s2865 = scalar_lea.vmem [#allocation15], %s2864
        // Predicated region
        $region85: #{tpu_custom_call.1} parent=47 // pred_check
          %p2866 = pneg %p276
        $region86: #{tpu_custom_call.1} parent=47 // pred_check_branch
          %2868 = sbr.rel (%p2866) target = $region88
        $region87: #{tpu_custom_call.1} parent=47 // pred_region
          %s2870 = ssub.s32 128, 128
          %2871 = vsyncadd %s2858, %s2870
          %s2872 = smul.addr %s44, 2
          %s2873 = sadd.s32 %s45, %s2872
          %s2874 = smul.addr %s2873, 128
          %s2875 = scalar_lea.hbm %s9, %s2874
          %s2877 = sshll.u32 %s2861, 4
          %s2878 = int_to_ptr.vmem [resolvable:$true] %s2877
          %2880 = dma.vmem_to_hbm [thread:$0]  %s2878, 128, %s2875, %s2858
        $region88: #{tpu_custom_call.1} parent=47 // pred_fallthru
          _
        // Predicated region
        $region89: #{tpu_custom_call.1} parent=47 // pred_check
          %p2881 = pneg %p304
        $region90: #{tpu_custom_call.1} parent=47 // pred_check_branch
          %2883 = sbr.rel (%p2881) target = $region92
        $region91: #{tpu_custom_call.1} parent=47 // pred_region
          %s2885 = ssub.s32 16, 16
          %2886 = vsyncadd %s2863, %s2885
          %s2887 = smul.addr %s44, 2
          %s2888 = sadd.s32 %s45, %s2887
          %s2889 = smul.addr %s2888, 16
          %s2890 = scalar_lea.hbm %s10, %s2889
          %s2892 = sshll.u32 %s2865, 4
          %s2893 = int_to_ptr.vmem [resolvable:$true] %s2892
          %2895 = dma.vmem_to_hbm [thread:$0]  %s2893, 16, %s2890, %s2863
        $region92: #{tpu_custom_call.1} parent=47 // pred_fallthru
          _
      $region48: #{tpu_custom_call.1} parent=5 // pred_fallthru
        _
      %p2896 = scmp.le.s32.totalorder 2, %s34
      // Predicated region
      $region93: #{tpu_custom_call.1} parent=5 // pred_check
        %p2897 = pneg %p2896
      $region94: #{tpu_custom_call.1} parent=5 // pred_check_branch
        %2899 = sbr.rel (%p2897) target = $region96
      $region95: #{tpu_custom_call.1} parent=5 // pred_region
        %s2900 = ssub.s32 %s34, 2
        // Predicated region
        $region97: #{tpu_custom_call.1} parent=95 // pred_check
          %p2901 = pneg %p282
        $region98: #{tpu_custom_call.1} parent=95 // pred_check_branch
          %2903 = sbr.rel (%p2901) target = $region100
        $region99: #{tpu_custom_call.1} parent=95 // pred_region
          %s2904 = sand.u32 %s267, 1
          %s2905 = scalar_lea.sflag [#allocation7], %s2904
          %s2906 = sand.u32 %s267, 1
          %s2907 = smul.addr %s2906, 8
          %s2908 = scalar_lea.vmem [#allocation14], %s2907
          %2909 = dma.done %s2905, 128
        $region100: #{tpu_custom_call.1} parent=95 // pred_fallthru
          _
        // Predicated region
        $region101: #{tpu_custom_call.1} parent=95 // pred_check
          %p2910 = pneg %p310
        $region102: #{tpu_custom_call.1} parent=95 // pred_check_branch
          %2912 = sbr.rel (%p2910) target = $region104
        $region103: #{tpu_custom_call.1} parent=95 // pred_region
          %s2913 = sand.u32 %s295, 1
          %s2914 = scalar_lea.sflag [#allocation16], %s2913
          %s2915 = sand.u32 %s295, 1
          %s2916 = scalar_lea.vmem [#allocation15], %s2915
          %2917 = dma.done %s2914, 16
        $region104: #{tpu_custom_call.1} parent=95 // pred_fallthru
          _
      $region96: #{tpu_custom_call.1} parent=5 // pred_fallthru
        _
    $region6: #{tpu_custom_call.1} parent=1 // loop_footer
      %s38 = sadd.s32 1, %s34
    $region7: #{tpu_custom_call.1} parent=1 // loop_footer_branch
      %33 = sbr.rel target = $region3
    $region8: #{tpu_custom_call.1} parent=1 // loop_exit
      _
    %2918 = vsyncpa [#allocation6], 1
    %s2919 = scalar_lea.sflag [#allocation6], 1
    %2920 = vsyncpa %s2919, 1
    %2921 = vsyncpa [#allocation9], 1
    %s2922 = scalar_lea.sflag [#allocation9], 1
    %2923 = vsyncpa %s2922, 1
    %2924 = vsyncpa [#allocation12], 1
    %s2925 = scalar_lea.sflag [#allocation12], 1
    %2926 = vsyncpa %s2925, 1
    %2927 = vsyncpa [#allocation7], 1
    %s2928 = scalar_lea.sflag [#allocation7], 1
    %2929 = vsyncpa %s2928, 1
    %2930 = vsyncpa [#allocation16], 1
    %s2931 = scalar_lea.sflag [#allocation16], 1
    %2932 = vsyncpa %s2931, 1

</llo_original>
